<compile_context>
chip_gen: v7x
topology: tpu7x:2x2x1
jax: 0.10.0
libtpu: 0.0.40
codegen_flags: <defaults>
</compile_context>

<pallas_src>
import jax
import jax.numpy as jnp
import numpy as np
from jax import lax
from jax.experimental import pallas as pl
from jax.experimental.pallas import tpu as pltpu


# --------------------- stage 1: conv -> relu -> pool (x2) -------------------- #

def _make_conv_feature_kernel(nph, Ph1, Pw1p, C1, KH, KW, Hn2, Wo2c, C2,
                              Ph2, Pw2, PK, PS):
    """Per-image kernel: phase-decimated conv1 matmul + pool1 (outer-axis max),
    conv2 as 4 kw-slab matmuls (K = KH*C1 = 128), pool2, HWC flatten."""

    def kernel(p_ref, w1_ref, b1_ref, w2_ref, b2_ref, o_ref):
        f32 = jnp.float32

        # ---- conv1 + ReLU: one fat MXU matmul over all phase-decimated patches ----
        y1 = jnp.dot(p_ref[0], w1_ref[...], preferred_element_type=f32)
        y1 = jnp.maximum(y1 + b1_ref[...], 0.0)                  # (nph*Ph1*Pw1p, C1)
        y1 = y1.reshape(nph, Ph1, Pw1p, C1)                      # Pw1p % 8 == 0 -> free

        # ---- pool1: elementwise max over the 9 (row,col) phase slabs (outer axis) ----
        pooled1 = y1[0]
        for k in range(1, nph):
            pooled1 = jnp.maximum(pooled1, y1[k])                # (Ph1, Pw1p, C1)

        # ---- conv2 + ReLU: 4 kw-slab matmuls, each contracting K = KH*C1 = 128 ----
        def slab(kw):
            s = jnp.concatenate(
                [pooled1[kh:kh + Hn2, kw:kw + Wo2c, :] for kh in range(KH)],
                axis=-1)                                         # (Hn2, Wo2c, KH*C1)
            return s.reshape(Hn2 * Wo2c, KH * C1)                # Wo2c % 8 == 0 -> free

        acc = jnp.dot(slab(0), w2_ref[0], preferred_element_type=f32)
        for kw in range(1, KW):
            acc = acc + jnp.dot(slab(kw), w2_ref[kw], preferred_element_type=f32)
        y2 = jnp.maximum(acc + b2_ref[...], 0.0).reshape(Hn2, Wo2c, C2)

        # ---- pool2 + flatten (HWC order): rows on the outer axis (free), columns via
        #      single-sublane slices of the tiny (Wo2c, C2) row-pooled tiles ----
        pieces = []
        for i in range(Ph2):
            r = y2[PS * i]
            for dr in range(1, PK):
                r = jnp.maximum(r, y2[PS * i + dr])              # (Wo2c, C2)
            for j in range(Pw2):
                c = r[PS * j:PS * j + 1, :]
                for dc in range(1, PK):
                    c = jnp.maximum(c, r[PS * j + dc:PS * j + dc + 1, :])  # (1, C2)
                pieces.append(c)
        o_ref[0] = jnp.concatenate(pieces, axis=-1)              # (1, Ph2*Pw2*C2)

    return kernel


# ----------------------------- stage 2: batched MLP -------------------------- #

def _mlp_kernel(feat_ref, pos_ref, w1a_ref, w1b_ref, b1_ref,
                w2_ref, b2_ref, w3_ref, b3_ref, o_ref):
    f32 = jnp.float32
    h1 = (jnp.dot(feat_ref[...], w1a_ref[...], preferred_element_type=f32)
          + jnp.dot(pos_ref[...], w1b_ref[...], preferred_element_type=f32)
          + b1_ref[...])
    h1 = jnp.maximum(h1, 0.0)
    h2 = jnp.maximum(jnp.dot(h1, w2_ref[...], preferred_element_type=f32)
                     + b2_ref[...], 0.0)
    o_ref[...] = jnp.dot(h2, w3_ref[...], preferred_element_type=f32) + b3_ref[...]


# ----------------------------------- wrapper --------------------------------- #

@jax.jit
def robonet_forward(inp_nchw, pos_grip, params):
    f32 = jnp.float32
    x = jnp.transpose(inp_nchw, (0, 2, 3, 1)).astype(f32)        # NCHW -> NHWC
    B, H, W, Cin = x.shape
    KH = KW = 4
    PK, PS = 3, 4                                                # pool kernel / stride
    C1 = params["w_conv1"].shape[-1]
    C2 = params["w_conv2"].shape[-1]
    classes = params["w_fc3"].shape[1]

    # static forward-pass shape arithmetic
    Ho1, Wo1 = H - KH + 1, W - KW + 1
    Ph1, Pw1 = (Ho1 - PK) // PS + 1, (Wo1 - PK) // PS + 1
    Ho2, Wo2 = Ph1 - KH + 1, Pw1 - KW + 1
    Ph2, Pw2 = (Ho2 - PK) // PS + 1, (Wo2 - PK) // PS + 1
    F = C2 * Ph2 * Pw2

    rup = lambda v, m: -(-v // m) * m
    Hn2 = PS * (Ph2 - 1) + PK                     # conv2 rows actually read by pool2
    Wn2 = PS * (Pw2 - 1) + PK                     # conv2 cols actually read by pool2
    Wo2c = rup(Wn2, 8)                            # sublane-aligned conv2 width
    Pw1p = rup(max(Pw1, Wo2c + KW - 1), 8)        # sublane-aligned pool1 width
    nph = PK * PK                                 # 9 pooling phases
    M1 = nph * Ph1 * Pw1p
    K1 = KH * KW * Cin

    # ---- conv1 im2col in the wrapper: lane-dense patches, pool1 phases on an
    #      outer axis (stride-4 gathers happen here under XLA, not in the kernel) ----
    phase_slabs = []
    for s in range(PK):
        for r in range(PK):
            taps = []
            for kh in range(KH):
                for kw in range(KW):
                    taps.append(x[:, s + kh: s + kh + PS * Ph1: PS,
                                     r + kw: r + kw + PS * Pw1: PS, :])
            p = jnp.concatenate(taps, axis=-1)                   # (B, Ph1, Pw1, K1)
            p = jnp.pad(p, ((0, 0), (0, 0), (0, Pw1p - Pw1), (0, 0)))
            phase_slabs.append(p)
    patches1 = jnp.stack(phase_slabs, axis=1).reshape(B, M1, K1)  # (B, M1, 48)

    # ---- one-time parameter massaging (outside the kernels) ----
    w1 = params["w_conv1"].reshape(K1, C1)                       # rows in (kh,kw,cin)
    b1 = params["b_conv1"].reshape(1, C1)
    # conv2 weights grouped per kw tap: rows ordered (kh, cin) -> K = KH*C1 = 128
    w2s = jnp.transpose(params["w_conv2"], (1, 0, 2, 3)).reshape(KW, KH * C1, C2)
    b2 = params["b_conv2"].reshape(1, C2)
    # fc1: conv-feature rows permuted CHW -> HWC; pos rows with the *35 folded in
    w1a = (params["w_fc1"][:F].reshape(C2, Ph2, Pw2, -1)
           .transpose(1, 2, 0, 3).reshape(F, -1))
    w1b = params["w_fc1"][F:] * 35.0
    bfc1 = params["b_fc1"].reshape(1, -1)
    wfc2, bfc2 = params["w_fc2"], params["b_fc2"].reshape(1, -1)
    wfc3, bfc3 = params["w_fc3"], params["b_fc3"].reshape(1, -1)
    pos = pos_grip.astype(f32)

    # ---- stage 1: per-image conv/pool features (grid over the batch, megacore) ----
    conv_kernel = _make_conv_feature_kernel(nph, Ph1, Pw1p, C1, KH, KW,
                                            Hn2, Wo2c, C2, Ph2, Pw2, PK, PS)
    const = lambda shape: pl.BlockSpec(shape, lambda b, _s=len(shape): (0,) * _s)
    feat = pl.pallas_call(
        conv_kernel,
        out_shape=jax.ShapeDtypeStruct((B, 1, F), f32),
        grid=(B,),
        in_specs=[
            pl.BlockSpec((1, M1, K1), lambda b: (b, 0, 0)),      # lane-dense patches
            const(w1.shape), const(b1.shape), const(w2s.shape), const(b2.shape),
        ],
        out_specs=pl.BlockSpec((1, 1, F), lambda b: (b, 0, 0)),  # lane-dense output
        compiler_params=pltpu.CompilerParams(
            dimension_semantics=("parallel",),
            vmem_limit_bytes=32 * 1024 * 1024),
    )(patches1, w1, b1, w2s, b2)
    feat = feat.reshape(B, F)

    # ---- stage 2: batched MLP (one call, fc1 weight streamed exactly once) ----
    out = pl.pallas_call(
        _mlp_kernel,
        out_shape=jax.ShapeDtypeStruct((B, classes), f32),
        compiler_params=pltpu.CompilerParams(vmem_limit_bytes=32 * 1024 * 1024),
    )(feat, pos, w1a, w1b, bfc1, wfc2, bfc2, wfc3, bfc3)
    return out


# ------------------------------ pure-JAX reference --------------------------- #

def robonet_reference(inp_nchw, pos_grip, params):
    x = jnp.transpose(inp_nchw, (0, 2, 3, 1)).astype(jnp.float32)

    def conv(x, w, b):
        y = lax.conv_general_dilated(x, w, (1, 1), "VALID",
                                     dimension_numbers=("NHWC", "HWIO", "NHWC"))
        return jnp.maximum(y + b, 0.0)

    def pool(x):
        return lax.reduce_window(x, -jnp.inf, lax.max,
                                 (1, 3, 3, 1), (1, 4, 4, 1), "VALID")

    x = pool(conv(x, params["w_conv1"], params["b_conv1"]))
    x = pool(conv(x, params["w_conv2"], params["b_conv2"]))
    x = jnp.transpose(x, (0, 3, 1, 2)).reshape(x.shape[0], -1)   # torch.flatten order
    x = jnp.concatenate([x, pos_grip.astype(jnp.float32) * 35.0], axis=1)
    x = jnp.maximum(x @ params["w_fc1"] + params["b_fc1"], 0.0)
    x = jnp.maximum(x @ params["w_fc2"] + params["b_fc2"], 0.0)
    return x @ params["w_fc3"] + params["b_fc3"]


# --------------------------------------- main -------------------------------- #

if __name__ == "__main__":
    B, Cin, H, W = 2, 3, 53, 53
    classes = 8

    # forward-pass spatial sizes: conv(4x4, valid) then pool(3x3, stride 4), twice
    h1 = H - 3
    p1 = (h1 - 3) // 4 + 1
    h2 = p1 - 3
    p2 = (h2 - 3) // 4 + 1
    F = 64 * p2 * p2                 # flattened conv features at this demo size
    # NOTE: the original module hardcodes fc1.in_features = 53824 + 4 (~477x477 input);
    # this demo uses a 53x53 input and sizes fc1 from the forward pass, keeping
    # identical forward semantics.

    key = jax.random.PRNGKey(0)
    keys = jax.random.split(key, 12)

    def init(k, shape, fan_in):
        return (jax.random.normal(k, shape, jnp.float32)
                / jnp.sqrt(jnp.float32(fan_in))).astype(jnp.float32)

    params = {
        "w_conv1": init(keys[0], (4, 4, 3, 32), 4 * 4 * 3),
        "b_conv1": init(keys[1], (32,), 4 * 4 * 3),
        "w_conv2": init(keys[2], (4, 4, 32, 64), 4 * 4 * 32),
        "b_conv2": init(keys[3], (64,), 4 * 4 * 32),
        "w_fc1":   init(keys[4], (F + 4, 64), F + 4),
        "b_fc1":   init(keys[5], (64,), F + 4),
        "w_fc2":   init(keys[6], (64, 32), 64),
        "b_fc2":   init(keys[7], (32,), 64),
        "w_fc3":   init(keys[8], (32, classes), 32),
        "b_fc3":   init(keys[9], (classes,), 32),
    }

    inp = jax.random.normal(keys[10], (B, Cin, H, W), jnp.float32)
    pos_grip = jax.random.randint(keys[11], (B, 4), 0, 3).astype(jnp.int32)

    out = robonet_forward(inp, pos_grip, params)
    out = jax.block_until_ready(out)

    ref = robonet_reference(inp, pos_grip, params)
    np.testing.assert_allclose(np.asarray(out), np.asarray(ref),
                               rtol=1e-3, atol=1e-3)

    print("KERNEL_OK")
</pallas_src>

<mosaic_0001>
module attributes {stable_mosaic.version = 11 : i64} {
  func.func @kernel(%arg0: i32, %arg1: memref<1x1728x48xf32, #tpu.memory_space<vmem>>, %arg2: memref<48x32xf32, #tpu.memory_space<vmem>>, %arg3: memref<1x32xf32, #tpu.memory_space<vmem>>, %arg4: memref<4x128x64xf32, #tpu.memory_space<vmem>>, %arg5: memref<1x64xf32, #tpu.memory_space<vmem>>, %arg6: memref<1x1x256xf32, #tpu.memory_space<vmem>>) attributes {dimension_semantics = [#tpu.dimension_semantics<parallel>], iteration_bounds = array<i64: 2>, scalar_prefetch = 0 : i64, scratch_operands = 0 : i64, tpu.core_type = #tpu.core_type<tc>, window_params = [{transform_indices = @transform_0, window_bounds = array<i64: 1, 1728, 48>}, {pipeline_mode = #tpu.pipeline_mode<synchronous>, transform_indices = @transform_1, window_bounds = array<i64: 48, 32>}, {pipeline_mode = #tpu.pipeline_mode<synchronous>, transform_indices = @transform_2, window_bounds = array<i64: 1, 32>}, {pipeline_mode = #tpu.pipeline_mode<synchronous>, transform_indices = @transform_3, window_bounds = array<i64: 4, 128, 64>}, {pipeline_mode = #tpu.pipeline_mode<synchronous>, transform_indices = @transform_4, window_bounds = array<i64: 1, 64>}, {transform_indices = @transform_5, window_bounds = array<i64: 1, 1, 256>}]} {
    %c0 = arith.constant 0 : index
    %c0_0 = arith.constant 0 : index
    %c0_1 = arith.constant 0 : index
    %0 = vector.load %arg1[%c0, %c0_0, %c0_1] : memref<1x1728x48xf32, #tpu.memory_space<vmem>>, vector<1x1728x48xf32>
    %1 = vector.shape_cast %0 : vector<1x1728x48xf32> to vector<1728x48xf32>
    %c0_2 = arith.constant 0 : index
    %c0_3 = arith.constant 0 : index
    %2 = vector.load %arg2[%c0_2, %c0_3] : memref<48x32xf32, #tpu.memory_space<vmem>>, vector<48x32xf32>
    %cst = arith.constant dense<0.000000e+00> : vector<1728x32xf32>
    %3 = tpu.matmul %1, %2, %cst {dimension_numbers = #tpu.dot_dimension_numbers<[1], [0], [0], [1], [0, 0, 1, 1], [], []>} : vector<1728x48xf32>, vector<48x32xf32>, vector<1728x32xf32> -> vector<1728x32xf32>
    %c0_4 = arith.constant 0 : index
    %c0_5 = arith.constant 0 : index
    %4 = vector.load %arg3[%c0_4, %c0_5] : memref<1x32xf32, #tpu.memory_space<vmem>>, vector<1x32xf32>
    %5 = vector.broadcast %4 : vector<1x32xf32> to vector<1728x32xf32>
    %6 = arith.addf %3, %5 : vector<1728x32xf32>
    %cst_6 = arith.constant 0.000000e+00 : f32
    %7 = vector.broadcast %cst_6 : f32 to vector<1728x32xf32>
    %8 = arith.maximumf %6, %7 : vector<1728x32xf32>
    %9 = vector.shape_cast %8 : vector<1728x32xf32> to vector<9x12x16x32xf32>
    %10 = vector.extract_strided_slice %9 {offsets = [0, 0, 0, 0], sizes = [1, 12, 16, 32], strides = [1, 1, 1, 1]} : vector<9x12x16x32xf32> to vector<1x12x16x32xf32>
    %11 = vector.shape_cast %10 : vector<1x12x16x32xf32> to vector<12x16x32xf32>
    %12 = vector.extract_strided_slice %9 {offsets = [1, 0, 0, 0], sizes = [1, 12, 16, 32], strides = [1, 1, 1, 1]} : vector<9x12x16x32xf32> to vector<1x12x16x32xf32>
    %13 = vector.shape_cast %12 : vector<1x12x16x32xf32> to vector<12x16x32xf32>
    %14 = arith.maximumf %11, %13 : vector<12x16x32xf32>
    %15 = vector.extract_strided_slice %9 {offsets = [2, 0, 0, 0], sizes = [1, 12, 16, 32], strides = [1, 1, 1, 1]} : vector<9x12x16x32xf32> to vector<1x12x16x32xf32>
    %16 = vector.shape_cast %15 : vector<1x12x16x32xf32> to vector<12x16x32xf32>
    %17 = arith.maximumf %14, %16 : vector<12x16x32xf32>
    %18 = vector.extract_strided_slice %9 {offsets = [3, 0, 0, 0], sizes = [1, 12, 16, 32], strides = [1, 1, 1, 1]} : vector<9x12x16x32xf32> to vector<1x12x16x32xf32>
    %19 = vector.shape_cast %18 : vector<1x12x16x32xf32> to vector<12x16x32xf32>
    %20 = arith.maximumf %17, %19 : vector<12x16x32xf32>
    %21 = vector.extract_strided_slice %9 {offsets = [4, 0, 0, 0], sizes = [1, 12, 16, 32], strides = [1, 1, 1, 1]} : vector<9x12x16x32xf32> to vector<1x12x16x32xf32>
    %22 = vector.shape_cast %21 : vector<1x12x16x32xf32> to vector<12x16x32xf32>
    %23 = arith.maximumf %20, %22 : vector<12x16x32xf32>
    %24 = vector.extract_strided_slice %9 {offsets = [5, 0, 0, 0], sizes = [1, 12, 16, 32], strides = [1, 1, 1, 1]} : vector<9x12x16x32xf32> to vector<1x12x16x32xf32>
    %25 = vector.shape_cast %24 : vector<1x12x16x32xf32> to vector<12x16x32xf32>
    %26 = arith.maximumf %23, %25 : vector<12x16x32xf32>
    %27 = vector.extract_strided_slice %9 {offsets = [6, 0, 0, 0], sizes = [1, 12, 16, 32], strides = [1, 1, 1, 1]} : vector<9x12x16x32xf32> to vector<1x12x16x32xf32>
    %28 = vector.shape_cast %27 : vector<1x12x16x32xf32> to vector<12x16x32xf32>
    %29 = arith.maximumf %26, %28 : vector<12x16x32xf32>
    %30 = vector.extract_strided_slice %9 {offsets = [7, 0, 0, 0], sizes = [1, 12, 16, 32], strides = [1, 1, 1, 1]} : vector<9x12x16x32xf32> to vector<1x12x16x32xf32>
    %31 = vector.shape_cast %30 : vector<1x12x16x32xf32> to vector<12x16x32xf32>
    %32 = arith.maximumf %29, %31 : vector<12x16x32xf32>
    %33 = vector.extract_strided_slice %9 {offsets = [8, 0, 0, 0], sizes = [1, 12, 16, 32], strides = [1, 1, 1, 1]} : vector<9x12x16x32xf32> to vector<1x12x16x32xf32>
    %34 = vector.shape_cast %33 : vector<1x12x16x32xf32> to vector<12x16x32xf32>
    %35 = arith.maximumf %32, %34 : vector<12x16x32xf32>
    %36 = vector.extract_strided_slice %35 {offsets = [0, 0, 0], sizes = [7, 8, 32], strides = [1, 1, 1]} : vector<12x16x32xf32> to vector<7x8x32xf32>
    %37 = vector.extract_strided_slice %35 {offsets = [1, 0, 0], sizes = [7, 8, 32], strides = [1, 1, 1]} : vector<12x16x32xf32> to vector<7x8x32xf32>
    %38 = vector.extract_strided_slice %35 {offsets = [2, 0, 0], sizes = [7, 8, 32], strides = [1, 1, 1]} : vector<12x16x32xf32> to vector<7x8x32xf32>
    %39 = vector.extract_strided_slice %35 {offsets = [3, 0, 0], sizes = [7, 8, 32], strides = [1, 1, 1]} : vector<12x16x32xf32> to vector<7x8x32xf32>
    %40 = tpu.concatenate %36, %37, %38, %39 in 2 : vector<7x8x32xf32>, vector<7x8x32xf32>, vector<7x8x32xf32>, vector<7x8x32xf32> -> vector<7x8x128xf32>
    %41 = vector.shape_cast %40 : vector<7x8x128xf32> to vector<56x128xf32>
    %c0_7 = arith.constant 0 : index
    %c0_8 = arith.constant 0 : index
    %c0_9 = arith.constant 0 : index
    %42 = vector.load %arg4[%c0_7, %c0_8, %c0_9] : memref<4x128x64xf32, #tpu.memory_space<vmem>>, vector<1x128x64xf32>
    %43 = vector.shape_cast %42 : vector<1x128x64xf32> to vector<128x64xf32>
    %cst_10 = arith.constant dense<0.000000e+00> : vector<56x64xf32>
    %44 = tpu.matmul %41, %43, %cst_10 {dimension_numbers = #tpu.dot_dimension_numbers<[1], [0], [0], [1], [0, 0, 1, 1], [], []>} : vector<56x128xf32>, vector<128x64xf32>, vector<56x64xf32> -> vector<56x64xf32>
    %45 = vector.extract_strided_slice %35 {offsets = [0, 1, 0], sizes = [7, 8, 32], strides = [1, 1, 1]} : vector<12x16x32xf32> to vector<7x8x32xf32>
    %46 = vector.extract_strided_slice %35 {offsets = [1, 1, 0], sizes = [7, 8, 32], strides = [1, 1, 1]} : vector<12x16x32xf32> to vector<7x8x32xf32>
    %47 = vector.extract_strided_slice %35 {offsets = [2, 1, 0], sizes = [7, 8, 32], strides = [1, 1, 1]} : vector<12x16x32xf32> to vector<7x8x32xf32>
    %48 = vector.extract_strided_slice %35 {offsets = [3, 1, 0], sizes = [7, 8, 32], strides = [1, 1, 1]} : vector<12x16x32xf32> to vector<7x8x32xf32>
    %49 = tpu.concatenate %45, %46, %47, %48 in 2 : vector<7x8x32xf32>, vector<7x8x32xf32>, vector<7x8x32xf32>, vector<7x8x32xf32> -> vector<7x8x128xf32>
    %50 = vector.shape_cast %49 : vector<7x8x128xf32> to vector<56x128xf32>
    %c1 = arith.constant 1 : index
    %c0_11 = arith.constant 0 : index
    %c0_12 = arith.constant 0 : index
    %51 = vector.load %arg4[%c1, %c0_11, %c0_12] : memref<4x128x64xf32, #tpu.memory_space<vmem>>, vector<1x128x64xf32>
    %52 = vector.shape_cast %51 : vector<1x128x64xf32> to vector<128x64xf32>
    %cst_13 = arith.constant dense<0.000000e+00> : vector<56x64xf32>
    %53 = tpu.matmul %50, %52, %cst_13 {dimension_numbers = #tpu.dot_dimension_numbers<[1], [0], [0], [1], [0, 0, 1, 1], [], []>} : vector<56x128xf32>, vector<128x64xf32>, vector<56x64xf32> -> vector<56x64xf32>
    %54 = arith.addf %44, %53 : vector<56x64xf32>
    %55 = vector.extract_strided_slice %35 {offsets = [0, 2, 0], sizes = [7, 8, 32], strides = [1, 1, 1]} : vector<12x16x32xf32> to vector<7x8x32xf32>
    %56 = vector.extract_strided_slice %35 {offsets = [1, 2, 0], sizes = [7, 8, 32], strides = [1, 1, 1]} : vector<12x16x32xf32> to vector<7x8x32xf32>
    %57 = vector.extract_strided_slice %35 {offsets = [2, 2, 0], sizes = [7, 8, 32], strides = [1, 1, 1]} : vector<12x16x32xf32> to vector<7x8x32xf32>
    %58 = vector.extract_strided_slice %35 {offsets = [3, 2, 0], sizes = [7, 8, 32], strides = [1, 1, 1]} : vector<12x16x32xf32> to vector<7x8x32xf32>
    %59 = tpu.concatenate %55, %56, %57, %58 in 2 : vector<7x8x32xf32>, vector<7x8x32xf32>, vector<7x8x32xf32>, vector<7x8x32xf32> -> vector<7x8x128xf32>
    %60 = vector.shape_cast %59 : vector<7x8x128xf32> to vector<56x128xf32>
    %c2 = arith.constant 2 : index
    %c0_14 = arith.constant 0 : index
    %c0_15 = arith.constant 0 : index
    %61 = vector.load %arg4[%c2, %c0_14, %c0_15] : memref<4x128x64xf32, #tpu.memory_space<vmem>>, vector<1x128x64xf32>
    %62 = vector.shape_cast %61 : vector<1x128x64xf32> to vector<128x64xf32>
    %cst_16 = arith.constant dense<0.000000e+00> : vector<56x64xf32>
    %63 = tpu.matmul %60, %62, %cst_16 {dimension_numbers = #tpu.dot_dimension_numbers<[1], [0], [0], [1], [0, 0, 1, 1], [], []>} : vector<56x128xf32>, vector<128x64xf32>, vector<56x64xf32> -> vector<56x64xf32>
    %64 = arith.addf %54, %63 : vector<56x64xf32>
    %65 = vector.extract_strided_slice %35 {offsets = [0, 3, 0], sizes = [7, 8, 32], strides = [1, 1, 1]} : vector<12x16x32xf32> to vector<7x8x32xf32>
    %66 = vector.extract_strided_slice %35 {offsets = [1, 3, 0], sizes = [7, 8, 32], strides = [1, 1, 1]} : vector<12x16x32xf32> to vector<7x8x32xf32>
    %67 = vector.extract_strided_slice %35 {offsets = [2, 3, 0], sizes = [7, 8, 32], strides = [1, 1, 1]} : vector<12x16x32xf32> to vector<7x8x32xf32>
    %68 = vector.extract_strided_slice %35 {offsets = [3, 3, 0], sizes = [7, 8, 32], strides = [1, 1, 1]} : vector<12x16x32xf32> to vector<7x8x32xf32>
    %69 = tpu.concatenate %65, %66, %67, %68 in 2 : vector<7x8x32xf32>, vector<7x8x32xf32>, vector<7x8x32xf32>, vector<7x8x32xf32> -> vector<7x8x128xf32>
    %70 = vector.shape_cast %69 : vector<7x8x128xf32> to vector<56x128xf32>
    %c3 = arith.constant 3 : index
    %c0_17 = arith.constant 0 : index
    %c0_18 = arith.constant 0 : index
    %71 = vector.load %arg4[%c3, %c0_17, %c0_18] : memref<4x128x64xf32, #tpu.memory_space<vmem>>, vector<1x128x64xf32>
    %72 = vector.shape_cast %71 : vector<1x128x64xf32> to vector<128x64xf32>
    %cst_19 = arith.constant dense<0.000000e+00> : vector<56x64xf32>
    %73 = tpu.matmul %70, %72, %cst_19 {dimension_numbers = #tpu.dot_dimension_numbers<[1], [0], [0], [1], [0, 0, 1, 1], [], []>} : vector<56x128xf32>, vector<128x64xf32>, vector<56x64xf32> -> vector<56x64xf32>
    %74 = arith.addf %64, %73 : vector<56x64xf32>
    %c0_20 = arith.constant 0 : index
    %c0_21 = arith.constant 0 : index
    %75 = vector.load %arg5[%c0_20, %c0_21] : memref<1x64xf32, #tpu.memory_space<vmem>>, vector<1x64xf32>
    %76 = vector.broadcast %75 : vector<1x64xf32> to vector<56x64xf32>
    %77 = arith.addf %74, %76 : vector<56x64xf32>
    %cst_22 = arith.constant 0.000000e+00 : f32
    %78 = vector.broadcast %cst_22 : f32 to vector<56x64xf32>
    %79 = arith.maximumf %77, %78 : vector<56x64xf32>
    %80 = vector.shape_cast %79 : vector<56x64xf32> to vector<7x8x64xf32>
    %81 = vector.extract_strided_slice %80 {offsets = [0, 0, 0], sizes = [1, 8, 64], strides = [1, 1, 1]} : vector<7x8x64xf32> to vector<1x8x64xf32>
    %82 = vector.shape_cast %81 : vector<1x8x64xf32> to vector<8x64xf32>
    %83 = vector.extract_strided_slice %80 {offsets = [1, 0, 0], sizes = [1, 8, 64], strides = [1, 1, 1]} : vector<7x8x64xf32> to vector<1x8x64xf32>
    %84 = vector.shape_cast %83 : vector<1x8x64xf32> to vector<8x64xf32>
    %85 = arith.maximumf %82, %84 : vector<8x64xf32>
    %86 = vector.extract_strided_slice %80 {offsets = [2, 0, 0], sizes = [1, 8, 64], strides = [1, 1, 1]} : vector<7x8x64xf32> to vector<1x8x64xf32>
    %87 = vector.shape_cast %86 : vector<1x8x64xf32> to vector<8x64xf32>
    %88 = arith.maximumf %85, %87 : vector<8x64xf32>
    %89 = vector.extract_strided_slice %88 {offsets = [0, 0], sizes = [1, 64], strides = [1, 1]} : vector<8x64xf32> to vector<1x64xf32>
    %90 = vector.extract_strided_slice %88 {offsets = [1, 0], sizes = [1, 64], strides = [1, 1]} : vector<8x64xf32> to vector<1x64xf32>
    %91 = arith.maximumf %89, %90 : vector<1x64xf32>
    %92 = vector.extract_strided_slice %88 {offsets = [2, 0], sizes = [1, 64], strides = [1, 1]} : vector<8x64xf32> to vector<1x64xf32>
    %93 = arith.maximumf %91, %92 : vector<1x64xf32>
    %94 = vector.extract_strided_slice %88 {offsets = [4, 0], sizes = [1, 64], strides = [1, 1]} : vector<8x64xf32> to vector<1x64xf32>
    %95 = vector.extract_strided_slice %88 {offsets = [5, 0], sizes = [1, 64], strides = [1, 1]} : vector<8x64xf32> to vector<1x64xf32>
    %96 = arith.maximumf %94, %95 : vector<1x64xf32>
    %97 = vector.extract_strided_slice %88 {offsets = [6, 0], sizes = [1, 64], strides = [1, 1]} : vector<8x64xf32> to vector<1x64xf32>
    %98 = arith.maximumf %96, %97 : vector<1x64xf32>
    %99 = vector.extract_strided_slice %80 {offsets = [4, 0, 0], sizes = [1, 8, 64], strides = [1, 1, 1]} : vector<7x8x64xf32> to vector<1x8x64xf32>
    %100 = vector.shape_cast %99 : vector<1x8x64xf32> to vector<8x64xf32>
    %101 = vector.extract_strided_slice %80 {offsets = [5, 0, 0], sizes = [1, 8, 64], strides = [1, 1, 1]} : vector<7x8x64xf32> to vector<1x8x64xf32>
    %102 = vector.shape_cast %101 : vector<1x8x64xf32> to vector<8x64xf32>
    %103 = arith.maximumf %100, %102 : vector<8x64xf32>
    %104 = vector.extract_strided_slice %80 {offsets = [6, 0, 0], sizes = [1, 8, 64], strides = [1, 1, 1]} : vector<7x8x64xf32> to vector<1x8x64xf32>
    %105 = vector.shape_cast %104 : vector<1x8x64xf32> to vector<8x64xf32>
    %106 = arith.maximumf %103, %105 : vector<8x64xf32>
    %107 = vector.extract_strided_slice %106 {offsets = [0, 0], sizes = [1, 64], strides = [1, 1]} : vector<8x64xf32> to vector<1x64xf32>
    %108 = vector.extract_strided_slice %106 {offsets = [1, 0], sizes = [1, 64], strides = [1, 1]} : vector<8x64xf32> to vector<1x64xf32>
    %109 = arith.maximumf %107, %108 : vector<1x64xf32>
    %110 = vector.extract_strided_slice %106 {offsets = [2, 0], sizes = [1, 64], strides = [1, 1]} : vector<8x64xf32> to vector<1x64xf32>
    %111 = arith.maximumf %109, %110 : vector<1x64xf32>
    %112 = vector.extract_strided_slice %106 {offsets = [4, 0], sizes = [1, 64], strides = [1, 1]} : vector<8x64xf32> to vector<1x64xf32>
    %113 = vector.extract_strided_slice %106 {offsets = [5, 0], sizes = [1, 64], strides = [1, 1]} : vector<8x64xf32> to vector<1x64xf32>
    %114 = arith.maximumf %112, %113 : vector<1x64xf32>
    %115 = vector.extract_strided_slice %106 {offsets = [6, 0], sizes = [1, 64], strides = [1, 1]} : vector<8x64xf32> to vector<1x64xf32>
    %116 = arith.maximumf %114, %115 : vector<1x64xf32>
    %117 = tpu.concatenate %93, %98, %111, %116 in 1 : vector<1x64xf32>, vector<1x64xf32>, vector<1x64xf32>, vector<1x64xf32> -> vector<1x256xf32>
    %c0_23 = arith.constant 0 : index
    %c0_24 = arith.constant 0 : index
    %c0_25 = arith.constant 0 : index
    %118 = vector.load %arg6[%c0_23, %c0_24, %c0_25] : memref<1x1x256xf32, #tpu.memory_space<vmem>>, vector<1x1x256xf32>
    %119 = vector.shape_cast %118 : vector<1x1x256xf32> to vector<1x256xf32>
    %120 = vector.shape_cast %117 : vector<1x256xf32> to vector<1x1x256xf32>
    tpu.vector_store %arg6[%c0_23, %c0_24, %c0_25], %120 {strides = array<i32>} : memref<1x1x256xf32, #tpu.memory_space<vmem>>, vector<1x1x256xf32>,
    return
  }
  func.func @transform_0(%arg0: i32) -> (i32, i32, i32) {
    %c0_i32 = arith.constant 0 : i32
    %c0_i32_0 = arith.constant 0 : i32
    %c0_i32_1 = arith.constant 0 : i32
    return %arg0, %c0_i32, %c0_i32_0 : i32, i32, i32
  }
  func.func @transform_1(%arg0: i32) -> (i32, i32) {
    %c0_i32 = arith.constant 0 : i32
    %c0_i32_0 = arith.constant 0 : i32
    %c0_i32_1 = arith.constant 0 : i32
    return %c0_i32, %c0_i32_0 : i32, i32
  }
  func.func @transform_2(%arg0: i32) -> (i32, i32) {
    %c0_i32 = arith.constant 0 : i32
    %c0_i32_0 = arith.constant 0 : i32
    %c0_i32_1 = arith.constant 0 : i32
    return %c0_i32, %c0_i32_0 : i32, i32
  }
  func.func @transform_3(%arg0: i32) -> (i32, i32, i32) {
    %c0_i32 = arith.constant 0 : i32
    %c0_i32_0 = arith.constant 0 : i32
    %c0_i32_1 = arith.constant 0 : i32
    %c0_i32_2 = arith.constant 0 : i32
    return %c0_i32, %c0_i32_0, %c0_i32_1 : i32, i32, i32
  }
  func.func @transform_4(%arg0: i32) -> (i32, i32) {
    %c0_i32 = arith.constant 0 : i32
    %c0_i32_0 = arith.constant 0 : i32
    %c0_i32_1 = arith.constant 0 : i32
    return %c0_i32, %c0_i32_0 : i32, i32
  }
  func.func @transform_5(%arg0: i32) -> (i32, i32, i32) {
    %c0_i32 = arith.constant 0 : i32
    %c0_i32_0 = arith.constant 0 : i32
    %c0_i32_1 = arith.constant 0 : i32
    return %arg0, %c0_i32, %c0_i32_0 : i32, i32, i32
  }
}

module attributes {stable_mosaic.version = 11 : i64} {
  func.func @_mlp_kernel(%arg0: memref<2x256xf32, #tpu.memory_space<vmem>>, %arg1: memref<2x4xf32, #tpu.memory_space<vmem>>, %arg2: memref<256x64xf32, #tpu.memory_space<vmem>>, %arg3: memref<4x64xf32, #tpu.memory_space<vmem>>, %arg4: memref<1x64xf32, #tpu.memory_space<vmem>>, %arg5: memref<64x32xf32, #tpu.memory_space<vmem>>, %arg6: memref<1x32xf32, #tpu.memory_space<vmem>>, %arg7: memref<32x8xf32, #tpu.memory_space<vmem>>, %arg8: memref<1x8xf32, #tpu.memory_space<vmem>>, %arg9: memref<2x8xf32, #tpu.memory_space<vmem>>) attributes {dimension_semantics = [], scalar_prefetch = 0 : i64, scratch_operands = 0 : i64, tpu.core_type = #tpu.core_type<tc>} {
    %c0 = arith.constant 0 : index
    %c0_0 = arith.constant 0 : index
    %0 = vector.load %arg0[%c0, %c0_0] : memref<2x256xf32, #tpu.memory_space<vmem>>, vector<2x256xf32>
    %c0_1 = arith.constant 0 : index
    %c0_2 = arith.constant 0 : index
    %1 = vector.load %arg2[%c0_1, %c0_2] : memref<256x64xf32, #tpu.memory_space<vmem>>, vector<256x64xf32>
    %cst = arith.constant dense<0.000000e+00> : vector<2x64xf32>
    %2 = tpu.matmul %0, %1, %cst {dimension_numbers = #tpu.dot_dimension_numbers<[1], [0], [0], [1], [0, 0, 1, 1], [], []>} : vector<2x256xf32>, vector<256x64xf32>, vector<2x64xf32> -> vector<2x64xf32>
    %c0_3 = arith.constant 0 : index
    %c0_4 = arith.constant 0 : index
    %3 = vector.load %arg1[%c0_3, %c0_4] : memref<2x4xf32, #tpu.memory_space<vmem>>, vector<2x4xf32>
    %c0_5 = arith.constant 0 : index
    %c0_6 = arith.constant 0 : index
    %4 = vector.load %arg3[%c0_5, %c0_6] : memref<4x64xf32, #tpu.memory_space<vmem>>, vector<4x64xf32>
    %cst_7 = arith.constant dense<0.000000e+00> : vector<2x64xf32>
    %5 = tpu.matmul %3, %4, %cst_7 {dimension_numbers = #tpu.dot_dimension_numbers<[1], [0], [0], [1], [0, 0, 1, 1], [], []>} : vector<2x4xf32>, vector<4x64xf32>, vector<2x64xf32> -> vector<2x64xf32>
    %6 = arith.addf %2, %5 : vector<2x64xf32>
    %c0_8 = arith.constant 0 : index
    %c0_9 = arith.constant 0 : index
    %7 = vector.load %arg4[%c0_8, %c0_9] : memref<1x64xf32, #tpu.memory_space<vmem>>, vector<1x64xf32>
    %8 = vector.broadcast %7 : vector<1x64xf32> to vector<2x64xf32>
    %9 = arith.addf %6, %8 : vector<2x64xf32>
    %cst_10 = arith.constant 0.000000e+00 : f32
    %10 = vector.broadcast %cst_10 : f32 to vector<2x64xf32>
    %11 = arith.maximumf %9, %10 : vector<2x64xf32>
    %c0_11 = arith.constant 0 : index
    %c0_12 = arith.constant 0 : index
    %12 = vector.load %arg5[%c0_11, %c0_12] : memref<64x32xf32, #tpu.memory_space<vmem>>, vector<64x32xf32>
    %cst_13 = arith.constant dense<0.000000e+00> : vector<2x32xf32>
    %13 = tpu.matmul %11, %12, %cst_13 {dimension_numbers = #tpu.dot_dimension_numbers<[1], [0], [0], [1], [0, 0, 1, 1], [], []>} : vector<2x64xf32>, vector<64x32xf32>, vector<2x32xf32> -> vector<2x32xf32>
    %c0_14 = arith.constant 0 : index
    %c0_15 = arith.constant 0 : index
    %14 = vector.load %arg6[%c0_14, %c0_15] : memref<1x32xf32, #tpu.memory_space<vmem>>, vector<1x32xf32>
    %15 = vector.broadcast %14 : vector<1x32xf32> to vector<2x32xf32>
    %16 = arith.addf %13, %15 : vector<2x32xf32>
    %cst_16 = arith.constant 0.000000e+00 : f32
    %17 = vector.broadcast %cst_16 : f32 to vector<2x32xf32>
    %18 = arith.maximumf %16, %17 : vector<2x32xf32>
    %c0_17 = arith.constant 0 : index
    %c0_18 = arith.constant 0 : index
    %19 = vector.load %arg7[%c0_17, %c0_18] : memref<32x8xf32, #tpu.memory_space<vmem>>, vector<32x8xf32>
    %cst_19 = arith.constant dense<0.000000e+00> : vector<2x8xf32>
    %20 = tpu.matmul %18, %19, %cst_19 {dimension_numbers = #tpu.dot_dimension_numbers<[1], [0], [0], [1], [0, 0, 1, 1], [], []>} : vector<2x32xf32>, vector<32x8xf32>, vector<2x8xf32> -> vector<2x8xf32>
    %c0_20 = arith.constant 0 : index
    %c0_21 = arith.constant 0 : index
    %21 = vector.load %arg8[%c0_20, %c0_21] : memref<1x8xf32, #tpu.memory_space<vmem>>, vector<1x8xf32>
    %22 = vector.broadcast %21 : vector<1x8xf32> to vector<2x8xf32>
    %23 = arith.addf %20, %22 : vector<2x8xf32>
    %c0_22 = arith.constant 0 : index
    %c0_23 = arith.constant 0 : index
    %24 = vector.load %arg9[%c0_22, %c0_23] : memref<2x8xf32, #tpu.memory_space<vmem>>, vector<2x8xf32>
    tpu.vector_store %arg9[%c0_22, %c0_23], %23 {strides = array<i32>} : memref<2x8xf32, #tpu.memory_space<vmem>>, vector<2x8xf32>,
    return
  }
}

</mosaic_0001>

<llo_original>
// kernel: robonet_forward.2
$region0: #{robonet_forward.2}
  #allocation0 [shape = 'u32[]', space=smem, size = 0x4, offset = 0x4, fixed_abs, tag = 'smem constant byte address 0x4 - core index']
  #allocation1 [shape = 'u32[144,128]{1,0:T(1,128)}', space=vmem, size = 0x12000, scoped, tag = 'internal scratch']
  %s0 = inlined_call_operand.vmem [shape: f32[2,1728,48], index: 0, kind: input, shape index: {}]
  %s1 = inlined_call_operand.vmem [shape: f32[48,32], index: 1, kind: input, shape index: {}]
  %s2 = inlined_call_operand.vmem [shape: f32[1,32], index: 2, kind: input, shape index: {}]
  %s3 = inlined_call_operand.vmem [shape: f32[4,128,64], index: 3, kind: input, shape index: {}]
  %s4 = inlined_call_operand.vmem [shape: f32[1,64], index: 4, kind: input, shape index: {}]
  %s5 = inlined_call_operand.vmem [shape: f32[2,1,256], index: 5, kind: output, shape index: {}]
  %s6 = sld [smem:[#allocation0]]
  $region53: #{robonet_forward.2} parent=0
    _
  %s8 = ssub.s32 1, %s6
  %s9 = scalar_select 0, %s8, %s6
  loop: start=0, step=1, limit=4
  $region2: #{robonet_forward.2} parent=0 // loop_pre_header
    _
  $region3: #{robonet_forward.2} parent=0 // loop_header
    %s11 = sphi 0, %s15
    %p12 = scmp.ge.s32.totalorder %s11, 4
    %s21 = sphi 0, %s23
    %s24 = sphi 0, %s21
    %s25 = sphi 0, %s24
    %s41 = sphi 0, %s25
    %s45 = sphi 0, %s45
    %s47 = sphi 0, %s45
    %s48 = sphi 0, %s47
    %s62 = sphi 0, %s48
    %s66 = sphi 0, %s66
    %s68 = sphi 0, %s66
    %s69 = sphi 0, %s68
    %s83 = sphi 0, %s69
    %s87 = sphi 0, %s87
    %s89 = sphi 0, %s87
    %s90 = sphi 0, %s89
    %s104 = sphi 0, %s90
    %s108 = sphi 0, %s108
    %s110 = sphi 0, %s108
    %s111 = sphi 0, %s110
    %s125 = sphi 0, %s111
    %s131 = sphi 0, %s133
    %s134 = sphi 0, %s131
    %s135 = sphi 0, %s134
    %s151 = sphi 0, %s135
  $region4: #{robonet_forward.2} parent=0 // loop_header_branch
    %14 = sbr.rel (%p12) target = $region8
  $region5: #{robonet_forward.2} parent=0 // loop_body
    %s16 = ssub.s32 %s11, 1
    %s17 = ssub.s32 %s11, 2
    %s18 = sadd.s32 %s11, 1
    %s19 = ssub.s32 %s11, %s18
    %p20 = scmp.eq.s32.totalorder %s19, 0
    %s22 = sadd.s32 %s21, 1
    %s23 = scalar_select %p20, %s21, %s22
    %p26 = pneg %p20
    %p27 = scmp.eq.s32.totalorder %s11, 1
    %p28 = por %p26, %p27
    %p29 = scmp.ne.s32.totalorder %s21, %s24
    %p30 = scmp.eq.s32.totalorder %s11, 0
    %p31 = por %p29, %p30
    %p32 = scmp.ne.s32.totalorder %s21, %s24
    %p33 = scmp.eq.s32.totalorder %s16, 1
    %p34 = por %p32, %p33
    %p35 = scmp.ne.s32.totalorder %s24, %s25
    %p36 = scmp.eq.s32.totalorder %s16, 0
    %p37 = por %p35, %p36
    %p38 = scmp.ne.s32.totalorder %s24, %s25
    %p39 = scmp.eq.s32.totalorder %s17, 1
    %p40 = por %p38, %p39
    %p42 = scmp.ne.s32.totalorder %s25, %s41
    %p43 = scmp.eq.s32.totalorder %s17, 0
    %p44 = por %p42, %p43
    %s46 = sadd.s32 %s45, 1
    %p49 = scmp.eq.s32.totalorder %s11, 1
    %p50 = scmp.ne.s32.totalorder %s45, %s47
    %p51 = scmp.eq.s32.totalorder %s11, 0
    %p52 = por %p50, %p51
    %p53 = scmp.ne.s32.totalorder %s45, %s47
    %p54 = scmp.eq.s32.totalorder %s16, 1
    %p55 = por %p53, %p54
    %p56 = scmp.ne.s32.totalorder %s47, %s48
    %p57 = scmp.eq.s32.totalorder %s16, 0
    %p58 = por %p56, %p57
    %p59 = scmp.ne.s32.totalorder %s47, %s48
    %p60 = scmp.eq.s32.totalorder %s17, 1
    %p61 = por %p59, %p60
    %p63 = scmp.ne.s32.totalorder %s48, %s62
    %p64 = scmp.eq.s32.totalorder %s17, 0
    %p65 = por %p63, %p64
    %s67 = sadd.s32 %s66, 1
    %p70 = scmp.eq.s32.totalorder %s11, 1
    %p71 = scmp.ne.s32.totalorder %s66, %s68
    %p72 = scmp.eq.s32.totalorder %s11, 0
    %p73 = por %p71, %p72
    %p74 = scmp.ne.s32.totalorder %s66, %s68
    %p75 = scmp.eq.s32.totalorder %s16, 1
    %p76 = por %p74, %p75
    %p77 = scmp.ne.s32.totalorder %s68, %s69
    %p78 = scmp.eq.s32.totalorder %s16, 0
    %p79 = por %p77, %p78
    %p80 = scmp.ne.s32.totalorder %s68, %s69
    %p81 = scmp.eq.s32.totalorder %s17, 1
    %p82 = por %p80, %p81
    %p84 = scmp.ne.s32.totalorder %s69, %s83
    %p85 = scmp.eq.s32.totalorder %s17, 0
    %p86 = por %p84, %p85
    %s88 = sadd.s32 %s87, 1
    %p91 = scmp.eq.s32.totalorder %s11, 1
    %p92 = scmp.ne.s32.totalorder %s87, %s89
    %p93 = scmp.eq.s32.totalorder %s11, 0
    %p94 = por %p92, %p93
    %p95 = scmp.ne.s32.totalorder %s87, %s89
    %p96 = scmp.eq.s32.totalorder %s16, 1
    %p97 = por %p95, %p96
    %p98 = scmp.ne.s32.totalorder %s89, %s90
    %p99 = scmp.eq.s32.totalorder %s16, 0
    %p100 = por %p98, %p99
    %p101 = scmp.ne.s32.totalorder %s89, %s90
    %p102 = scmp.eq.s32.totalorder %s17, 1
    %p103 = por %p101, %p102
    %p105 = scmp.ne.s32.totalorder %s90, %s104
    %p106 = scmp.eq.s32.totalorder %s17, 0
    %p107 = por %p105, %p106
    %s109 = sadd.s32 %s108, 1
    %p112 = scmp.eq.s32.totalorder %s11, 1
    %p113 = scmp.ne.s32.totalorder %s108, %s110
    %p114 = scmp.eq.s32.totalorder %s11, 0
    %p115 = por %p113, %p114
    %p116 = scmp.ne.s32.totalorder %s108, %s110
    %p117 = scmp.eq.s32.totalorder %s16, 1
    %p118 = por %p116, %p117
    %p119 = scmp.ne.s32.totalorder %s110, %s111
    %p120 = scmp.eq.s32.totalorder %s16, 0
    %p121 = por %p119, %p120
    %p122 = scmp.ne.s32.totalorder %s110, %s111
    %p123 = scmp.eq.s32.totalorder %s17, 1
    %p124 = por %p122, %p123
    %p126 = scmp.ne.s32.totalorder %s111, %s125
    %p127 = scmp.eq.s32.totalorder %s17, 0
    %p128 = por %p126, %p127
    %s129 = ssub.s32 %s11, %s18
    %p130 = scmp.eq.s32.totalorder %s129, 0
    %s132 = sadd.s32 %s131, 1
    %s133 = scalar_select %p130, %s131, %s132
    %p136 = pneg %p130
    %p137 = scmp.eq.s32.totalorder %s11, 1
    %p138 = por %p136, %p137
    %p139 = scmp.ne.s32.totalorder %s131, %s134
    %p140 = scmp.eq.s32.totalorder %s11, 0
    %p141 = por %p139, %p140
    %p142 = scmp.ne.s32.totalorder %s131, %s134
    %p143 = scmp.eq.s32.totalorder %s16, 1
    %p144 = por %p142, %p143
    %p145 = scmp.ne.s32.totalorder %s134, %s135
    %p146 = scmp.eq.s32.totalorder %s16, 0
    %p147 = por %p145, %p146
    %p148 = scmp.ne.s32.totalorder %s134, %s135
    %p149 = scmp.eq.s32.totalorder %s17, 1
    %p150 = por %p148, %p149
    %p152 = scmp.ne.s32.totalorder %s135, %s151
    %p153 = scmp.eq.s32.totalorder %s17, 0
    %p154 = por %p152, %p153
    %p155 = scmp.le.s32.totalorder 1, %s11
    %p156 = scmp.lt.s32.totalorder %s11, 3
    %p157 = pnand %p155, %p156
    %p158 = pneg %p157
    // Predicated region
    $region9: #{robonet_forward.2} parent=5 // pred_check
      _
    $region10: #{robonet_forward.2} parent=5 // pred_check_branch
      %160 = sbr.rel (%p157) target = $region12
    $region11: #{robonet_forward.2} parent=5 // pred_region
      %s161 = ssub.s32 %s11, 1
      // Predicated region
      $region13: #{robonet_forward.2} parent=11 // pred_check
        %p162 = pneg %p58
      $region14: #{robonet_forward.2} parent=11 // pred_check_branch
        %164 = sbr.rel (%p162) target = $region16
      $region15: #{robonet_forward.2} parent=11 // pred_region
        _
      $region16: #{robonet_forward.2} parent=11 // pred_fallthru
        _
      // Predicated region
      $region17: #{robonet_forward.2} parent=11 // pred_check
        %p165 = pneg %p79
      $region18: #{robonet_forward.2} parent=11 // pred_check_branch
        %167 = sbr.rel (%p165) target = $region20
      $region19: #{robonet_forward.2} parent=11 // pred_region
        _
      $region20: #{robonet_forward.2} parent=11 // pred_fallthru
        _
      // Predicated region
      $region21: #{robonet_forward.2} parent=11 // pred_check
        %p168 = pneg %p100
      $region22: #{robonet_forward.2} parent=11 // pred_check_branch
        %170 = sbr.rel (%p168) target = $region24
      $region23: #{robonet_forward.2} parent=11 // pred_region
        _
      $region24: #{robonet_forward.2} parent=11 // pred_fallthru
        _
      // Predicated region
      $region25: #{robonet_forward.2} parent=11 // pred_check
        %p171 = pneg %p121
      $region26: #{robonet_forward.2} parent=11 // pred_check_branch
        %173 = sbr.rel (%p171) target = $region28
      $region27: #{robonet_forward.2} parent=11 // pred_region
        _
      $region28: #{robonet_forward.2} parent=11 // pred_fallthru
        _
    $region12: #{robonet_forward.2} parent=5 // pred_fallthru
      _
    %p174 = scmp.lt.s32.totalorder %s11, 2
    // Predicated region
    $region29: #{robonet_forward.2} parent=5 // pred_check
      %p175 = pneg %p174
    $region30: #{robonet_forward.2} parent=5 // pred_check_branch
      %177 = sbr.rel (%p175) target = $region32
    $region31: #{robonet_forward.2} parent=5 // pred_region
      // Predicated region
      $region33: #{robonet_forward.2} parent=31 // pred_check
        %p178 = pneg %p31
      $region34: #{robonet_forward.2} parent=31 // pred_check_branch
        %180 = sbr.rel (%p178) target = $region36
      $region35: #{robonet_forward.2} parent=31 // pred_region
        %p181 = scmp.lt.s32.totalorder %s11, 1
        %s182 = scalar_select %p181, %s11, 1
        %s183 = smul.addr %s182, 216
        %s184 = smul.addr %s183, 8
        %s185 = scalar_lea.vmem %s0, %s184
      $region36: #{robonet_forward.2} parent=31 // pred_fallthru
        _
    $region32: #{robonet_forward.2} parent=5 // pred_fallthru
      _
    %p186 = scmp.le.s32.totalorder 1, %s11
    %p187 = scmp.lt.s32.totalorder %s11, 3
    %p188 = pnand %p186, %p187
    %p189 = pneg %p188
    // Predicated region
    $region37: #{robonet_forward.2} parent=5 // pred_check
      _
    $region38: #{robonet_forward.2} parent=5 // pred_check_branch
      %191 = sbr.rel (%p188) target = $region40
    $region39: #{robonet_forward.2} parent=5 // pred_region
      %s192 = ssub.s32 %s11, 1
      %p193 = scmp.lt.s32.totalorder %s16, 1
      %s194 = scalar_select %p193, %s16, 1
      %s195 = smul.addr %s194, 216
      %s196 = smul.addr %s195, 8
      %s197 = scalar_lea.vmem %s0, %s196
      %p198 = pneg %p37
      %p199 = pneg %p34
      %p200 = pneg %p58
      %p201 = pneg %p55
      %p202 = pneg %p79
      %p203 = pneg %p76
      %p204 = pneg %p100
      %p205 = pneg %p97
      %p206 = pneg %p121
      %p207 = pneg %p118
      %p208 = pneg %p147
      %p209 = pneg %p144
      %p210 = scmp.lt.s32.totalorder %s16, 1
      %s211 = scalar_select %p210, %s16, 1
      %s212 = smul.addr %s211, 2
      %s213 = scalar_lea.vmem %s5, %s212
      %p214 = scmp.lt.s32.totalorder %s16, 1
      %s215 = scalar_select %p214, %s16, 1
      %s216 = smul.addr %s215, 216
      %s217 = smul.addr %s216, 8
      %s218 = scalar_lea.vmem %s0, %s217
      %p219 = scmp.lt.s32.totalorder %s16, 1
      %s220 = scalar_select %p219, %s16, 1
      %s221 = smul.addr %s220, 2
      %s222 = scalar_lea.vmem %s5, %s221
      %v223 = vld [vmem:[%s218] sm:$0xff]
      %v224 = vld [vmem:[%s218 + $0x8] sm:$0xff]
      %v225 = vld [vmem:[%s218 + $0x10] sm:$0xff]
      %v226 = vld [vmem:[%s218 + $0x18] sm:$0xff]
      %v227 = vld [vmem:[%s218 + $0x20] sm:$0xff]
      %v228 = vld [vmem:[%s218 + $0x28] sm:$0xff]
      %v229 = vld [vmem:[%s218 + $0x30] sm:$0xff]
      %v230 = vld [vmem:[%s218 + $0x38] sm:$0xff]
      %v231 = vld [vmem:[%s218 + $0x40] sm:$0xff]
      %v232 = vld [vmem:[%s218 + $0x48] sm:$0xff]
      %v233 = vld [vmem:[%s218 + $0x50] sm:$0xff]
      %v234 = vld [vmem:[%s218 + $0x58] sm:$0xff]
      %v235 = vld [vmem:[%s218 + $0x60] sm:$0xff]
      %v236 = vld [vmem:[%s218 + $0x68] sm:$0xff]
      %v237 = vld [vmem:[%s218 + $0x70] sm:$0xff]
      %v238 = vld [vmem:[%s218 + $0x78] sm:$0xff]
      %v239 = vld [vmem:[%s218 + $0x80] sm:$0xff]
      %v240 = vld [vmem:[%s218 + $0x88] sm:$0xff]
      %v241 = vld [vmem:[%s218 + $0x90] sm:$0xff]
      %v242 = vld [vmem:[%s218 + $0x98] sm:$0xff]
      %v243 = vld [vmem:[%s218 + $0xa0] sm:$0xff]
      %v244 = vld [vmem:[%s218 + $0xa8] sm:$0xff]
      %v245 = vld [vmem:[%s218 + $0xb0] sm:$0xff]
      %v246 = vld [vmem:[%s218 + $0xb8] sm:$0xff]
      %v247 = vld [vmem:[%s218 + $0xc0] sm:$0xff]
      %v248 = vld [vmem:[%s218 + $0xc8] sm:$0xff]
      %v249 = vld [vmem:[%s218 + $0xd0] sm:$0xff]
      %v250 = vld [vmem:[%s218 + $0xd8] sm:$0xff]
      %v251 = vld [vmem:[%s218 + $0xe0] sm:$0xff]
      %v252 = vld [vmem:[%s218 + $0xe8] sm:$0xff]
      %v253 = vld [vmem:[%s218 + $0xf0] sm:$0xff]
      %v254 = vld [vmem:[%s218 + $0xf8] sm:$0xff]
      %v255 = vld [vmem:[%s218 + $0x100] sm:$0xff]
      %v256 = vld [vmem:[%s218 + $0x108] sm:$0xff]
      %v257 = vld [vmem:[%s218 + $0x110] sm:$0xff]
      %v258 = vld [vmem:[%s218 + $0x118] sm:$0xff]
      %v259 = vld [vmem:[%s218 + $0x120] sm:$0xff]
      %v260 = vld [vmem:[%s218 + $0x128] sm:$0xff]
      %v261 = vld [vmem:[%s218 + $0x130] sm:$0xff]
      %v262 = vld [vmem:[%s218 + $0x138] sm:$0xff]
      %v263 = vld [vmem:[%s218 + $0x140] sm:$0xff]
      %v264 = vld [vmem:[%s218 + $0x148] sm:$0xff]
      %v265 = vld [vmem:[%s218 + $0x150] sm:$0xff]
      %v266 = vld [vmem:[%s218 + $0x158] sm:$0xff]
      %v267 = vld [vmem:[%s218 + $0x160] sm:$0xff]
      %v268 = vld [vmem:[%s218 + $0x168] sm:$0xff]
      %v269 = vld [vmem:[%s218 + $0x170] sm:$0xff]
      %v270 = vld [vmem:[%s218 + $0x178] sm:$0xff]
      %v271 = vld [vmem:[%s218 + $0x180] sm:$0xff]
      %v272 = vld [vmem:[%s218 + $0x188] sm:$0xff]
      %v273 = vld [vmem:[%s218 + $0x190] sm:$0xff]
      %v274 = vld [vmem:[%s218 + $0x198] sm:$0xff]
      %v275 = vld [vmem:[%s218 + $0x1a0] sm:$0xff]
      %v276 = vld [vmem:[%s218 + $0x1a8] sm:$0xff]
      %v277 = vld [vmem:[%s218 + $0x1b0] sm:$0xff]
      %v278 = vld [vmem:[%s218 + $0x1b8] sm:$0xff]
      %v279 = vld [vmem:[%s218 + $0x1c0] sm:$0xff]
      %v280 = vld [vmem:[%s218 + $0x1c8] sm:$0xff]
      %v281 = vld [vmem:[%s218 + $0x1d0] sm:$0xff]
      %v282 = vld [vmem:[%s218 + $0x1d8] sm:$0xff]
      %v283 = vld [vmem:[%s218 + $0x1e0] sm:$0xff]
      %v284 = vld [vmem:[%s218 + $0x1e8] sm:$0xff]
      %v285 = vld [vmem:[%s218 + $0x1f0] sm:$0xff]
      %v286 = vld [vmem:[%s218 + $0x1f8] sm:$0xff]
      %v287 = vld [vmem:[%s218 + $0x200] sm:$0xff]
      %v288 = vld [vmem:[%s218 + $0x208] sm:$0xff]
      %v289 = vld [vmem:[%s218 + $0x210] sm:$0xff]
      %v290 = vld [vmem:[%s218 + $0x218] sm:$0xff]
      %v291 = vld [vmem:[%s218 + $0x220] sm:$0xff]
      %v292 = vld [vmem:[%s218 + $0x228] sm:$0xff]
      %v293 = vld [vmem:[%s218 + $0x230] sm:$0xff]
      %v294 = vld [vmem:[%s218 + $0x238] sm:$0xff]
      %v295 = vld [vmem:[%s218 + $0x240] sm:$0xff]
      %v296 = vld [vmem:[%s218 + $0x248] sm:$0xff]
      %v297 = vld [vmem:[%s218 + $0x250] sm:$0xff]
      %v298 = vld [vmem:[%s218 + $0x258] sm:$0xff]
      %v299 = vld [vmem:[%s218 + $0x260] sm:$0xff]
      %v300 = vld [vmem:[%s218 + $0x268] sm:$0xff]
      %v301 = vld [vmem:[%s218 + $0x270] sm:$0xff]
      %v302 = vld [vmem:[%s218 + $0x278] sm:$0xff]
      %v303 = vld [vmem:[%s218 + $0x280] sm:$0xff]
      %v304 = vld [vmem:[%s218 + $0x288] sm:$0xff]
      %v305 = vld [vmem:[%s218 + $0x290] sm:$0xff]
      %v306 = vld [vmem:[%s218 + $0x298] sm:$0xff]
      %v307 = vld [vmem:[%s218 + $0x2a0] sm:$0xff]
      %v308 = vld [vmem:[%s218 + $0x2a8] sm:$0xff]
      %v309 = vld [vmem:[%s218 + $0x2b0] sm:$0xff]
      %v310 = vld [vmem:[%s218 + $0x2b8] sm:$0xff]
      %v311 = vld [vmem:[%s218 + $0x2c0] sm:$0xff]
      %v312 = vld [vmem:[%s218 + $0x2c8] sm:$0xff]
      %v313 = vld [vmem:[%s218 + $0x2d0] sm:$0xff]
      %v314 = vld [vmem:[%s218 + $0x2d8] sm:$0xff]
      %v315 = vld [vmem:[%s218 + $0x2e0] sm:$0xff]
      %v316 = vld [vmem:[%s218 + $0x2e8] sm:$0xff]
      %v317 = vld [vmem:[%s218 + $0x2f0] sm:$0xff]
      %v318 = vld [vmem:[%s218 + $0x2f8] sm:$0xff]
      %v319 = vld [vmem:[%s218 + $0x300] sm:$0xff]
      %v320 = vld [vmem:[%s218 + $0x308] sm:$0xff]
      %v321 = vld [vmem:[%s218 + $0x310] sm:$0xff]
      %v322 = vld [vmem:[%s218 + $0x318] sm:$0xff]
      %v323 = vld [vmem:[%s218 + $0x320] sm:$0xff]
      %v324 = vld [vmem:[%s218 + $0x328] sm:$0xff]
      %v325 = vld [vmem:[%s218 + $0x330] sm:$0xff]
      %v326 = vld [vmem:[%s218 + $0x338] sm:$0xff]
      %v327 = vld [vmem:[%s218 + $0x340] sm:$0xff]
      %v328 = vld [vmem:[%s218 + $0x348] sm:$0xff]
      %v329 = vld [vmem:[%s218 + $0x350] sm:$0xff]
      %v330 = vld [vmem:[%s218 + $0x358] sm:$0xff]
      %v331 = vld [vmem:[%s218 + $0x360] sm:$0xff]
      %v332 = vld [vmem:[%s218 + $0x368] sm:$0xff]
      %v333 = vld [vmem:[%s218 + $0x370] sm:$0xff]
      %v334 = vld [vmem:[%s218 + $0x378] sm:$0xff]
      %v335 = vld [vmem:[%s218 + $0x380] sm:$0xff]
      %v336 = vld [vmem:[%s218 + $0x388] sm:$0xff]
      %v337 = vld [vmem:[%s218 + $0x390] sm:$0xff]
      %v338 = vld [vmem:[%s218 + $0x398] sm:$0xff]
      %v339 = vld [vmem:[%s218 + $0x3a0] sm:$0xff]
      %v340 = vld [vmem:[%s218 + $0x3a8] sm:$0xff]
      %v341 = vld [vmem:[%s218 + $0x3b0] sm:$0xff]
      %v342 = vld [vmem:[%s218 + $0x3b8] sm:$0xff]
      %v343 = vld [vmem:[%s218 + $0x3c0] sm:$0xff]
      %v344 = vld [vmem:[%s218 + $0x3c8] sm:$0xff]
      %v345 = vld [vmem:[%s218 + $0x3d0] sm:$0xff]
      %v346 = vld [vmem:[%s218 + $0x3d8] sm:$0xff]
      %v347 = vld [vmem:[%s218 + $0x3e0] sm:$0xff]
      %v348 = vld [vmem:[%s218 + $0x3e8] sm:$0xff]
      %v349 = vld [vmem:[%s218 + $0x3f0] sm:$0xff]
      %v350 = vld [vmem:[%s218 + $0x3f8] sm:$0xff]
      %v351 = vld [vmem:[%s218 + $0x400] sm:$0xff]
      %v352 = vld [vmem:[%s218 + $0x408] sm:$0xff]
      %v353 = vld [vmem:[%s218 + $0x410] sm:$0xff]
      %v354 = vld [vmem:[%s218 + $0x418] sm:$0xff]
      %v355 = vld [vmem:[%s218 + $0x420] sm:$0xff]
      %v356 = vld [vmem:[%s218 + $0x428] sm:$0xff]
      %v357 = vld [vmem:[%s218 + $0x430] sm:$0xff]
      %v358 = vld [vmem:[%s218 + $0x438] sm:$0xff]
      %v359 = vld [vmem:[%s218 + $0x440] sm:$0xff]
      %v360 = vld [vmem:[%s218 + $0x448] sm:$0xff]
      %v361 = vld [vmem:[%s218 + $0x450] sm:$0xff]
      %v362 = vld [vmem:[%s218 + $0x458] sm:$0xff]
      %v363 = vld [vmem:[%s218 + $0x460] sm:$0xff]
      %v364 = vld [vmem:[%s218 + $0x468] sm:$0xff]
      %v365 = vld [vmem:[%s218 + $0x470] sm:$0xff]
      %v366 = vld [vmem:[%s218 + $0x478] sm:$0xff]
      %v367 = vld [vmem:[%s218 + $0x480] sm:$0xff]
      %v368 = vld [vmem:[%s218 + $0x488] sm:$0xff]
      %v369 = vld [vmem:[%s218 + $0x490] sm:$0xff]
      %v370 = vld [vmem:[%s218 + $0x498] sm:$0xff]
      %v371 = vld [vmem:[%s218 + $0x4a0] sm:$0xff]
      %v372 = vld [vmem:[%s218 + $0x4a8] sm:$0xff]
      %v373 = vld [vmem:[%s218 + $0x4b0] sm:$0xff]
      %v374 = vld [vmem:[%s218 + $0x4b8] sm:$0xff]
      %v375 = vld [vmem:[%s218 + $0x4c0] sm:$0xff]
      %v376 = vld [vmem:[%s218 + $0x4c8] sm:$0xff]
      %v377 = vld [vmem:[%s218 + $0x4d0] sm:$0xff]
      %v378 = vld [vmem:[%s218 + $0x4d8] sm:$0xff]
      %v379 = vld [vmem:[%s218 + $0x4e0] sm:$0xff]
      %v380 = vld [vmem:[%s218 + $0x4e8] sm:$0xff]
      %v381 = vld [vmem:[%s218 + $0x4f0] sm:$0xff]
      %v382 = vld [vmem:[%s218 + $0x4f8] sm:$0xff]
      %v383 = vld [vmem:[%s218 + $0x500] sm:$0xff]
      %v384 = vld [vmem:[%s218 + $0x508] sm:$0xff]
      %v385 = vld [vmem:[%s218 + $0x510] sm:$0xff]
      %v386 = vld [vmem:[%s218 + $0x518] sm:$0xff]
      %v387 = vld [vmem:[%s218 + $0x520] sm:$0xff]
      %v388 = vld [vmem:[%s218 + $0x528] sm:$0xff]
      %v389 = vld [vmem:[%s218 + $0x530] sm:$0xff]
      %v390 = vld [vmem:[%s218 + $0x538] sm:$0xff]
      %v391 = vld [vmem:[%s218 + $0x540] sm:$0xff]
      %v392 = vld [vmem:[%s218 + $0x548] sm:$0xff]
      %v393 = vld [vmem:[%s218 + $0x550] sm:$0xff]
      %v394 = vld [vmem:[%s218 + $0x558] sm:$0xff]
      %v395 = vld [vmem:[%s218 + $0x560] sm:$0xff]
      %v396 = vld [vmem:[%s218 + $0x568] sm:$0xff]
      %v397 = vld [vmem:[%s218 + $0x570] sm:$0xff]
      %v398 = vld [vmem:[%s218 + $0x578] sm:$0xff]
      %v399 = vld [vmem:[%s218 + $0x580] sm:$0xff]
      %v400 = vld [vmem:[%s218 + $0x588] sm:$0xff]
      %v401 = vld [vmem:[%s218 + $0x590] sm:$0xff]
      %v402 = vld [vmem:[%s218 + $0x598] sm:$0xff]
      %v403 = vld [vmem:[%s218 + $0x5a0] sm:$0xff]
      %v404 = vld [vmem:[%s218 + $0x5a8] sm:$0xff]
      %v405 = vld [vmem:[%s218 + $0x5b0] sm:$0xff]
      %v406 = vld [vmem:[%s218 + $0x5b8] sm:$0xff]
      %v407 = vld [vmem:[%s218 + $0x5c0] sm:$0xff]
      %v408 = vld [vmem:[%s218 + $0x5c8] sm:$0xff]
      %v409 = vld [vmem:[%s218 + $0x5d0] sm:$0xff]
      %v410 = vld [vmem:[%s218 + $0x5d8] sm:$0xff]
      %v411 = vld [vmem:[%s218 + $0x5e0] sm:$0xff]
      %v412 = vld [vmem:[%s218 + $0x5e8] sm:$0xff]
      %v413 = vld [vmem:[%s218 + $0x5f0] sm:$0xff]
      %v414 = vld [vmem:[%s218 + $0x5f8] sm:$0xff]
      %v415 = vld [vmem:[%s218 + $0x600] sm:$0xff]
      %v416 = vld [vmem:[%s218 + $0x608] sm:$0xff]
      %v417 = vld [vmem:[%s218 + $0x610] sm:$0xff]
      %v418 = vld [vmem:[%s218 + $0x618] sm:$0xff]
      %v419 = vld [vmem:[%s218 + $0x620] sm:$0xff]
      %v420 = vld [vmem:[%s218 + $0x628] sm:$0xff]
      %v421 = vld [vmem:[%s218 + $0x630] sm:$0xff]
      %v422 = vld [vmem:[%s218 + $0x638] sm:$0xff]
      %v423 = vld [vmem:[%s218 + $0x640] sm:$0xff]
      %v424 = vld [vmem:[%s218 + $0x648] sm:$0xff]
      %v425 = vld [vmem:[%s218 + $0x650] sm:$0xff]
      %v426 = vld [vmem:[%s218 + $0x658] sm:$0xff]
      %v427 = vld [vmem:[%s218 + $0x660] sm:$0xff]
      %v428 = vld [vmem:[%s218 + $0x668] sm:$0xff]
      %v429 = vld [vmem:[%s218 + $0x670] sm:$0xff]
      %v430 = vld [vmem:[%s218 + $0x678] sm:$0xff]
      %v431 = vld [vmem:[%s218 + $0x680] sm:$0xff]
      %v432 = vld [vmem:[%s218 + $0x688] sm:$0xff]
      %v433 = vld [vmem:[%s218 + $0x690] sm:$0xff]
      %v434 = vld [vmem:[%s218 + $0x698] sm:$0xff]
      %v435 = vld [vmem:[%s218 + $0x6a0] sm:$0xff]
      %v436 = vld [vmem:[%s218 + $0x6a8] sm:$0xff]
      %v437 = vld [vmem:[%s218 + $0x6b0] sm:$0xff]
      %v438 = vld [vmem:[%s218 + $0x6b8] sm:$0xff]
      %v439 = vld [vmem:[%s1] sm:$0xff]
      %v440 = vld [vmem:[%s1 + $0x8] sm:$0xff]
      %v441 = vld [vmem:[%s1 + $0x10] sm:$0xff]
      %v442 = vld [vmem:[%s1 + $0x18] sm:$0xff]
      %v443 = vld [vmem:[%s1 + $0x20] sm:$0xff]
      %v444 = vld [vmem:[%s1 + $0x28] sm:$0xff]
      %v445 = vld [vmem:[%s2] sm:$0x1]
      %v447 = vlaneseq
      %v448 = vshrl.u32 %v447, 7
      %v449 = vsub.s32 0, %v448
      %v450 = vrot.slane %v445, %v449
      %vm452 = vcmask 392192
      %v454 = vsel %vm452, %v223, 0
      %v457 = vsel %vm452, %v224, 0
      %v460 = vsel %vm452, %v225, 0
      %v463 = vsel %vm452, %v226, 0
      %v466 = vsel %vm452, %v227, 0
      %v469 = vsel %vm452, %v228, 0
      %v472 = vsel %vm452, %v229, 0
      %v475 = vsel %vm452, %v230, 0
      %v478 = vsel %vm452, %v231, 0
      %v481 = vsel %vm452, %v232, 0
      %v484 = vsel %vm452, %v233, 0
      %v487 = vsel %vm452, %v234, 0
      %v490 = vsel %vm452, %v235, 0
      %v493 = vsel %vm452, %v236, 0
      %v496 = vsel %vm452, %v237, 0
      %v499 = vsel %vm452, %v238, 0
      %v502 = vsel %vm452, %v239, 0
      %v505 = vsel %vm452, %v240, 0
      %v508 = vsel %vm452, %v241, 0
      %v511 = vsel %vm452, %v242, 0
      %v514 = vsel %vm452, %v243, 0
      %v517 = vsel %vm452, %v244, 0
      %v520 = vsel %vm452, %v245, 0
      %v523 = vsel %vm452, %v246, 0
      %v526 = vsel %vm452, %v247, 0
      %v529 = vsel %vm452, %v248, 0
      %v532 = vsel %vm452, %v249, 0
      %v535 = vsel %vm452, %v250, 0
      %v538 = vsel %vm452, %v251, 0
      %v541 = vsel %vm452, %v252, 0
      %v544 = vsel %vm452, %v253, 0
      %v547 = vsel %vm452, %v254, 0
      %v550 = vsel %vm452, %v255, 0
      %v553 = vsel %vm452, %v256, 0
      %v556 = vsel %vm452, %v257, 0
      %v559 = vsel %vm452, %v258, 0
      %v562 = vsel %vm452, %v259, 0
      %v565 = vsel %vm452, %v260, 0
      %v568 = vsel %vm452, %v261, 0
      %v571 = vsel %vm452, %v262, 0
      %v574 = vsel %vm452, %v263, 0
      %v577 = vsel %vm452, %v264, 0
      %v580 = vsel %vm452, %v265, 0
      %v583 = vsel %vm452, %v266, 0
      %v586 = vsel %vm452, %v267, 0
      %v589 = vsel %vm452, %v268, 0
      %v592 = vsel %vm452, %v269, 0
      %v595 = vsel %vm452, %v270, 0
      %v598 = vsel %vm452, %v271, 0
      %v601 = vsel %vm452, %v272, 0
      %v604 = vsel %vm452, %v273, 0
      %v607 = vsel %vm452, %v274, 0
      %v610 = vsel %vm452, %v275, 0
      %v613 = vsel %vm452, %v276, 0
      %v616 = vsel %vm452, %v277, 0
      %v619 = vsel %vm452, %v278, 0
      %v622 = vsel %vm452, %v279, 0
      %v625 = vsel %vm452, %v280, 0
      %v628 = vsel %vm452, %v281, 0
      %v631 = vsel %vm452, %v282, 0
      %v634 = vsel %vm452, %v283, 0
      %v637 = vsel %vm452, %v284, 0
      %v640 = vsel %vm452, %v285, 0
      %v643 = vsel %vm452, %v286, 0
      %v646 = vsel %vm452, %v287, 0
      %v649 = vsel %vm452, %v288, 0
      %v652 = vsel %vm452, %v289, 0
      %v655 = vsel %vm452, %v290, 0
      %v658 = vsel %vm452, %v291, 0
      %v661 = vsel %vm452, %v292, 0
      %v664 = vsel %vm452, %v293, 0
      %v667 = vsel %vm452, %v294, 0
      %v670 = vsel %vm452, %v295, 0
      %v673 = vsel %vm452, %v296, 0
      %v676 = vsel %vm452, %v297, 0
      %v679 = vsel %vm452, %v298, 0
      %v682 = vsel %vm452, %v299, 0
      %v685 = vsel %vm452, %v300, 0
      %v688 = vsel %vm452, %v301, 0
      %v691 = vsel %vm452, %v302, 0
      %v694 = vsel %vm452, %v303, 0
      %v697 = vsel %vm452, %v304, 0
      %v700 = vsel %vm452, %v305, 0
      %v703 = vsel %vm452, %v306, 0
      %v706 = vsel %vm452, %v307, 0
      %v709 = vsel %vm452, %v308, 0
      %v712 = vsel %vm452, %v309, 0
      %v715 = vsel %vm452, %v310, 0
      %v718 = vsel %vm452, %v311, 0
      %v721 = vsel %vm452, %v312, 0
      %v724 = vsel %vm452, %v313, 0
      %v727 = vsel %vm452, %v314, 0
      %v730 = vsel %vm452, %v315, 0
      %v733 = vsel %vm452, %v316, 0
      %v736 = vsel %vm452, %v317, 0
      %v739 = vsel %vm452, %v318, 0
      %v742 = vsel %vm452, %v319, 0
      %v745 = vsel %vm452, %v320, 0
      %v748 = vsel %vm452, %v321, 0
      %v751 = vsel %vm452, %v322, 0
      %v754 = vsel %vm452, %v323, 0
      %v757 = vsel %vm452, %v324, 0
      %v760 = vsel %vm452, %v325, 0
      %v763 = vsel %vm452, %v326, 0
      %v766 = vsel %vm452, %v327, 0
      %v769 = vsel %vm452, %v328, 0
      %v772 = vsel %vm452, %v329, 0
      %v775 = vsel %vm452, %v330, 0
      %v778 = vsel %vm452, %v331, 0
      %v781 = vsel %vm452, %v332, 0
      %v784 = vsel %vm452, %v333, 0
      %v787 = vsel %vm452, %v334, 0
      %v790 = vsel %vm452, %v335, 0
      %v793 = vsel %vm452, %v336, 0
      %v796 = vsel %vm452, %v337, 0
      %v799 = vsel %vm452, %v338, 0
      %v802 = vsel %vm452, %v339, 0
      %v805 = vsel %vm452, %v340, 0
      %v808 = vsel %vm452, %v341, 0
      %v811 = vsel %vm452, %v342, 0
      %v814 = vsel %vm452, %v343, 0
      %v817 = vsel %vm452, %v344, 0
      %v820 = vsel %vm452, %v345, 0
      %v823 = vsel %vm452, %v346, 0
      %v826 = vsel %vm452, %v347, 0
      %v829 = vsel %vm452, %v348, 0
      %v832 = vsel %vm452, %v349, 0
      %v835 = vsel %vm452, %v350, 0
      %v838 = vsel %vm452, %v351, 0
      %v841 = vsel %vm452, %v352, 0
      %v844 = vsel %vm452, %v353, 0
      %v847 = vsel %vm452, %v354, 0
      %v850 = vsel %vm452, %v355, 0
      %v853 = vsel %vm452, %v356, 0
      %v856 = vsel %vm452, %v357, 0
      %v859 = vsel %vm452, %v358, 0
      %v862 = vsel %vm452, %v359, 0
      %v865 = vsel %vm452, %v360, 0
      %v868 = vsel %vm452, %v361, 0
      %v871 = vsel %vm452, %v362, 0
      %v874 = vsel %vm452, %v363, 0
      %v877 = vsel %vm452, %v364, 0
      %v880 = vsel %vm452, %v365, 0
      %v883 = vsel %vm452, %v366, 0
      %v886 = vsel %vm452, %v367, 0
      %v889 = vsel %vm452, %v368, 0
      %v892 = vsel %vm452, %v369, 0
      %v895 = vsel %vm452, %v370, 0
      %v898 = vsel %vm452, %v371, 0
      %v901 = vsel %vm452, %v372, 0
      %v904 = vsel %vm452, %v373, 0
      %v907 = vsel %vm452, %v374, 0
      %v910 = vsel %vm452, %v375, 0
      %v913 = vsel %vm452, %v376, 0
      %v916 = vsel %vm452, %v377, 0
      %v919 = vsel %vm452, %v378, 0
      %v922 = vsel %vm452, %v379, 0
      %v925 = vsel %vm452, %v380, 0
      %v928 = vsel %vm452, %v381, 0
      %v931 = vsel %vm452, %v382, 0
      %v934 = vsel %vm452, %v383, 0
      %v937 = vsel %vm452, %v384, 0
      %v940 = vsel %vm452, %v385, 0
      %v943 = vsel %vm452, %v386, 0
      %v946 = vsel %vm452, %v387, 0
      %v949 = vsel %vm452, %v388, 0
      %v952 = vsel %vm452, %v389, 0
      %v955 = vsel %vm452, %v390, 0
      %v958 = vsel %vm452, %v391, 0
      %v961 = vsel %vm452, %v392, 0
      %v964 = vsel %vm452, %v393, 0
      %v967 = vsel %vm452, %v394, 0
      %v970 = vsel %vm452, %v395, 0
      %v973 = vsel %vm452, %v396, 0
      %v976 = vsel %vm452, %v397, 0
      %v979 = vsel %vm452, %v398, 0
      %v982 = vsel %vm452, %v399, 0
      %v985 = vsel %vm452, %v400, 0
      %v988 = vsel %vm452, %v401, 0
      %v991 = vsel %vm452, %v402, 0
      %v994 = vsel %vm452, %v403, 0
      %v997 = vsel %vm452, %v404, 0
      %v1000 = vsel %vm452, %v405, 0
      %v1003 = vsel %vm452, %v406, 0
      %v1006 = vsel %vm452, %v407, 0
      %v1009 = vsel %vm452, %v408, 0
      %v1012 = vsel %vm452, %v409, 0
      %v1015 = vsel %vm452, %v410, 0
      %v1018 = vsel %vm452, %v411, 0
      %v1021 = vsel %vm452, %v412, 0
      %v1024 = vsel %vm452, %v413, 0
      %v1027 = vsel %vm452, %v414, 0
      %v1030 = vsel %vm452, %v415, 0
      %v1033 = vsel %vm452, %v416, 0
      %v1036 = vsel %vm452, %v417, 0
      %v1039 = vsel %vm452, %v418, 0
      %v1042 = vsel %vm452, %v419, 0
      %v1045 = vsel %vm452, %v420, 0
      %v1048 = vsel %vm452, %v421, 0
      %v1051 = vsel %vm452, %v422, 0
      %v1054 = vsel %vm452, %v423, 0
      %v1057 = vsel %vm452, %v424, 0
      %v1060 = vsel %vm452, %v425, 0
      %v1063 = vsel %vm452, %v426, 0
      %v1066 = vsel %vm452, %v427, 0
      %v1069 = vsel %vm452, %v428, 0
      %v1072 = vsel %vm452, %v429, 0
      %v1075 = vsel %vm452, %v430, 0
      %v1078 = vsel %vm452, %v431, 0
      %v1081 = vsel %vm452, %v432, 0
      %v1084 = vsel %vm452, %v433, 0
      %v1087 = vsel %vm452, %v434, 0
      %v1090 = vsel %vm452, %v435, 0
      %v1093 = vsel %vm452, %v436, 0
      %v1096 = vsel %vm452, %v437, 0
      %v1099 = vsel %vm452, %v438, 0
      %1101 = vmatprep.subr.mxu0 0.0
      %1102 = vmatpush1.msra.mxu0 %v439
      %1103 = vmatprep.subr.mxu0 0.0
      %1104 = vmatpush1.msra.mxu0 %v440
      %1105 = vmatprep.subr.mxu0 0.0
      %1106 = vmatpush1.msra.mxu0 %v441
      %1107 = vmatprep.subr.mxu0 0.0
      %1108 = vmatpush1.msra.mxu0 %v442
      %1109 = vmatprep.subr.mxu0 0.0
      %1110 = vmatpush1.msra.mxu0 %v443
      %1111 = vmatprep.subr.mxu0 0.0
      %1112 = vmatpush1.msra.mxu0 %v444
      %1113 = vmatprep.subr.mxu0 0.0
      %1114 = vmatpush1.msra.mxu0 0.0
      %1115 = vmatprep.subr.mxu0 0.0
      %1116 = vmatpush1.msra.mxu0 0.0
      %1117 = vmatprep.subr.mxu0 0.0
      %1118 = vmatpush1.msra.mxu0 0.0
      %1119 = vmatprep.subr.mxu0 0.0
      %1120 = vmatpush1.msra.mxu0 0.0
      %1121 = vmatprep.subr.mxu0 0.0
      %1122 = vmatpush1.msra.mxu0 0.0
      %1123 = vmatprep.subr.mxu0 0.0
      %1124 = vmatpush1.msra.mxu0 0.0
      %1125 = vmatprep.subr.mxu0 0.0
      %1126 = vmatpush1.msra.mxu0 0.0
      %1127 = vmatprep.subr.mxu0 0.0
      %1128 = vmatpush1.msra.mxu0 0.0
      %1129 = vmatprep.subr.mxu0 0.0
      %1130 = vmatpush1.msra.mxu0 0.0
      %1131 = vmatprep.subr.mxu0 0.0
      %1132 = vmatpush1.msra.mxu0 0.0
      %1133 = vmatprep.subr.mxu0 0.0
      %1134 = vmatpush1.msra.mxu0 0.0
      %1135 = vmatprep.subr.mxu0 0.0
      %1136 = vmatpush1.msra.mxu0 0.0
      %1137 = vmatprep.subr.mxu0 0.0
      %1138 = vmatpush1.msra.mxu0 0.0
      %1139 = vmatprep.subr.mxu0 0.0
      %1140 = vmatpush1.msra.mxu0 0.0
      %1141 = vmatprep.subr.mxu0 0.0
      %1142 = vmatpush1.msra.mxu0 0.0
      %1143 = vmatprep.subr.mxu0 0.0
      %1144 = vmatpush1.msra.mxu0 0.0
      %1145 = vmatprep.subr.mxu0 0.0
      %1146 = vmatpush1.msra.mxu0 0.0
      %1147 = vmatprep.subr.mxu0 0.0
      %1148 = vmatpush1.msra.mxu0 0.0
      %1149 = vmatprep.subr.mxu0 0.0
      %1150 = vmatpush1.msra.mxu0 0.0
      %1151 = vmatprep.subr.mxu0 0.0
      %1152 = vmatpush1.msra.mxu0 0.0
      %1153 = vmatprep.subr.mxu0 0.0
      %1154 = vmatpush1.msra.mxu0 0.0
      %1155 = vmatprep.subr.mxu0 0.0
      %1156 = vmatpush1.msra.mxu0 0.0
      %1157 = vmatprep.subr.mxu0 0.0
      %1158 = vmatpush1.msra.mxu0 0.0
      %1159 = vmatprep.subr.mxu0 0.0
      %1160 = vmatpush1.msra.mxu0 0.0
      %1161 = vmatprep.subr.mxu0 0.0
      %1162 = vmatpush1.msra.mxu0 0.0
      %1163 = vmatprep.subr.mxu0 0.0
      %1164 = vmatpush1.msra.mxu0 0.0
      %1165 = vmatprep.mubr.f32.mxu0 0.0
      %1166 = vmatmul.mubr.f32.gmra.mrb[0].mxu0 %v454
      %v1167 = vpop.f32.mrb[0].mxu0
      %v1168 = vadd.f32 %v450, %v1167
      %v1169 = vpop.f32.mrb[0].mxu0
      %1170 = vmatprep.mubr.f32.mxu0 0.0
      %1171 = vmatmul.mubr.f32.gmra.mrb[0].mxu0 %v457
      %v1172 = vpop.f32.mrb[0].mxu0
      %v1173 = vadd.f32 %v450, %v1172
      %v1174 = vpop.f32.mrb[0].mxu0
      %1175 = vmatprep.mubr.f32.mxu0 0.0
      %1176 = vmatmul.mubr.f32.gmra.mrb[0].mxu0 %v460
      %v1177 = vpop.f32.mrb[0].mxu0
      %v1178 = vadd.f32 %v450, %v1177
      %v1179 = vpop.f32.mrb[0].mxu0
      %1180 = vmatprep.mubr.f32.mxu0 0.0
      %1181 = vmatmul.mubr.f32.gmra.mrb[0].mxu0 %v463
      %v1182 = vpop.f32.mrb[0].mxu0
      %v1183 = vadd.f32 %v450, %v1182
      %v1184 = vpop.f32.mrb[0].mxu0
      %1185 = vmatprep.mubr.f32.mxu0 0.0
      %1186 = vmatmul.mubr.f32.gmra.mrb[0].mxu0 %v466
      %v1187 = vpop.f32.mrb[0].mxu0
      %v1188 = vadd.f32 %v450, %v1187
      %v1189 = vpop.f32.mrb[0].mxu0
      %1190 = vmatprep.mubr.f32.mxu0 0.0
      %1191 = vmatmul.mubr.f32.gmra.mrb[0].mxu0 %v469
      %v1192 = vpop.f32.mrb[0].mxu0
      %v1193 = vadd.f32 %v450, %v1192
      %v1194 = vpop.f32.mrb[0].mxu0
      %1195 = vmatprep.mubr.f32.mxu0 0.0
      %1196 = vmatmul.mubr.f32.gmra.mrb[0].mxu0 %v472
      %v1197 = vpop.f32.mrb[0].mxu0
      %v1198 = vadd.f32 %v450, %v1197
      %v1199 = vpop.f32.mrb[0].mxu0
      %1200 = vmatprep.mubr.f32.mxu0 0.0
      %1201 = vmatmul.mubr.f32.gmra.mrb[0].mxu0 %v475
      %v1202 = vpop.f32.mrb[0].mxu0
      %v1203 = vadd.f32 %v450, %v1202
      %v1204 = vpop.f32.mrb[0].mxu0
      %1205 = vmatprep.mubr.f32.mxu0 0.0
      %1206 = vmatmul.mubr.f32.gmra.mrb[0].mxu0 %v478
      %v1207 = vpop.f32.mrb[0].mxu0
      %v1208 = vadd.f32 %v450, %v1207
      %v1209 = vpop.f32.mrb[0].mxu0
      %1210 = vmatprep.mubr.f32.mxu0 0.0
      %1211 = vmatmul.mubr.f32.gmra.mrb[0].mxu0 %v481
      %v1212 = vpop.f32.mrb[0].mxu0
      %v1213 = vadd.f32 %v450, %v1212
      %v1214 = vpop.f32.mrb[0].mxu0
      %1215 = vmatprep.mubr.f32.mxu0 0.0
      %1216 = vmatmul.mubr.f32.gmra.mrb[0].mxu0 %v484
      %v1217 = vpop.f32.mrb[0].mxu0
      %v1218 = vadd.f32 %v450, %v1217
      %v1219 = vpop.f32.mrb[0].mxu0
      %1220 = vmatprep.mubr.f32.mxu0 0.0
      %1221 = vmatmul.mubr.f32.gmra.mrb[0].mxu0 %v487
      %v1222 = vpop.f32.mrb[0].mxu0
      %v1223 = vadd.f32 %v450, %v1222
      %v1224 = vpop.f32.mrb[0].mxu0
      %1225 = vmatprep.mubr.f32.mxu0 0.0
      %1226 = vmatmul.mubr.f32.gmra.mrb[0].mxu0 %v490
      %v1227 = vpop.f32.mrb[0].mxu0
      %v1228 = vadd.f32 %v450, %v1227
      %v1229 = vpop.f32.mrb[0].mxu0
      %1230 = vmatprep.mubr.f32.mxu0 0.0
      %1231 = vmatmul.mubr.f32.gmra.mrb[0].mxu0 %v493
      %v1232 = vpop.f32.mrb[0].mxu0
      %v1233 = vadd.f32 %v450, %v1232
      %v1234 = vpop.f32.mrb[0].mxu0
      %1235 = vmatprep.mubr.f32.mxu0 0.0
      %1236 = vmatmul.mubr.f32.gmra.mrb[0].mxu0 %v496
      %v1237 = vpop.f32.mrb[0].mxu0
      %v1238 = vadd.f32 %v450, %v1237
      %v1239 = vpop.f32.mrb[0].mxu0
      %1240 = vmatprep.mubr.f32.mxu0 0.0
      %1241 = vmatmul.mubr.f32.gmra.mrb[0].mxu0 %v499
      %v1242 = vpop.f32.mrb[0].mxu0
      %v1243 = vadd.f32 %v450, %v1242
      %v1244 = vpop.f32.mrb[0].mxu0
      %1245 = vmatprep.mubr.f32.mxu0 0.0
      %1246 = vmatmul.mubr.f32.gmra.mrb[0].mxu0 %v502
      %v1247 = vpop.f32.mrb[0].mxu0
      %v1248 = vadd.f32 %v450, %v1247
      %v1249 = vpop.f32.mrb[0].mxu0
      %1250 = vmatprep.mubr.f32.mxu0 0.0
      %1251 = vmatmul.mubr.f32.gmra.mrb[0].mxu0 %v505
      %v1252 = vpop.f32.mrb[0].mxu0
      %v1253 = vadd.f32 %v450, %v1252
      %v1254 = vpop.f32.mrb[0].mxu0
      %1255 = vmatprep.mubr.f32.mxu0 0.0
      %1256 = vmatmul.mubr.f32.gmra.mrb[0].mxu0 %v508
      %v1257 = vpop.f32.mrb[0].mxu0
      %v1258 = vadd.f32 %v450, %v1257
      %v1259 = vpop.f32.mrb[0].mxu0
      %1260 = vmatprep.mubr.f32.mxu0 0.0
      %1261 = vmatmul.mubr.f32.gmra.mrb[0].mxu0 %v511
      %v1262 = vpop.f32.mrb[0].mxu0
      %v1263 = vadd.f32 %v450, %v1262
      %v1264 = vpop.f32.mrb[0].mxu0
      %1265 = vmatprep.mubr.f32.mxu0 0.0
      %1266 = vmatmul.mubr.f32.gmra.mrb[0].mxu0 %v514
      %v1267 = vpop.f32.mrb[0].mxu0
      %v1268 = vpop.f32.mrb[0].mxu0
      %1269 = vmatprep.mubr.f32.mxu0 0.0
      %1270 = vmatmul.mubr.f32.gmra.mrb[0].mxu0 %v517
      %v1271 = vpop.f32.mrb[0].mxu0
      %v1272 = vpop.f32.mrb[0].mxu0
      %1273 = vmatprep.mubr.f32.mxu0 0.0
      %1274 = vmatmul.mubr.f32.gmra.mrb[0].mxu0 %v520
      %v1275 = vpop.f32.mrb[0].mxu0
      %v1276 = vpop.f32.mrb[0].mxu0
      %1277 = vmatprep.mubr.f32.mxu0 0.0
      %1278 = vmatmul.mubr.f32.gmra.mrb[0].mxu0 %v523
      %v1279 = vpop.f32.mrb[0].mxu0
      %v1280 = vpop.f32.mrb[0].mxu0
      %1281 = vmatprep.mubr.f32.mxu0 0.0
      %1282 = vmatmul.mubr.f32.gmra.mrb[0].mxu0 %v526
      %v1283 = vpop.f32.mrb[0].mxu0
      %v1284 = vadd.f32 %v450, %v1283
      %v1285 = vpop.f32.mrb[0].mxu0
      %1286 = vmatprep.mubr.f32.mxu0 0.0
      %1287 = vmatmul.mubr.f32.gmra.mrb[0].mxu0 %v529
      %v1288 = vpop.f32.mrb[0].mxu0
      %v1289 = vadd.f32 %v450, %v1288
      %v1290 = vpop.f32.mrb[0].mxu0
      %1291 = vmatprep.mubr.f32.mxu0 0.0
      %1292 = vmatmul.mubr.f32.gmra.mrb[0].mxu0 %v532
      %v1293 = vpop.f32.mrb[0].mxu0
      %v1294 = vadd.f32 %v450, %v1293
      %v1295 = vpop.f32.mrb[0].mxu0
      %1296 = vmatprep.mubr.f32.mxu0 0.0
      %1297 = vmatmul.mubr.f32.gmra.mrb[0].mxu0 %v535
      %v1298 = vpop.f32.mrb[0].mxu0
      %v1299 = vadd.f32 %v450, %v1298
      %v1300 = vpop.f32.mrb[0].mxu0
      %1301 = vmatprep.mubr.f32.mxu0 0.0
      %1302 = vmatmul.mubr.f32.gmra.mrb[0].mxu0 %v538
      %v1303 = vpop.f32.mrb[0].mxu0
      %v1304 = vadd.f32 %v450, %v1303
      %v1305 = vpop.f32.mrb[0].mxu0
      %1306 = vmatprep.mubr.f32.mxu0 0.0
      %1307 = vmatmul.mubr.f32.gmra.mrb[0].mxu0 %v541
      %v1308 = vpop.f32.mrb[0].mxu0
      %v1309 = vadd.f32 %v450, %v1308
      %v1310 = vpop.f32.mrb[0].mxu0
      %1311 = vmatprep.mubr.f32.mxu0 0.0
      %1312 = vmatmul.mubr.f32.gmra.mrb[0].mxu0 %v544
      %v1313 = vpop.f32.mrb[0].mxu0
      %v1314 = vadd.f32 %v450, %v1313
      %v1315 = vpop.f32.mrb[0].mxu0
      %1316 = vmatprep.mubr.f32.mxu0 0.0
      %1317 = vmatmul.mubr.f32.gmra.mrb[0].mxu0 %v547
      %v1318 = vpop.f32.mrb[0].mxu0
      %v1319 = vadd.f32 %v450, %v1318
      %v1320 = vpop.f32.mrb[0].mxu0
      %1321 = vmatprep.mubr.f32.mxu0 0.0
      %1322 = vmatmul.mubr.f32.gmra.mrb[0].mxu0 %v550
      %v1323 = vpop.f32.mrb[0].mxu0
      %v1324 = vadd.f32 %v450, %v1323
      %v1325 = vpop.f32.mrb[0].mxu0
      %1326 = vmatprep.mubr.f32.mxu0 0.0
      %1327 = vmatmul.mubr.f32.gmra.mrb[0].mxu0 %v553
      %v1328 = vpop.f32.mrb[0].mxu0
      %v1329 = vadd.f32 %v450, %v1328
      %v1330 = vpop.f32.mrb[0].mxu0
      %1331 = vmatprep.mubr.f32.mxu0 0.0
      %1332 = vmatmul.mubr.f32.gmra.mrb[0].mxu0 %v556
      %v1333 = vpop.f32.mrb[0].mxu0
      %v1334 = vadd.f32 %v450, %v1333
      %v1335 = vpop.f32.mrb[0].mxu0
      %1336 = vmatprep.mubr.f32.mxu0 0.0
      %1337 = vmatmul.mubr.f32.gmra.mrb[0].mxu0 %v559
      %v1338 = vpop.f32.mrb[0].mxu0
      %v1339 = vadd.f32 %v450, %v1338
      %v1340 = vpop.f32.mrb[0].mxu0
      %1341 = vmatprep.mubr.f32.mxu0 0.0
      %1342 = vmatmul.mubr.f32.gmra.mrb[0].mxu0 %v562
      %v1343 = vpop.f32.mrb[0].mxu0
      %v1344 = vadd.f32 %v450, %v1343
      %v1345 = vpop.f32.mrb[0].mxu0
      %1346 = vmatprep.mubr.f32.mxu0 0.0
      %1347 = vmatmul.mubr.f32.gmra.mrb[0].mxu0 %v565
      %v1348 = vpop.f32.mrb[0].mxu0
      %v1349 = vadd.f32 %v450, %v1348
      %v1350 = vpop.f32.mrb[0].mxu0
      %1351 = vmatprep.mubr.f32.mxu0 0.0
      %1352 = vmatmul.mubr.f32.gmra.mrb[0].mxu0 %v568
      %v1353 = vpop.f32.mrb[0].mxu0
      %v1354 = vadd.f32 %v450, %v1353
      %v1355 = vpop.f32.mrb[0].mxu0
      %1356 = vmatprep.mubr.f32.mxu0 0.0
      %1357 = vmatmul.mubr.f32.gmra.mrb[0].mxu0 %v571
      %v1358 = vpop.f32.mrb[0].mxu0
      %v1359 = vadd.f32 %v450, %v1358
      %v1360 = vpop.f32.mrb[0].mxu0
      %1361 = vmatprep.mubr.f32.mxu0 0.0
      %1362 = vmatmul.mubr.f32.gmra.mrb[0].mxu0 %v574
      %v1363 = vpop.f32.mrb[0].mxu0
      %v1364 = vadd.f32 %v450, %v1363
      %v1365 = vpop.f32.mrb[0].mxu0
      %1366 = vmatprep.mubr.f32.mxu0 0.0
      %1367 = vmatmul.mubr.f32.gmra.mrb[0].mxu0 %v577
      %v1368 = vpop.f32.mrb[0].mxu0
      %v1369 = vadd.f32 %v450, %v1368
      %v1370 = vpop.f32.mrb[0].mxu0
      %1371 = vmatprep.mubr.f32.mxu0 0.0
      %1372 = vmatmul.mubr.f32.gmra.mrb[0].mxu0 %v580
      %v1373 = vpop.f32.mrb[0].mxu0
      %v1374 = vadd.f32 %v450, %v1373
      %v1375 = vpop.f32.mrb[0].mxu0
      %1376 = vmatprep.mubr.f32.mxu0 0.0
      %1377 = vmatmul.mubr.f32.gmra.mrb[0].mxu0 %v583
      %v1378 = vpop.f32.mrb[0].mxu0
      %v1379 = vadd.f32 %v450, %v1378
      %v1380 = vpop.f32.mrb[0].mxu0
      %1381 = vmatprep.mubr.f32.mxu0 0.0
      %1382 = vmatmul.mubr.f32.gmra.mrb[0].mxu0 %v586
      %v1383 = vpop.f32.mrb[0].mxu0
      %v1384 = vpop.f32.mrb[0].mxu0
      %1385 = vmatprep.mubr.f32.mxu0 0.0
      %1386 = vmatmul.mubr.f32.gmra.mrb[0].mxu0 %v589
      %v1387 = vpop.f32.mrb[0].mxu0
      %v1388 = vpop.f32.mrb[0].mxu0
      %1389 = vmatprep.mubr.f32.mxu0 0.0
      %1390 = vmatmul.mubr.f32.gmra.mrb[0].mxu0 %v592
      %v1391 = vpop.f32.mrb[0].mxu0
      %v1392 = vpop.f32.mrb[0].mxu0
      %1393 = vmatprep.mubr.f32.mxu0 0.0
      %1394 = vmatmul.mubr.f32.gmra.mrb[0].mxu0 %v595
      %v1395 = vpop.f32.mrb[0].mxu0
      %v1396 = vpop.f32.mrb[0].mxu0
      %1397 = vmatprep.mubr.f32.mxu0 0.0
      %1398 = vmatmul.mubr.f32.gmra.mrb[0].mxu0 %v598
      %v1399 = vpop.f32.mrb[0].mxu0
      %v1400 = vadd.f32 %v450, %v1399
      %v1401 = vpop.f32.mrb[0].mxu0
      %1402 = vmatprep.mubr.f32.mxu0 0.0
      %1403 = vmatmul.mubr.f32.gmra.mrb[0].mxu0 %v601
      %v1404 = vpop.f32.mrb[0].mxu0
      %v1405 = vadd.f32 %v450, %v1404
      %v1406 = vpop.f32.mrb[0].mxu0
      %1407 = vmatprep.mubr.f32.mxu0 0.0
      %1408 = vmatmul.mubr.f32.gmra.mrb[0].mxu0 %v604
      %v1409 = vpop.f32.mrb[0].mxu0
      %v1410 = vadd.f32 %v450, %v1409
      %v1411 = vpop.f32.mrb[0].mxu0
      %1412 = vmatprep.mubr.f32.mxu0 0.0
      %1413 = vmatmul.mubr.f32.gmra.mrb[0].mxu0 %v607
      %v1414 = vpop.f32.mrb[0].mxu0
      %v1415 = vadd.f32 %v450, %v1414
      %v1416 = vpop.f32.mrb[0].mxu0
      %1417 = vmatprep.mubr.f32.mxu0 0.0
      %1418 = vmatmul.mubr.f32.gmra.mrb[0].mxu0 %v610
      %v1419 = vpop.f32.mrb[0].mxu0
      %v1420 = vadd.f32 %v450, %v1419
      %v1421 = vpop.f32.mrb[0].mxu0
      %1422 = vmatprep.mubr.f32.mxu0 0.0
      %1423 = vmatmul.mubr.f32.gmra.mrb[0].mxu0 %v613
      %v1424 = vpop.f32.mrb[0].mxu0
      %v1425 = vadd.f32 %v450, %v1424
      %v1426 = vpop.f32.mrb[0].mxu0
      %1427 = vmatprep.mubr.f32.mxu0 0.0
      %1428 = vmatmul.mubr.f32.gmra.mrb[0].mxu0 %v616
      %v1429 = vpop.f32.mrb[0].mxu0
      %v1430 = vadd.f32 %v450, %v1429
      %v1431 = vpop.f32.mrb[0].mxu0
      %1432 = vmatprep.mubr.f32.mxu0 0.0
      %1433 = vmatmul.mubr.f32.gmra.mrb[0].mxu0 %v619
      %v1434 = vpop.f32.mrb[0].mxu0
      %v1435 = vadd.f32 %v450, %v1434
      %v1436 = vpop.f32.mrb[0].mxu0
      %1437 = vmatprep.mubr.f32.mxu0 0.0
      %1438 = vmatmul.mubr.f32.gmra.mrb[0].mxu0 %v622
      %v1439 = vpop.f32.mrb[0].mxu0
      %v1440 = vadd.f32 %v450, %v1439
      %v1441 = vpop.f32.mrb[0].mxu0
      %1442 = vmatprep.mubr.f32.mxu0 0.0
      %1443 = vmatmul.mubr.f32.gmra.mrb[0].mxu0 %v625
      %v1444 = vpop.f32.mrb[0].mxu0
      %v1445 = vadd.f32 %v450, %v1444
      %v1446 = vpop.f32.mrb[0].mxu0
      %1447 = vmatprep.mubr.f32.mxu0 0.0
      %1448 = vmatmul.mubr.f32.gmra.mrb[0].mxu0 %v628
      %v1449 = vpop.f32.mrb[0].mxu0
      %v1450 = vadd.f32 %v450, %v1449
      %v1451 = vpop.f32.mrb[0].mxu0
      %1452 = vmatprep.mubr.f32.mxu0 0.0
      %1453 = vmatmul.mubr.f32.gmra.mrb[0].mxu0 %v631
      %v1454 = vpop.f32.mrb[0].mxu0
      %v1455 = vadd.f32 %v450, %v1454
      %v1456 = vpop.f32.mrb[0].mxu0
      %1457 = vmatprep.mubr.f32.mxu0 0.0
      %1458 = vmatmul.mubr.f32.gmra.mrb[0].mxu0 %v634
      %v1459 = vpop.f32.mrb[0].mxu0
      %v1460 = vadd.f32 %v450, %v1459
      %v1461 = vpop.f32.mrb[0].mxu0
      %1462 = vmatprep.mubr.f32.mxu0 0.0
      %1463 = vmatmul.mubr.f32.gmra.mrb[0].mxu0 %v637
      %v1464 = vpop.f32.mrb[0].mxu0
      %v1465 = vadd.f32 %v450, %v1464
      %v1466 = vpop.f32.mrb[0].mxu0
      %1467 = vmatprep.mubr.f32.mxu0 0.0
      %1468 = vmatmul.mubr.f32.gmra.mrb[0].mxu0 %v640
      %v1469 = vpop.f32.mrb[0].mxu0
      %v1470 = vadd.f32 %v450, %v1469
      %v1471 = vpop.f32.mrb[0].mxu0
      %1472 = vmatprep.mubr.f32.mxu0 0.0
      %1473 = vmatmul.mubr.f32.gmra.mrb[0].mxu0 %v643
      %v1474 = vpop.f32.mrb[0].mxu0
      %v1475 = vadd.f32 %v450, %v1474
      %v1476 = vpop.f32.mrb[0].mxu0
      %1477 = vmatprep.mubr.f32.mxu0 0.0
      %1478 = vmatmul.mubr.f32.gmra.mrb[0].mxu0 %v646
      %v1479 = vpop.f32.mrb[0].mxu0
      %v1480 = vadd.f32 %v450, %v1479
      %v1481 = vpop.f32.mrb[0].mxu0
      %1482 = vmatprep.mubr.f32.mxu0 0.0
      %1483 = vmatmul.mubr.f32.gmra.mrb[0].mxu0 %v649
      %v1484 = vpop.f32.mrb[0].mxu0
      %v1485 = vadd.f32 %v450, %v1484
      %v1486 = vpop.f32.mrb[0].mxu0
      %1487 = vmatprep.mubr.f32.mxu0 0.0
      %1488 = vmatmul.mubr.f32.gmra.mrb[0].mxu0 %v652
      %v1489 = vpop.f32.mrb[0].mxu0
      %v1490 = vadd.f32 %v450, %v1489
      %v1491 = vpop.f32.mrb[0].mxu0
      %1492 = vmatprep.mubr.f32.mxu0 0.0
      %1493 = vmatmul.mubr.f32.gmra.mrb[0].mxu0 %v655
      %v1494 = vpop.f32.mrb[0].mxu0
      %v1495 = vadd.f32 %v450, %v1494
      %v1496 = vpop.f32.mrb[0].mxu0
      %1497 = vmatprep.mubr.f32.mxu0 0.0
      %1498 = vmatmul.mubr.f32.gmra.mrb[0].mxu0 %v658
      %v1499 = vpop.f32.mrb[0].mxu0
      %v1500 = vpop.f32.mrb[0].mxu0
      %1501 = vmatprep.mubr.f32.mxu0 0.0
      %1502 = vmatmul.mubr.f32.gmra.mrb[0].mxu0 %v661
      %v1503 = vpop.f32.mrb[0].mxu0
      %v1504 = vpop.f32.mrb[0].mxu0
      %1505 = vmatprep.mubr.f32.mxu0 0.0
      %1506 = vmatmul.mubr.f32.gmra.mrb[0].mxu0 %v664
      %v1507 = vpop.f32.mrb[0].mxu0
      %v1508 = vpop.f32.mrb[0].mxu0
      %1509 = vmatprep.mubr.f32.mxu0 0.0
      %1510 = vmatmul.mubr.f32.gmra.mrb[0].mxu0 %v667
      %v1511 = vpop.f32.mrb[0].mxu0
      %v1512 = vpop.f32.mrb[0].mxu0
      %1513 = vmatprep.mubr.f32.mxu0 0.0
      %1514 = vmatmul.mubr.f32.gmra.mrb[0].mxu0 %v670
      %v1515 = vpop.f32.mrb[0].mxu0
      %v1516 = vadd.f32 %v450, %v1515
      %v1517 = vpop.f32.mrb[0].mxu0
      %1518 = vmatprep.mubr.f32.mxu0 0.0
      %1519 = vmatmul.mubr.f32.gmra.mrb[0].mxu0 %v673
      %v1520 = vpop.f32.mrb[0].mxu0
      %v1521 = vadd.f32 %v450, %v1520
      %v1522 = vpop.f32.mrb[0].mxu0
      %1523 = vmatprep.mubr.f32.mxu0 0.0
      %1524 = vmatmul.mubr.f32.gmra.mrb[0].mxu0 %v676
      %v1525 = vpop.f32.mrb[0].mxu0
      %v1526 = vadd.f32 %v450, %v1525
      %v1527 = vpop.f32.mrb[0].mxu0
      %1528 = vmatprep.mubr.f32.mxu0 0.0
      %1529 = vmatmul.mubr.f32.gmra.mrb[0].mxu0 %v679
      %v1530 = vpop.f32.mrb[0].mxu0
      %v1531 = vadd.f32 %v450, %v1530
      %v1532 = vpop.f32.mrb[0].mxu0
      %1533 = vmatprep.mubr.f32.mxu0 0.0
      %1534 = vmatmul.mubr.f32.gmra.mrb[0].mxu0 %v682
      %v1535 = vpop.f32.mrb[0].mxu0
      %v1536 = vadd.f32 %v450, %v1535
      %v1537 = vpop.f32.mrb[0].mxu0
      %1538 = vmatprep.mubr.f32.mxu0 0.0
      %1539 = vmatmul.mubr.f32.gmra.mrb[0].mxu0 %v685
      %v1540 = vpop.f32.mrb[0].mxu0
      %v1541 = vadd.f32 %v450, %v1540
      %v1542 = vpop.f32.mrb[0].mxu0
      %1543 = vmatprep.mubr.f32.mxu0 0.0
      %1544 = vmatmul.mubr.f32.gmra.mrb[0].mxu0 %v688
      %v1545 = vpop.f32.mrb[0].mxu0
      %v1546 = vadd.f32 %v450, %v1545
      %v1547 = vpop.f32.mrb[0].mxu0
      %1548 = vmatprep.mubr.f32.mxu0 0.0
      %1549 = vmatmul.mubr.f32.gmra.mrb[0].mxu0 %v691
      %v1550 = vpop.f32.mrb[0].mxu0
      %v1551 = vadd.f32 %v450, %v1550
      %v1552 = vpop.f32.mrb[0].mxu0
      %1553 = vmatprep.mubr.f32.mxu0 0.0
      %1554 = vmatmul.mubr.f32.gmra.mrb[0].mxu0 %v694
      %v1555 = vpop.f32.mrb[0].mxu0
      %v1556 = vadd.f32 %v450, %v1555
      %v1557 = vpop.f32.mrb[0].mxu0
      %1558 = vmatprep.mubr.f32.mxu0 0.0
      %1559 = vmatmul.mubr.f32.gmra.mrb[0].mxu0 %v697
      %v1560 = vpop.f32.mrb[0].mxu0
      %v1561 = vadd.f32 %v450, %v1560
      %v1562 = vpop.f32.mrb[0].mxu0
      %1563 = vmatprep.mubr.f32.mxu0 0.0
      %1564 = vmatmul.mubr.f32.gmra.mrb[0].mxu0 %v700
      %v1565 = vpop.f32.mrb[0].mxu0
      %v1566 = vadd.f32 %v450, %v1565
      %v1567 = vpop.f32.mrb[0].mxu0
      %1568 = vmatprep.mubr.f32.mxu0 0.0
      %1569 = vmatmul.mubr.f32.gmra.mrb[0].mxu0 %v703
      %v1570 = vpop.f32.mrb[0].mxu0
      %v1571 = vadd.f32 %v450, %v1570
      %v1572 = vpop.f32.mrb[0].mxu0
      %1573 = vmatprep.mubr.f32.mxu0 0.0
      %1574 = vmatmul.mubr.f32.gmra.mrb[0].mxu0 %v706
      %v1575 = vpop.f32.mrb[0].mxu0
      %v1576 = vadd.f32 %v450, %v1575
      %v1577 = vpop.f32.mrb[0].mxu0
      %1578 = vmatprep.mubr.f32.mxu0 0.0
      %1579 = vmatmul.mubr.f32.gmra.mrb[0].mxu0 %v709
      %v1580 = vpop.f32.mrb[0].mxu0
      %v1581 = vadd.f32 %v450, %v1580
      %v1582 = vpop.f32.mrb[0].mxu0
      %1583 = vmatprep.mubr.f32.mxu0 0.0
      %1584 = vmatmul.mubr.f32.gmra.mrb[0].mxu0 %v712
      %v1585 = vpop.f32.mrb[0].mxu0
      %v1586 = vadd.f32 %v450, %v1585
      %v1587 = vpop.f32.mrb[0].mxu0
      %1588 = vmatprep.mubr.f32.mxu0 0.0
      %1589 = vmatmul.mubr.f32.gmra.mrb[0].mxu0 %v715
      %v1590 = vpop.f32.mrb[0].mxu0
      %v1591 = vadd.f32 %v450, %v1590
      %v1592 = vpop.f32.mrb[0].mxu0
      %1593 = vmatprep.mubr.f32.mxu0 0.0
      %1594 = vmatmul.mubr.f32.gmra.mrb[0].mxu0 %v718
      %v1595 = vpop.f32.mrb[0].mxu0
      %v1596 = vadd.f32 %v450, %v1595
      %v1597 = vpop.f32.mrb[0].mxu0
      %1598 = vmatprep.mubr.f32.mxu0 0.0
      %1599 = vmatmul.mubr.f32.gmra.mrb[0].mxu0 %v721
      %v1600 = vpop.f32.mrb[0].mxu0
      %v1601 = vadd.f32 %v450, %v1600
      %v1602 = vpop.f32.mrb[0].mxu0
      %1603 = vmatprep.mubr.f32.mxu0 0.0
      %1604 = vmatmul.mubr.f32.gmra.mrb[0].mxu0 %v724
      %v1605 = vpop.f32.mrb[0].mxu0
      %v1606 = vadd.f32 %v450, %v1605
      %v1607 = vpop.f32.mrb[0].mxu0
      %1608 = vmatprep.mubr.f32.mxu0 0.0
      %1609 = vmatmul.mubr.f32.gmra.mrb[0].mxu0 %v727
      %v1610 = vpop.f32.mrb[0].mxu0
      %v1611 = vadd.f32 %v450, %v1610
      %v1612 = vpop.f32.mrb[0].mxu0
      %1613 = vmatprep.mubr.f32.mxu0 0.0
      %1614 = vmatmul.mubr.f32.gmra.mrb[0].mxu0 %v730
      %v1615 = vpop.f32.mrb[0].mxu0
      %v1616 = vpop.f32.mrb[0].mxu0
      %1617 = vmatprep.mubr.f32.mxu0 0.0
      %1618 = vmatmul.mubr.f32.gmra.mrb[0].mxu0 %v733
      %v1619 = vpop.f32.mrb[0].mxu0
      %v1620 = vpop.f32.mrb[0].mxu0
      %1621 = vmatprep.mubr.f32.mxu0 0.0
      %1622 = vmatmul.mubr.f32.gmra.mrb[0].mxu0 %v736
      %v1623 = vpop.f32.mrb[0].mxu0
      %v1624 = vpop.f32.mrb[0].mxu0
      %1625 = vmatprep.mubr.f32.mxu0 0.0
      %1626 = vmatmul.mubr.f32.gmra.mrb[0].mxu0 %v739
      %v1627 = vpop.f32.mrb[0].mxu0
      %v1628 = vpop.f32.mrb[0].mxu0
      %1629 = vmatprep.mubr.f32.mxu0 0.0
      %1630 = vmatmul.mubr.f32.gmra.mrb[0].mxu0 %v742
      %v1631 = vpop.f32.mrb[0].mxu0
      %v1632 = vadd.f32 %v450, %v1631
      %v1633 = vpop.f32.mrb[0].mxu0
      %1634 = vmatprep.mubr.f32.mxu0 0.0
      %1635 = vmatmul.mubr.f32.gmra.mrb[0].mxu0 %v745
      %v1636 = vpop.f32.mrb[0].mxu0
      %v1637 = vadd.f32 %v450, %v1636
      %v1638 = vpop.f32.mrb[0].mxu0
      %1639 = vmatprep.mubr.f32.mxu0 0.0
      %1640 = vmatmul.mubr.f32.gmra.mrb[0].mxu0 %v748
      %v1641 = vpop.f32.mrb[0].mxu0
      %v1642 = vadd.f32 %v450, %v1641
      %v1643 = vpop.f32.mrb[0].mxu0
      %1644 = vmatprep.mubr.f32.mxu0 0.0
      %1645 = vmatmul.mubr.f32.gmra.mrb[0].mxu0 %v751
      %v1646 = vpop.f32.mrb[0].mxu0
      %v1647 = vadd.f32 %v450, %v1646
      %v1648 = vpop.f32.mrb[0].mxu0
      %1649 = vmatprep.mubr.f32.mxu0 0.0
      %1650 = vmatmul.mubr.f32.gmra.mrb[0].mxu0 %v754
      %v1651 = vpop.f32.mrb[0].mxu0
      %v1652 = vadd.f32 %v450, %v1651
      %v1653 = vpop.f32.mrb[0].mxu0
      %1654 = vmatprep.mubr.f32.mxu0 0.0
      %1655 = vmatmul.mubr.f32.gmra.mrb[0].mxu0 %v757
      %v1656 = vpop.f32.mrb[0].mxu0
      %v1657 = vadd.f32 %v450, %v1656
      %v1658 = vpop.f32.mrb[0].mxu0
      %1659 = vmatprep.mubr.f32.mxu0 0.0
      %1660 = vmatmul.mubr.f32.gmra.mrb[0].mxu0 %v760
      %v1661 = vpop.f32.mrb[0].mxu0
      %v1662 = vadd.f32 %v450, %v1661
      %v1663 = vpop.f32.mrb[0].mxu0
      %1664 = vmatprep.mubr.f32.mxu0 0.0
      %1665 = vmatmul.mubr.f32.gmra.mrb[0].mxu0 %v763
      %v1666 = vpop.f32.mrb[0].mxu0
      %v1667 = vadd.f32 %v450, %v1666
      %v1668 = vpop.f32.mrb[0].mxu0
      %1669 = vmatprep.mubr.f32.mxu0 0.0
      %1670 = vmatmul.mubr.f32.gmra.mrb[0].mxu0 %v766
      %v1671 = vpop.f32.mrb[0].mxu0
      %v1672 = vadd.f32 %v450, %v1671
      %v1673 = vpop.f32.mrb[0].mxu0
      %1674 = vmatprep.mubr.f32.mxu0 0.0
      %1675 = vmatmul.mubr.f32.gmra.mrb[0].mxu0 %v769
      %v1676 = vpop.f32.mrb[0].mxu0
      %v1677 = vadd.f32 %v450, %v1676
      %v1678 = vpop.f32.mrb[0].mxu0
      %1679 = vmatprep.mubr.f32.mxu0 0.0
      %1680 = vmatmul.mubr.f32.gmra.mrb[0].mxu0 %v772
      %v1681 = vpop.f32.mrb[0].mxu0
      %v1682 = vadd.f32 %v450, %v1681
      %v1683 = vpop.f32.mrb[0].mxu0
      %1684 = vmatprep.mubr.f32.mxu0 0.0
      %1685 = vmatmul.mubr.f32.gmra.mrb[0].mxu0 %v775
      %v1686 = vpop.f32.mrb[0].mxu0
      %v1687 = vadd.f32 %v450, %v1686
      %v1688 = vpop.f32.mrb[0].mxu0
      %1689 = vmatprep.mubr.f32.mxu0 0.0
      %1690 = vmatmul.mubr.f32.gmra.mrb[0].mxu0 %v778
      %v1691 = vpop.f32.mrb[0].mxu0
      %v1692 = vadd.f32 %v450, %v1691
      %v1693 = vpop.f32.mrb[0].mxu0
      %1694 = vmatprep.mubr.f32.mxu0 0.0
      %1695 = vmatmul.mubr.f32.gmra.mrb[0].mxu0 %v781
      %v1696 = vpop.f32.mrb[0].mxu0
      %v1697 = vadd.f32 %v450, %v1696
      %v1698 = vpop.f32.mrb[0].mxu0
      %1699 = vmatprep.mubr.f32.mxu0 0.0
      %1700 = vmatmul.mubr.f32.gmra.mrb[0].mxu0 %v784
      %v1701 = vpop.f32.mrb[0].mxu0
      %v1702 = vadd.f32 %v450, %v1701
      %v1703 = vpop.f32.mrb[0].mxu0
      %1704 = vmatprep.mubr.f32.mxu0 0.0
      %1705 = vmatmul.mubr.f32.gmra.mrb[0].mxu0 %v787
      %v1706 = vpop.f32.mrb[0].mxu0
      %v1707 = vadd.f32 %v450, %v1706
      %v1708 = vpop.f32.mrb[0].mxu0
      %1709 = vmatprep.mubr.f32.mxu0 0.0
      %1710 = vmatmul.mubr.f32.gmra.mrb[0].mxu0 %v790
      %v1711 = vpop.f32.mrb[0].mxu0
      %v1712 = vadd.f32 %v450, %v1711
      %v1713 = vpop.f32.mrb[0].mxu0
      %1714 = vmatprep.mubr.f32.mxu0 0.0
      %1715 = vmatmul.mubr.f32.gmra.mrb[0].mxu0 %v793
      %v1716 = vpop.f32.mrb[0].mxu0
      %v1717 = vadd.f32 %v450, %v1716
      %v1718 = vpop.f32.mrb[0].mxu0
      %1719 = vmatprep.mubr.f32.mxu0 0.0
      %1720 = vmatmul.mubr.f32.gmra.mrb[0].mxu0 %v796
      %v1721 = vpop.f32.mrb[0].mxu0
      %v1722 = vadd.f32 %v450, %v1721
      %v1723 = vpop.f32.mrb[0].mxu0
      %1724 = vmatprep.mubr.f32.mxu0 0.0
      %1725 = vmatmul.mubr.f32.gmra.mrb[0].mxu0 %v799
      %v1726 = vpop.f32.mrb[0].mxu0
      %v1727 = vadd.f32 %v450, %v1726
      %v1728 = vpop.f32.mrb[0].mxu0
      %1729 = vmatprep.mubr.f32.mxu0 0.0
      %1730 = vmatmul.mubr.f32.gmra.mrb[0].mxu0 %v802
      %v1731 = vpop.f32.mrb[0].mxu0
      %v1732 = vpop.f32.mrb[0].mxu0
      %1733 = vmatprep.mubr.f32.mxu0 0.0
      %1734 = vmatmul.mubr.f32.gmra.mrb[0].mxu0 %v805
      %v1735 = vpop.f32.mrb[0].mxu0
      %v1736 = vpop.f32.mrb[0].mxu0
      %1737 = vmatprep.mubr.f32.mxu0 0.0
      %1738 = vmatmul.mubr.f32.gmra.mrb[0].mxu0 %v808
      %v1739 = vpop.f32.mrb[0].mxu0
      %v1740 = vpop.f32.mrb[0].mxu0
      %1741 = vmatprep.mubr.f32.mxu0 0.0
      %1742 = vmatmul.mubr.f32.gmra.mrb[0].mxu0 %v811
      %v1743 = vpop.f32.mrb[0].mxu0
      %v1744 = vpop.f32.mrb[0].mxu0
      %1745 = vmatprep.mubr.f32.mxu0 0.0
      %1746 = vmatmul.mubr.f32.gmra.mrb[0].mxu0 %v814
      %v1747 = vpop.f32.mrb[0].mxu0
      %v1748 = vadd.f32 %v450, %v1747
      %v1749 = vpop.f32.mrb[0].mxu0
      %1750 = vmatprep.mubr.f32.mxu0 0.0
      %1751 = vmatmul.mubr.f32.gmra.mrb[0].mxu0 %v817
      %v1752 = vpop.f32.mrb[0].mxu0
      %v1753 = vadd.f32 %v450, %v1752
      %v1754 = vpop.f32.mrb[0].mxu0
      %1755 = vmatprep.mubr.f32.mxu0 0.0
      %1756 = vmatmul.mubr.f32.gmra.mrb[0].mxu0 %v820
      %v1757 = vpop.f32.mrb[0].mxu0
      %v1758 = vadd.f32 %v450, %v1757
      %v1759 = vpop.f32.mrb[0].mxu0
      %1760 = vmatprep.mubr.f32.mxu0 0.0
      %1761 = vmatmul.mubr.f32.gmra.mrb[0].mxu0 %v823
      %v1762 = vpop.f32.mrb[0].mxu0
      %v1763 = vadd.f32 %v450, %v1762
      %v1764 = vpop.f32.mrb[0].mxu0
      %1765 = vmatprep.mubr.f32.mxu0 0.0
      %1766 = vmatmul.mubr.f32.gmra.mrb[0].mxu0 %v826
      %v1767 = vpop.f32.mrb[0].mxu0
      %v1768 = vadd.f32 %v450, %v1767
      %v1769 = vpop.f32.mrb[0].mxu0
      %1770 = vmatprep.mubr.f32.mxu0 0.0
      %1771 = vmatmul.mubr.f32.gmra.mrb[0].mxu0 %v829
      %v1772 = vpop.f32.mrb[0].mxu0
      %v1773 = vadd.f32 %v450, %v1772
      %v1774 = vpop.f32.mrb[0].mxu0
      %1775 = vmatprep.mubr.f32.mxu0 0.0
      %1776 = vmatmul.mubr.f32.gmra.mrb[0].mxu0 %v832
      %v1777 = vpop.f32.mrb[0].mxu0
      %v1778 = vadd.f32 %v450, %v1777
      %v1779 = vpop.f32.mrb[0].mxu0
      %1780 = vmatprep.mubr.f32.mxu0 0.0
      %1781 = vmatmul.mubr.f32.gmra.mrb[0].mxu0 %v835
      %v1782 = vpop.f32.mrb[0].mxu0
      %v1783 = vadd.f32 %v450, %v1782
      %v1784 = vpop.f32.mrb[0].mxu0
      %1785 = vmatprep.mubr.f32.mxu0 0.0
      %1786 = vmatmul.mubr.f32.gmra.mrb[0].mxu0 %v838
      %v1787 = vpop.f32.mrb[0].mxu0
      %v1788 = vadd.f32 %v450, %v1787
      %v1789 = vpop.f32.mrb[0].mxu0
      %1790 = vmatprep.mubr.f32.mxu0 0.0
      %1791 = vmatmul.mubr.f32.gmra.mrb[0].mxu0 %v841
      %v1792 = vpop.f32.mrb[0].mxu0
      %v1793 = vadd.f32 %v450, %v1792
      %v1794 = vpop.f32.mrb[0].mxu0
      %1795 = vmatprep.mubr.f32.mxu0 0.0
      %1796 = vmatmul.mubr.f32.gmra.mrb[0].mxu0 %v844
      %v1797 = vpop.f32.mrb[0].mxu0
      %v1798 = vadd.f32 %v450, %v1797
      %v1799 = vpop.f32.mrb[0].mxu0
      %1800 = vmatprep.mubr.f32.mxu0 0.0
      %1801 = vmatmul.mubr.f32.gmra.mrb[0].mxu0 %v847
      %v1802 = vpop.f32.mrb[0].mxu0
      %v1803 = vadd.f32 %v450, %v1802
      %v1804 = vpop.f32.mrb[0].mxu0
      %1805 = vmatprep.mubr.f32.mxu0 0.0
      %1806 = vmatmul.mubr.f32.gmra.mrb[0].mxu0 %v850
      %v1807 = vpop.f32.mrb[0].mxu0
      %v1808 = vadd.f32 %v450, %v1807
      %v1809 = vpop.f32.mrb[0].mxu0
      %1810 = vmatprep.mubr.f32.mxu0 0.0
      %1811 = vmatmul.mubr.f32.gmra.mrb[0].mxu0 %v853
      %v1812 = vpop.f32.mrb[0].mxu0
      %v1813 = vadd.f32 %v450, %v1812
      %v1814 = vpop.f32.mrb[0].mxu0
      %1815 = vmatprep.mubr.f32.mxu0 0.0
      %1816 = vmatmul.mubr.f32.gmra.mrb[0].mxu0 %v856
      %v1817 = vpop.f32.mrb[0].mxu0
      %v1818 = vadd.f32 %v450, %v1817
      %v1819 = vpop.f32.mrb[0].mxu0
      %1820 = vmatprep.mubr.f32.mxu0 0.0
      %1821 = vmatmul.mubr.f32.gmra.mrb[0].mxu0 %v859
      %v1822 = vpop.f32.mrb[0].mxu0
      %v1823 = vadd.f32 %v450, %v1822
      %v1824 = vpop.f32.mrb[0].mxu0
      %1825 = vmatprep.mubr.f32.mxu0 0.0
      %1826 = vmatmul.mubr.f32.gmra.mrb[0].mxu0 %v862
      %v1827 = vpop.f32.mrb[0].mxu0
      %v1828 = vadd.f32 %v450, %v1827
      %v1829 = vpop.f32.mrb[0].mxu0
      %1830 = vmatprep.mubr.f32.mxu0 0.0
      %1831 = vmatmul.mubr.f32.gmra.mrb[0].mxu0 %v865
      %v1832 = vpop.f32.mrb[0].mxu0
      %v1833 = vadd.f32 %v450, %v1832
      %v1834 = vpop.f32.mrb[0].mxu0
      %1835 = vmatprep.mubr.f32.mxu0 0.0
      %1836 = vmatmul.mubr.f32.gmra.mrb[0].mxu0 %v868
      %v1837 = vpop.f32.mrb[0].mxu0
      %v1838 = vadd.f32 %v450, %v1837
      %v1839 = vpop.f32.mrb[0].mxu0
      %1840 = vmatprep.mubr.f32.mxu0 0.0
      %1841 = vmatmul.mubr.f32.gmra.mrb[0].mxu0 %v871
      %v1842 = vpop.f32.mrb[0].mxu0
      %v1843 = vadd.f32 %v450, %v1842
      %v1844 = vpop.f32.mrb[0].mxu0
      %1845 = vmatprep.mubr.f32.mxu0 0.0
      %1846 = vmatmul.mubr.f32.gmra.mrb[0].mxu0 %v874
      %v1847 = vpop.f32.mrb[0].mxu0
      %v1848 = vpop.f32.mrb[0].mxu0
      %1849 = vmatprep.mubr.f32.mxu0 0.0
      %1850 = vmatmul.mubr.f32.gmra.mrb[0].mxu0 %v877
      %v1851 = vpop.f32.mrb[0].mxu0
      %v1852 = vpop.f32.mrb[0].mxu0
      %1853 = vmatprep.mubr.f32.mxu0 0.0
      %1854 = vmatmul.mubr.f32.gmra.mrb[0].mxu0 %v880
      %v1855 = vpop.f32.mrb[0].mxu0
      %v1856 = vpop.f32.mrb[0].mxu0
      %1857 = vmatprep.mubr.f32.mxu0 0.0
      %1858 = vmatmul.mubr.f32.gmra.mrb[0].mxu0 %v883
      %v1859 = vpop.f32.mrb[0].mxu0
      %v1860 = vpop.f32.mrb[0].mxu0
      %1861 = vmatprep.mubr.f32.mxu0 0.0
      %1862 = vmatmul.mubr.f32.gmra.mrb[0].mxu0 %v886
      %v1863 = vpop.f32.mrb[0].mxu0
      %v1864 = vadd.f32 %v450, %v1863
      %v1865 = vpop.f32.mrb[0].mxu0
      %1866 = vmatprep.mubr.f32.mxu0 0.0
      %1867 = vmatmul.mubr.f32.gmra.mrb[0].mxu0 %v889
      %v1868 = vpop.f32.mrb[0].mxu0
      %v1869 = vadd.f32 %v450, %v1868
      %v1870 = vpop.f32.mrb[0].mxu0
      %1871 = vmatprep.mubr.f32.mxu0 0.0
      %1872 = vmatmul.mubr.f32.gmra.mrb[0].mxu0 %v892
      %v1873 = vpop.f32.mrb[0].mxu0
      %v1874 = vadd.f32 %v450, %v1873
      %v1875 = vpop.f32.mrb[0].mxu0
      %1876 = vmatprep.mubr.f32.mxu0 0.0
      %1877 = vmatmul.mubr.f32.gmra.mrb[0].mxu0 %v895
      %v1878 = vpop.f32.mrb[0].mxu0
      %v1879 = vadd.f32 %v450, %v1878
      %v1880 = vpop.f32.mrb[0].mxu0
      %1881 = vmatprep.mubr.f32.mxu0 0.0
      %1882 = vmatmul.mubr.f32.gmra.mrb[0].mxu0 %v898
      %v1883 = vpop.f32.mrb[0].mxu0
      %v1884 = vadd.f32 %v450, %v1883
      %v1885 = vpop.f32.mrb[0].mxu0
      %1886 = vmatprep.mubr.f32.mxu0 0.0
      %1887 = vmatmul.mubr.f32.gmra.mrb[0].mxu0 %v901
      %v1888 = vpop.f32.mrb[0].mxu0
      %v1889 = vadd.f32 %v450, %v1888
      %v1890 = vpop.f32.mrb[0].mxu0
      %1891 = vmatprep.mubr.f32.mxu0 0.0
      %1892 = vmatmul.mubr.f32.gmra.mrb[0].mxu0 %v904
      %v1893 = vpop.f32.mrb[0].mxu0
      %v1894 = vadd.f32 %v450, %v1893
      %v1895 = vpop.f32.mrb[0].mxu0
      %1896 = vmatprep.mubr.f32.mxu0 0.0
      %1897 = vmatmul.mubr.f32.gmra.mrb[0].mxu0 %v907
      %v1898 = vpop.f32.mrb[0].mxu0
      %v1899 = vadd.f32 %v450, %v1898
      %v1900 = vpop.f32.mrb[0].mxu0
      %1901 = vmatprep.mubr.f32.mxu0 0.0
      %1902 = vmatmul.mubr.f32.gmra.mrb[0].mxu0 %v910
      %v1903 = vpop.f32.mrb[0].mxu0
      %v1904 = vadd.f32 %v450, %v1903
      %v1905 = vpop.f32.mrb[0].mxu0
      %1906 = vmatprep.mubr.f32.mxu0 0.0
      %1907 = vmatmul.mubr.f32.gmra.mrb[0].mxu0 %v913
      %v1908 = vpop.f32.mrb[0].mxu0
      %v1909 = vadd.f32 %v450, %v1908
      %v1910 = vpop.f32.mrb[0].mxu0
      %1911 = vmatprep.mubr.f32.mxu0 0.0
      %1912 = vmatmul.mubr.f32.gmra.mrb[0].mxu0 %v916
      %v1913 = vpop.f32.mrb[0].mxu0
      %v1914 = vadd.f32 %v450, %v1913
      %v1915 = vpop.f32.mrb[0].mxu0
      %1916 = vmatprep.mubr.f32.mxu0 0.0
      %1917 = vmatmul.mubr.f32.gmra.mrb[0].mxu0 %v919
      %v1918 = vpop.f32.mrb[0].mxu0
      %v1919 = vadd.f32 %v450, %v1918
      %v1920 = vpop.f32.mrb[0].mxu0
      %1921 = vmatprep.mubr.f32.mxu0 0.0
      %1922 = vmatmul.mubr.f32.gmra.mrb[0].mxu0 %v922
      %v1923 = vpop.f32.mrb[0].mxu0
      %v1924 = vadd.f32 %v450, %v1923
      %v1925 = vpop.f32.mrb[0].mxu0
      %1926 = vmatprep.mubr.f32.mxu0 0.0
      %1927 = vmatmul.mubr.f32.gmra.mrb[0].mxu0 %v925
      %v1928 = vpop.f32.mrb[0].mxu0
      %v1929 = vadd.f32 %v450, %v1928
      %v1930 = vpop.f32.mrb[0].mxu0
      %1931 = vmatprep.mubr.f32.mxu0 0.0
      %1932 = vmatmul.mubr.f32.gmra.mrb[0].mxu0 %v928
      %v1933 = vpop.f32.mrb[0].mxu0
      %v1934 = vadd.f32 %v450, %v1933
      %v1935 = vpop.f32.mrb[0].mxu0
      %1936 = vmatprep.mubr.f32.mxu0 0.0
      %1937 = vmatmul.mubr.f32.gmra.mrb[0].mxu0 %v931
      %v1938 = vpop.f32.mrb[0].mxu0
      %v1939 = vadd.f32 %v450, %v1938
      %v1940 = vpop.f32.mrb[0].mxu0
      %1941 = vmatprep.mubr.f32.mxu0 0.0
      %1942 = vmatmul.mubr.f32.gmra.mrb[0].mxu0 %v934
      %v1943 = vpop.f32.mrb[0].mxu0
      %v1944 = vadd.f32 %v450, %v1943
      %v1945 = vpop.f32.mrb[0].mxu0
      %1946 = vmatprep.mubr.f32.mxu0 0.0
      %1947 = vmatmul.mubr.f32.gmra.mrb[0].mxu0 %v937
      %v1948 = vpop.f32.mrb[0].mxu0
      %v1949 = vadd.f32 %v450, %v1948
      %v1950 = vpop.f32.mrb[0].mxu0
      %1951 = vmatprep.mubr.f32.mxu0 0.0
      %1952 = vmatmul.mubr.f32.gmra.mrb[0].mxu0 %v940
      %v1953 = vpop.f32.mrb[0].mxu0
      %v1954 = vadd.f32 %v450, %v1953
      %v1955 = vpop.f32.mrb[0].mxu0
      %1956 = vmatprep.mubr.f32.mxu0 0.0
      %1957 = vmatmul.mubr.f32.gmra.mrb[0].mxu0 %v943
      %v1958 = vpop.f32.mrb[0].mxu0
      %v1959 = vadd.f32 %v450, %v1958
      %v1960 = vpop.f32.mrb[0].mxu0
      %1961 = vmatprep.mubr.f32.mxu0 0.0
      %1962 = vmatmul.mubr.f32.gmra.mrb[0].mxu0 %v946
      %v1963 = vpop.f32.mrb[0].mxu0
      %v1964 = vpop.f32.mrb[0].mxu0
      %1965 = vmatprep.mubr.f32.mxu0 0.0
      %1966 = vmatmul.mubr.f32.gmra.mrb[0].mxu0 %v949
      %v1967 = vpop.f32.mrb[0].mxu0
      %v1968 = vpop.f32.mrb[0].mxu0
      %1969 = vmatprep.mubr.f32.mxu0 0.0
      %1970 = vmatmul.mubr.f32.gmra.mrb[0].mxu0 %v952
      %v1971 = vpop.f32.mrb[0].mxu0
      %v1972 = vpop.f32.mrb[0].mxu0
      %1973 = vmatprep.mubr.f32.mxu0 0.0
      %1974 = vmatmul.mubr.f32.gmra.mrb[0].mxu0 %v955
      %v1975 = vpop.f32.mrb[0].mxu0
      %v1976 = vpop.f32.mrb[0].mxu0
      %1977 = vmatprep.mubr.f32.mxu0 0.0
      %1978 = vmatmul.mubr.f32.gmra.mrb[0].mxu0 %v958
      %v1979 = vpop.f32.mrb[0].mxu0
      %v1980 = vadd.f32 %v450, %v1979
      %v1981 = vpop.f32.mrb[0].mxu0
      %1982 = vmatprep.mubr.f32.mxu0 0.0
      %1983 = vmatmul.mubr.f32.gmra.mrb[0].mxu0 %v961
      %v1984 = vpop.f32.mrb[0].mxu0
      %v1985 = vadd.f32 %v450, %v1984
      %v1986 = vpop.f32.mrb[0].mxu0
      %1987 = vmatprep.mubr.f32.mxu0 0.0
      %1988 = vmatmul.mubr.f32.gmra.mrb[0].mxu0 %v964
      %v1989 = vpop.f32.mrb[0].mxu0
      %v1990 = vadd.f32 %v450, %v1989
      %v1991 = vpop.f32.mrb[0].mxu0
      %1992 = vmatprep.mubr.f32.mxu0 0.0
      %1993 = vmatmul.mubr.f32.gmra.mrb[0].mxu0 %v967
      %v1994 = vpop.f32.mrb[0].mxu0
      %v1995 = vadd.f32 %v450, %v1994
      %v1996 = vpop.f32.mrb[0].mxu0
      %1997 = vmatprep.mubr.f32.mxu0 0.0
      %1998 = vmatmul.mubr.f32.gmra.mrb[0].mxu0 %v970
      %v1999 = vpop.f32.mrb[0].mxu0
      %v2000 = vadd.f32 %v450, %v1999
      %v2001 = vpop.f32.mrb[0].mxu0
      %2002 = vmatprep.mubr.f32.mxu0 0.0
      %2003 = vmatmul.mubr.f32.gmra.mrb[0].mxu0 %v973
      %v2004 = vpop.f32.mrb[0].mxu0
      %v2005 = vadd.f32 %v450, %v2004
      %v2006 = vpop.f32.mrb[0].mxu0
      %2007 = vmatprep.mubr.f32.mxu0 0.0
      %2008 = vmatmul.mubr.f32.gmra.mrb[0].mxu0 %v976
      %v2009 = vpop.f32.mrb[0].mxu0
      %v2010 = vadd.f32 %v450, %v2009
      %v2011 = vpop.f32.mrb[0].mxu0
      %2012 = vmatprep.mubr.f32.mxu0 0.0
      %2013 = vmatmul.mubr.f32.gmra.mrb[0].mxu0 %v979
      %v2014 = vpop.f32.mrb[0].mxu0
      %v2015 = vadd.f32 %v450, %v2014
      %v2016 = vpop.f32.mrb[0].mxu0
      %2017 = vmatprep.mubr.f32.mxu0 0.0
      %2018 = vmatmul.mubr.f32.gmra.mrb[0].mxu0 %v982
      %v2019 = vpop.f32.mrb[0].mxu0
      %v2020 = vadd.f32 %v450, %v2019
      %v2021 = vpop.f32.mrb[0].mxu0
      %2022 = vmatprep.mubr.f32.mxu0 0.0
      %2023 = vmatmul.mubr.f32.gmra.mrb[0].mxu0 %v985
      %v2024 = vpop.f32.mrb[0].mxu0
      %v2025 = vadd.f32 %v450, %v2024
      %v2026 = vpop.f32.mrb[0].mxu0
      %2027 = vmatprep.mubr.f32.mxu0 0.0
      %2028 = vmatmul.mubr.f32.gmra.mrb[0].mxu0 %v988
      %v2029 = vpop.f32.mrb[0].mxu0
      %v2030 = vadd.f32 %v450, %v2029
      %v2031 = vpop.f32.mrb[0].mxu0
      %2032 = vmatprep.mubr.f32.mxu0 0.0
      %2033 = vmatmul.mubr.f32.gmra.mrb[0].mxu0 %v991
      %v2034 = vpop.f32.mrb[0].mxu0
      %v2035 = vadd.f32 %v450, %v2034
      %v2036 = vpop.f32.mrb[0].mxu0
      %2037 = vmatprep.mubr.f32.mxu0 0.0
      %2038 = vmatmul.mubr.f32.gmra.mrb[0].mxu0 %v994
      %v2039 = vpop.f32.mrb[0].mxu0
      %v2040 = vadd.f32 %v450, %v2039
      %v2041 = vpop.f32.mrb[0].mxu0
      %2042 = vmatprep.mubr.f32.mxu0 0.0
      %2043 = vmatmul.mubr.f32.gmra.mrb[0].mxu0 %v997
      %v2044 = vpop.f32.mrb[0].mxu0
      %v2045 = vadd.f32 %v450, %v2044
      %v2046 = vpop.f32.mrb[0].mxu0
      %2047 = vmatprep.mubr.f32.mxu0 0.0
      %2048 = vmatmul.mubr.f32.gmra.mrb[0].mxu0 %v1000
      %v2049 = vpop.f32.mrb[0].mxu0
      %v2050 = vadd.f32 %v450, %v2049
      %v2051 = vpop.f32.mrb[0].mxu0
      %2052 = vmatprep.mubr.f32.mxu0 0.0
      %2053 = vmatmul.mubr.f32.gmra.mrb[0].mxu0 %v1003
      %v2054 = vpop.f32.mrb[0].mxu0
      %v2055 = vadd.f32 %v450, %v2054
      %v2056 = vpop.f32.mrb[0].mxu0
      %2057 = vmatprep.mubr.f32.mxu0 0.0
      %2058 = vmatmul.mubr.f32.gmra.mrb[0].mxu0 %v1006
      %v2059 = vpop.f32.mrb[0].mxu0
      %v2060 = vadd.f32 %v450, %v2059
      %v2061 = vpop.f32.mrb[0].mxu0
      %2062 = vmatprep.mubr.f32.mxu0 0.0
      %2063 = vmatmul.mubr.f32.gmra.mrb[0].mxu0 %v1009
      %v2064 = vpop.f32.mrb[0].mxu0
      %v2065 = vadd.f32 %v450, %v2064
      %v2066 = vpop.f32.mrb[0].mxu0
      %2067 = vmatprep.mubr.f32.mxu0 0.0
      %2068 = vmatmul.mubr.f32.gmra.mrb[0].mxu0 %v1012
      %v2069 = vpop.f32.mrb[0].mxu0
      %v2070 = vadd.f32 %v450, %v2069
      %v2071 = vpop.f32.mrb[0].mxu0
      %2072 = vmatprep.mubr.f32.mxu0 0.0
      %2073 = vmatmul.mubr.f32.gmra.mrb[0].mxu0 %v1015
      %v2074 = vpop.f32.mrb[0].mxu0
      %v2075 = vadd.f32 %v450, %v2074
      %v2076 = vpop.f32.mrb[0].mxu0
      %2077 = vmatprep.mubr.f32.mxu0 0.0
      %2078 = vmatmul.mubr.f32.gmra.mrb[0].mxu0 %v1018
      %v2079 = vpop.f32.mrb[0].mxu0
      %v2080 = vpop.f32.mrb[0].mxu0
      %2081 = vmatprep.mubr.f32.mxu0 0.0
      %2082 = vmatmul.mubr.f32.gmra.mrb[0].mxu0 %v1021
      %v2083 = vpop.f32.mrb[0].mxu0
      %v2084 = vpop.f32.mrb[0].mxu0
      %2085 = vmatprep.mubr.f32.mxu0 0.0
      %2086 = vmatmul.mubr.f32.gmra.mrb[0].mxu0 %v1024
      %v2087 = vpop.f32.mrb[0].mxu0
      %v2088 = vpop.f32.mrb[0].mxu0
      %2089 = vmatprep.mubr.f32.mxu0 0.0
      %2090 = vmatmul.mubr.f32.gmra.mrb[0].mxu0 %v1027
      %v2091 = vpop.f32.mrb[0].mxu0
      %v2092 = vpop.f32.mrb[0].mxu0
      %2093 = vmatprep.mubr.f32.mxu0 0.0
      %2094 = vmatmul.mubr.f32.gmra.mrb[0].mxu0 %v1030
      %v2095 = vpop.f32.mrb[0].mxu0
      %v2096 = vadd.f32 %v450, %v2095
      %v2097 = vpop.f32.mrb[0].mxu0
      %2098 = vmatprep.mubr.f32.mxu0 0.0
      %2099 = vmatmul.mubr.f32.gmra.mrb[0].mxu0 %v1033
      %v2100 = vpop.f32.mrb[0].mxu0
      %v2101 = vadd.f32 %v450, %v2100
      %v2102 = vpop.f32.mrb[0].mxu0
      %2103 = vmatprep.mubr.f32.mxu0 0.0
      %2104 = vmatmul.mubr.f32.gmra.mrb[0].mxu0 %v1036
      %v2105 = vpop.f32.mrb[0].mxu0
      %v2106 = vadd.f32 %v450, %v2105
      %v2107 = vpop.f32.mrb[0].mxu0
      %2108 = vmatprep.mubr.f32.mxu0 0.0
      %2109 = vmatmul.mubr.f32.gmra.mrb[0].mxu0 %v1039
      %v2110 = vpop.f32.mrb[0].mxu0
      %v2111 = vadd.f32 %v450, %v2110
      %v2112 = vpop.f32.mrb[0].mxu0
      %2113 = vmatprep.mubr.f32.mxu0 0.0
      %2114 = vmatmul.mubr.f32.gmra.mrb[0].mxu0 %v1042
      %v2115 = vpop.f32.mrb[0].mxu0
      %v2116 = vadd.f32 %v450, %v2115
      %v2117 = vpop.f32.mrb[0].mxu0
      %2118 = vmatprep.mubr.f32.mxu0 0.0
      %2119 = vmatmul.mubr.f32.gmra.mrb[0].mxu0 %v1045
      %v2120 = vpop.f32.mrb[0].mxu0
      %v2121 = vadd.f32 %v450, %v2120
      %v2122 = vpop.f32.mrb[0].mxu0
      %2123 = vmatprep.mubr.f32.mxu0 0.0
      %2124 = vmatmul.mubr.f32.gmra.mrb[0].mxu0 %v1048
      %v2125 = vpop.f32.mrb[0].mxu0
      %v2126 = vadd.f32 %v450, %v2125
      %v2127 = vpop.f32.mrb[0].mxu0
      %2128 = vmatprep.mubr.f32.mxu0 0.0
      %2129 = vmatmul.mubr.f32.gmra.mrb[0].mxu0 %v1051
      %v2130 = vpop.f32.mrb[0].mxu0
      %v2131 = vadd.f32 %v450, %v2130
      %v2132 = vpop.f32.mrb[0].mxu0
      %2133 = vmatprep.mubr.f32.mxu0 0.0
      %2134 = vmatmul.mubr.f32.gmra.mrb[0].mxu0 %v1054
      %v2135 = vpop.f32.mrb[0].mxu0
      %v2136 = vadd.f32 %v450, %v2135
      %v2137 = vpop.f32.mrb[0].mxu0
      %2138 = vmatprep.mubr.f32.mxu0 0.0
      %2139 = vmatmul.mubr.f32.gmra.mrb[0].mxu0 %v1057
      %v2140 = vpop.f32.mrb[0].mxu0
      %v2141 = vadd.f32 %v450, %v2140
      %v2142 = vpop.f32.mrb[0].mxu0
      %2143 = vmatprep.mubr.f32.mxu0 0.0
      %2144 = vmatmul.mubr.f32.gmra.mrb[0].mxu0 %v1060
      %v2145 = vpop.f32.mrb[0].mxu0
      %v2146 = vadd.f32 %v450, %v2145
      %v2147 = vpop.f32.mrb[0].mxu0
      %2148 = vmatprep.mubr.f32.mxu0 0.0
      %2149 = vmatmul.mubr.f32.gmra.mrb[0].mxu0 %v1063
      %v2150 = vpop.f32.mrb[0].mxu0
      %v2151 = vadd.f32 %v450, %v2150
      %v2152 = vpop.f32.mrb[0].mxu0
      %2153 = vmatprep.mubr.f32.mxu0 0.0
      %2154 = vmatmul.mubr.f32.gmra.mrb[0].mxu0 %v1066
      %v2155 = vpop.f32.mrb[0].mxu0
      %v2156 = vadd.f32 %v450, %v2155
      %v2157 = vpop.f32.mrb[0].mxu0
      %2158 = vmatprep.mubr.f32.mxu0 0.0
      %2159 = vmatmul.mubr.f32.gmra.mrb[0].mxu0 %v1069
      %v2160 = vpop.f32.mrb[0].mxu0
      %v2161 = vadd.f32 %v450, %v2160
      %v2162 = vpop.f32.mrb[0].mxu0
      %2163 = vmatprep.mubr.f32.mxu0 0.0
      %2164 = vmatmul.mubr.f32.gmra.mrb[0].mxu0 %v1072
      %v2165 = vpop.f32.mrb[0].mxu0
      %v2166 = vadd.f32 %v450, %v2165
      %v2167 = vpop.f32.mrb[0].mxu0
      %2168 = vmatprep.mubr.f32.mxu0 0.0
      %2169 = vmatmul.mubr.f32.gmra.mrb[0].mxu0 %v1075
      %v2170 = vpop.f32.mrb[0].mxu0
      %v2171 = vadd.f32 %v450, %v2170
      %v2172 = vpop.f32.mrb[0].mxu0
      %2173 = vmatprep.mubr.f32.mxu0 0.0
      %2174 = vmatmul.mubr.f32.gmra.mrb[0].mxu0 %v1078
      %v2175 = vpop.f32.mrb[0].mxu0
      %v2176 = vadd.f32 %v450, %v2175
      %v2177 = vpop.f32.mrb[0].mxu0
      %2178 = vmatprep.mubr.f32.mxu0 0.0
      %2179 = vmatmul.mubr.f32.gmra.mrb[0].mxu0 %v1081
      %v2180 = vpop.f32.mrb[0].mxu0
      %v2181 = vadd.f32 %v450, %v2180
      %v2182 = vpop.f32.mrb[0].mxu0
      %2183 = vmatprep.mubr.f32.mxu0 0.0
      %2184 = vmatmul.mubr.f32.gmra.mrb[0].mxu0 %v1084
      %v2185 = vpop.f32.mrb[0].mxu0
      %v2186 = vadd.f32 %v450, %v2185
      %v2187 = vpop.f32.mrb[0].mxu0
      %2188 = vmatprep.mubr.f32.mxu0 0.0
      %2189 = vmatmul.mubr.f32.gmra.mrb[0].mxu0 %v1087
      %v2190 = vpop.f32.mrb[0].mxu0
      %v2191 = vadd.f32 %v450, %v2190
      %v2192 = vpop.f32.mrb[0].mxu0
      %2193 = vmatprep.mubr.f32.mxu0 0.0
      %2194 = vmatmul.mubr.f32.gmra.mrb[0].mxu0 %v1090
      %v2195 = vpop.f32.mrb[0].mxu0
      %v2196 = vpop.f32.mrb[0].mxu0
      %2197 = vmatprep.mubr.f32.mxu0 0.0
      %2198 = vmatmul.mubr.f32.gmra.mrb[0].mxu0 %v1093
      %v2199 = vpop.f32.mrb[0].mxu0
      %v2200 = vpop.f32.mrb[0].mxu0
      %2201 = vmatprep.mubr.f32.mxu0 0.0
      %2202 = vmatmul.mubr.f32.gmra.mrb[0].mxu0 %v1096
      %v2203 = vpop.f32.mrb[0].mxu0
      %v2204 = vpop.f32.mrb[0].mxu0
      %2205 = vmatprep.mubr.f32.mxu0 0.0
      %2206 = vmatmul.mubr.f32.gmra.mrb[0].mxu0 %v1099
      %v2207 = vpop.f32.mrb[0].mxu0
      %v2208 = vpop.f32.mrb[0].mxu0
      %2209 = vdwg.mxu0
      %v2210 = vmax.f32 %v1168, 0.0
      %v2211 = vmax.f32 %v1173, 0.0
      %v2212 = vmax.f32 %v1178, 0.0
      %v2213 = vmax.f32 %v1183, 0.0
      %v2214 = vmax.f32 %v1188, 0.0
      %v2215 = vmax.f32 %v1193, 0.0
      %v2216 = vmax.f32 %v1198, 0.0
      %v2217 = vmax.f32 %v1203, 0.0
      %v2218 = vmax.f32 %v1208, 0.0
      %v2219 = vmax.f32 %v1213, 0.0
      %v2220 = vmax.f32 %v1218, 0.0
      %v2221 = vmax.f32 %v1223, 0.0
      %v2222 = vmax.f32 %v1228, 0.0
      %v2223 = vmax.f32 %v1233, 0.0
      %v2224 = vmax.f32 %v1238, 0.0
      %v2225 = vmax.f32 %v1243, 0.0
      %v2226 = vmax.f32 %v1248, 0.0
      %v2227 = vmax.f32 %v1253, 0.0
      %v2228 = vmax.f32 %v1258, 0.0
      %v2229 = vmax.f32 %v1263, 0.0
      %v2230 = vmax.f32 %v1284, 0.0
      %v2231 = vmax.f32 %v1289, 0.0
      %v2232 = vmax.f32 %v1294, 0.0
      %v2233 = vmax.f32 %v1299, 0.0
      %v2234 = vmax.f32 %v1304, 0.0
      %v2235 = vmax.f32 %v1309, 0.0
      %v2236 = vmax.f32 %v1314, 0.0
      %v2237 = vmax.f32 %v1319, 0.0
      %v2238 = vmax.f32 %v1324, 0.0
      %v2239 = vmax.f32 %v1329, 0.0
      %v2240 = vmax.f32 %v1334, 0.0
      %v2241 = vmax.f32 %v1339, 0.0
      %v2242 = vmax.f32 %v1344, 0.0
      %v2243 = vmax.f32 %v1349, 0.0
      %v2244 = vmax.f32 %v1354, 0.0
      %v2245 = vmax.f32 %v1359, 0.0
      %v2246 = vmax.f32 %v1364, 0.0
      %v2247 = vmax.f32 %v1369, 0.0
      %v2248 = vmax.f32 %v1374, 0.0
      %v2249 = vmax.f32 %v1379, 0.0
      %v2250 = vmax.f32 %v1400, 0.0
      %v2251 = vmax.f32 %v1405, 0.0
      %v2252 = vmax.f32 %v1410, 0.0
      %v2253 = vmax.f32 %v1415, 0.0
      %v2254 = vmax.f32 %v1420, 0.0
      %v2255 = vmax.f32 %v1425, 0.0
      %v2256 = vmax.f32 %v1430, 0.0
      %v2257 = vmax.f32 %v1435, 0.0
      %v2258 = vmax.f32 %v1440, 0.0
      %v2259 = vmax.f32 %v1445, 0.0
      %v2260 = vmax.f32 %v1450, 0.0
      %v2261 = vmax.f32 %v1455, 0.0
      %v2262 = vmax.f32 %v1460, 0.0
      %v2263 = vmax.f32 %v1465, 0.0
      %v2264 = vmax.f32 %v1470, 0.0
      %v2265 = vmax.f32 %v1475, 0.0
      %v2266 = vmax.f32 %v1480, 0.0
      %v2267 = vmax.f32 %v1485, 0.0
      %v2268 = vmax.f32 %v1490, 0.0
      %v2269 = vmax.f32 %v1495, 0.0
      %v2270 = vmax.f32 %v1516, 0.0
      %v2271 = vmax.f32 %v1521, 0.0
      %v2272 = vmax.f32 %v1526, 0.0
      %v2273 = vmax.f32 %v1531, 0.0
      %v2274 = vmax.f32 %v1536, 0.0
      %v2275 = vmax.f32 %v1541, 0.0
      %v2276 = vmax.f32 %v1546, 0.0
      %v2277 = vmax.f32 %v1551, 0.0
      %v2278 = vmax.f32 %v1556, 0.0
      %v2279 = vmax.f32 %v1561, 0.0
      %v2280 = vmax.f32 %v1566, 0.0
      %v2281 = vmax.f32 %v1571, 0.0
      %v2282 = vmax.f32 %v1576, 0.0
      %v2283 = vmax.f32 %v1581, 0.0
      %v2284 = vmax.f32 %v1586, 0.0
      %v2285 = vmax.f32 %v1591, 0.0
      %v2286 = vmax.f32 %v1596, 0.0
      %v2287 = vmax.f32 %v1601, 0.0
      %v2288 = vmax.f32 %v1606, 0.0
      %v2289 = vmax.f32 %v1611, 0.0
      %v2290 = vmax.f32 %v1632, 0.0
      %v2291 = vmax.f32 %v1637, 0.0
      %v2292 = vmax.f32 %v1642, 0.0
      %v2293 = vmax.f32 %v1647, 0.0
      %v2294 = vmax.f32 %v1652, 0.0
      %v2295 = vmax.f32 %v1657, 0.0
      %v2296 = vmax.f32 %v1662, 0.0
      %v2297 = vmax.f32 %v1667, 0.0
      %v2298 = vmax.f32 %v1672, 0.0
      %v2299 = vmax.f32 %v1677, 0.0
      %v2300 = vmax.f32 %v1682, 0.0
      %v2301 = vmax.f32 %v1687, 0.0
      %v2302 = vmax.f32 %v1692, 0.0
      %v2303 = vmax.f32 %v1697, 0.0
      %v2304 = vmax.f32 %v1702, 0.0
      %v2305 = vmax.f32 %v1707, 0.0
      %v2306 = vmax.f32 %v1712, 0.0
      %v2307 = vmax.f32 %v1717, 0.0
      %v2308 = vmax.f32 %v1722, 0.0
      %v2309 = vmax.f32 %v1727, 0.0
      %v2310 = vmax.f32 %v1748, 0.0
      %v2311 = vmax.f32 %v1753, 0.0
      %v2312 = vmax.f32 %v1758, 0.0
      %v2313 = vmax.f32 %v1763, 0.0
      %v2314 = vmax.f32 %v1768, 0.0
      %v2315 = vmax.f32 %v1773, 0.0
      %v2316 = vmax.f32 %v1778, 0.0
      %v2317 = vmax.f32 %v1783, 0.0
      %v2318 = vmax.f32 %v1788, 0.0
      %v2319 = vmax.f32 %v1793, 0.0
      %v2320 = vmax.f32 %v1798, 0.0
      %v2321 = vmax.f32 %v1803, 0.0
      %v2322 = vmax.f32 %v1808, 0.0
      %v2323 = vmax.f32 %v1813, 0.0
      %v2324 = vmax.f32 %v1818, 0.0
      %v2325 = vmax.f32 %v1823, 0.0
      %v2326 = vmax.f32 %v1828, 0.0
      %v2327 = vmax.f32 %v1833, 0.0
      %v2328 = vmax.f32 %v1838, 0.0
      %v2329 = vmax.f32 %v1843, 0.0
      %v2330 = vmax.f32 %v1864, 0.0
      %v2331 = vmax.f32 %v1869, 0.0
      %v2332 = vmax.f32 %v1874, 0.0
      %v2333 = vmax.f32 %v1879, 0.0
      %v2334 = vmax.f32 %v1884, 0.0
      %v2335 = vmax.f32 %v1889, 0.0
      %v2336 = vmax.f32 %v1894, 0.0
      %v2337 = vmax.f32 %v1899, 0.0
      %v2338 = vmax.f32 %v1904, 0.0
      %v2339 = vmax.f32 %v1909, 0.0
      %v2340 = vmax.f32 %v1914, 0.0
      %v2341 = vmax.f32 %v1919, 0.0
      %v2342 = vmax.f32 %v1924, 0.0
      %v2343 = vmax.f32 %v1929, 0.0
      %v2344 = vmax.f32 %v1934, 0.0
      %v2345 = vmax.f32 %v1939, 0.0
      %v2346 = vmax.f32 %v1944, 0.0
      %v2347 = vmax.f32 %v1949, 0.0
      %v2348 = vmax.f32 %v1954, 0.0
      %v2349 = vmax.f32 %v1959, 0.0
      %v2350 = vmax.f32 %v1980, 0.0
      %v2351 = vmax.f32 %v1985, 0.0
      %v2352 = vmax.f32 %v1990, 0.0
      %v2353 = vmax.f32 %v1995, 0.0
      %v2354 = vmax.f32 %v2000, 0.0
      %v2355 = vmax.f32 %v2005, 0.0
      %v2356 = vmax.f32 %v2010, 0.0
      %v2357 = vmax.f32 %v2015, 0.0
      %v2358 = vmax.f32 %v2020, 0.0
      %v2359 = vmax.f32 %v2025, 0.0
      %v2360 = vmax.f32 %v2030, 0.0
      %v2361 = vmax.f32 %v2035, 0.0
      %v2362 = vmax.f32 %v2040, 0.0
      %v2363 = vmax.f32 %v2045, 0.0
      %v2364 = vmax.f32 %v2050, 0.0
      %v2365 = vmax.f32 %v2055, 0.0
      %v2366 = vmax.f32 %v2060, 0.0
      %v2367 = vmax.f32 %v2065, 0.0
      %v2368 = vmax.f32 %v2070, 0.0
      %v2369 = vmax.f32 %v2075, 0.0
      %v2370 = vmax.f32 %v2096, 0.0
      %v2371 = vmax.f32 %v2101, 0.0
      %v2372 = vmax.f32 %v2106, 0.0
      %v2373 = vmax.f32 %v2111, 0.0
      %v2374 = vmax.f32 %v2116, 0.0
      %v2375 = vmax.f32 %v2121, 0.0
      %v2376 = vmax.f32 %v2126, 0.0
      %v2377 = vmax.f32 %v2131, 0.0
      %v2378 = vmax.f32 %v2136, 0.0
      %v2379 = vmax.f32 %v2141, 0.0
      %v2380 = vmax.f32 %v2146, 0.0
      %v2381 = vmax.f32 %v2151, 0.0
      %v2382 = vmax.f32 %v2156, 0.0
      %v2383 = vmax.f32 %v2161, 0.0
      %v2384 = vmax.f32 %v2166, 0.0
      %v2385 = vmax.f32 %v2171, 0.0
      %v2386 = vmax.f32 %v2176, 0.0
      %v2387 = vmax.f32 %v2181, 0.0
      %v2388 = vmax.f32 %v2186, 0.0
      %v2389 = vmax.f32 %v2191, 0.0
      %v2390 = vmax.f32 %v2210, %v2230
      %v2391 = vmax.f32 %v2211, %v2231
      %v2392 = vmax.f32 %v2212, %v2232
      %v2393 = vmax.f32 %v2213, %v2233
      %v2394 = vmax.f32 %v2214, %v2234
      %v2395 = vmax.f32 %v2215, %v2235
      %v2396 = vmax.f32 %v2216, %v2236
      %v2397 = vmax.f32 %v2217, %v2237
      %v2398 = vmax.f32 %v2218, %v2238
      %v2399 = vmax.f32 %v2219, %v2239
      %v2400 = vmax.f32 %v2220, %v2240
      %v2401 = vmax.f32 %v2221, %v2241
      %v2402 = vmax.f32 %v2222, %v2242
      %v2403 = vmax.f32 %v2223, %v2243
      %v2404 = vmax.f32 %v2224, %v2244
      %v2405 = vmax.f32 %v2225, %v2245
      %v2406 = vmax.f32 %v2226, %v2246
      %v2407 = vmax.f32 %v2227, %v2247
      %v2408 = vmax.f32 %v2228, %v2248
      %v2409 = vmax.f32 %v2229, %v2249
      %v2410 = vmax.f32 %v2390, %v2250
      %v2411 = vmax.f32 %v2391, %v2251
      %v2412 = vmax.f32 %v2392, %v2252
      %v2413 = vmax.f32 %v2393, %v2253
      %v2414 = vmax.f32 %v2394, %v2254
      %v2415 = vmax.f32 %v2395, %v2255
      %v2416 = vmax.f32 %v2396, %v2256
      %v2417 = vmax.f32 %v2397, %v2257
      %v2418 = vmax.f32 %v2398, %v2258
      %v2419 = vmax.f32 %v2399, %v2259
      %v2420 = vmax.f32 %v2400, %v2260
      %v2421 = vmax.f32 %v2401, %v2261
      %v2422 = vmax.f32 %v2402, %v2262
      %v2423 = vmax.f32 %v2403, %v2263
      %v2424 = vmax.f32 %v2404, %v2264
      %v2425 = vmax.f32 %v2405, %v2265
      %v2426 = vmax.f32 %v2406, %v2266
      %v2427 = vmax.f32 %v2407, %v2267
      %v2428 = vmax.f32 %v2408, %v2268
      %v2429 = vmax.f32 %v2409, %v2269
      %v2430 = vmax.f32 %v2410, %v2270
      %v2431 = vmax.f32 %v2411, %v2271
      %v2432 = vmax.f32 %v2412, %v2272
      %v2433 = vmax.f32 %v2413, %v2273
      %v2434 = vmax.f32 %v2414, %v2274
      %v2435 = vmax.f32 %v2415, %v2275
      %v2436 = vmax.f32 %v2416, %v2276
      %v2437 = vmax.f32 %v2417, %v2277
      %v2438 = vmax.f32 %v2418, %v2278
      %v2439 = vmax.f32 %v2419, %v2279
      %v2440 = vmax.f32 %v2420, %v2280
      %v2441 = vmax.f32 %v2421, %v2281
      %v2442 = vmax.f32 %v2422, %v2282
      %v2443 = vmax.f32 %v2423, %v2283
      %v2444 = vmax.f32 %v2424, %v2284
      %v2445 = vmax.f32 %v2425, %v2285
      %v2446 = vmax.f32 %v2426, %v2286
      %v2447 = vmax.f32 %v2427, %v2287
      %v2448 = vmax.f32 %v2428, %v2288
      %v2449 = vmax.f32 %v2429, %v2289
      %v2450 = vmax.f32 %v2430, %v2290
      %v2451 = vmax.f32 %v2431, %v2291
      %v2452 = vmax.f32 %v2432, %v2292
      %v2453 = vmax.f32 %v2433, %v2293
      %v2454 = vmax.f32 %v2434, %v2294
      %v2455 = vmax.f32 %v2435, %v2295
      %v2456 = vmax.f32 %v2436, %v2296
      %v2457 = vmax.f32 %v2437, %v2297
      %v2458 = vmax.f32 %v2438, %v2298
      %v2459 = vmax.f32 %v2439, %v2299
      %v2460 = vmax.f32 %v2440, %v2300
      %v2461 = vmax.f32 %v2441, %v2301
      %v2462 = vmax.f32 %v2442, %v2302
      %v2463 = vmax.f32 %v2443, %v2303
      %v2464 = vmax.f32 %v2444, %v2304
      %v2465 = vmax.f32 %v2445, %v2305
      %v2466 = vmax.f32 %v2446, %v2306
      %v2467 = vmax.f32 %v2447, %v2307
      %v2468 = vmax.f32 %v2448, %v2308
      %v2469 = vmax.f32 %v2449, %v2309
      %v2470 = vmax.f32 %v2450, %v2310
      %v2471 = vmax.f32 %v2451, %v2311
      %v2472 = vmax.f32 %v2452, %v2312
      %v2473 = vmax.f32 %v2453, %v2313
      %v2474 = vmax.f32 %v2454, %v2314
      %v2475 = vmax.f32 %v2455, %v2315
      %v2476 = vmax.f32 %v2456, %v2316
      %v2477 = vmax.f32 %v2457, %v2317
      %v2478 = vmax.f32 %v2458, %v2318
      %v2479 = vmax.f32 %v2459, %v2319
      %v2480 = vmax.f32 %v2460, %v2320
      %v2481 = vmax.f32 %v2461, %v2321
      %v2482 = vmax.f32 %v2462, %v2322
      %v2483 = vmax.f32 %v2463, %v2323
      %v2484 = vmax.f32 %v2464, %v2324
      %v2485 = vmax.f32 %v2465, %v2325
      %v2486 = vmax.f32 %v2466, %v2326
      %v2487 = vmax.f32 %v2467, %v2327
      %v2488 = vmax.f32 %v2468, %v2328
      %v2489 = vmax.f32 %v2469, %v2329
      %v2490 = vmax.f32 %v2470, %v2330
      %v2491 = vmax.f32 %v2471, %v2331
      %v2492 = vmax.f32 %v2472, %v2332
      %v2493 = vmax.f32 %v2473, %v2333
      %v2494 = vmax.f32 %v2474, %v2334
      %v2495 = vmax.f32 %v2475, %v2335
      %v2496 = vmax.f32 %v2476, %v2336
      %v2497 = vmax.f32 %v2477, %v2337
      %v2498 = vmax.f32 %v2478, %v2338
      %v2499 = vmax.f32 %v2479, %v2339
      %v2500 = vmax.f32 %v2480, %v2340
      %v2501 = vmax.f32 %v2481, %v2341
      %v2502 = vmax.f32 %v2482, %v2342
      %v2503 = vmax.f32 %v2483, %v2343
      %v2504 = vmax.f32 %v2484, %v2344
      %v2505 = vmax.f32 %v2485, %v2345
      %v2506 = vmax.f32 %v2486, %v2346
      %v2507 = vmax.f32 %v2487, %v2347
      %v2508 = vmax.f32 %v2488, %v2348
      %v2509 = vmax.f32 %v2489, %v2349
      %v2510 = vmax.f32 %v2490, %v2350
      %v2511 = vmax.f32 %v2491, %v2351
      %v2512 = vmax.f32 %v2492, %v2352
      %v2513 = vmax.f32 %v2493, %v2353
      %v2514 = vmax.f32 %v2494, %v2354
      %v2515 = vmax.f32 %v2495, %v2355
      %v2516 = vmax.f32 %v2496, %v2356
      %v2517 = vmax.f32 %v2497, %v2357
      %v2518 = vmax.f32 %v2498, %v2358
      %v2519 = vmax.f32 %v2499, %v2359
      %v2520 = vmax.f32 %v2500, %v2360
      %v2521 = vmax.f32 %v2501, %v2361
      %v2522 = vmax.f32 %v2502, %v2362
      %v2523 = vmax.f32 %v2503, %v2363
      %v2524 = vmax.f32 %v2504, %v2364
      %v2525 = vmax.f32 %v2505, %v2365
      %v2526 = vmax.f32 %v2506, %v2366
      %v2527 = vmax.f32 %v2507, %v2367
      %v2528 = vmax.f32 %v2508, %v2368
      %v2529 = vmax.f32 %v2509, %v2369
      %v2530 = vmax.f32 %v2510, %v2370
      %v2531 = vmax.f32 %v2511, %v2371
      %v2532 = vmax.f32 %v2512, %v2372
      %v2533 = vmax.f32 %v2513, %v2373
      %v2534 = vmax.f32 %v2514, %v2374
      %v2535 = vmax.f32 %v2515, %v2375
      %v2536 = vmax.f32 %v2516, %v2376
      %v2537 = vmax.f32 %v2517, %v2377
      %v2538 = vmax.f32 %v2518, %v2378
      %v2539 = vmax.f32 %v2519, %v2379
      %v2540 = vmax.f32 %v2520, %v2380
      %v2541 = vmax.f32 %v2521, %v2381
      %v2542 = vmax.f32 %v2522, %v2382
      %v2543 = vmax.f32 %v2523, %v2383
      %v2544 = vmax.f32 %v2524, %v2384
      %v2545 = vmax.f32 %v2525, %v2385
      %v2546 = vmax.f32 %v2526, %v2386
      %v2547 = vmax.f32 %v2527, %v2387
      %v2548 = vmax.f32 %v2528, %v2388
      %v2549 = vmax.f32 %v2529, %v2389
      %2557 = vrot.lane.b32.xlu0 %v2532, 32
      %v2558 = vpop.permute.xlu0 %2557
      %2559 = vrot.lane.b32.xlu0 %v2534, 32
      %v2560 = vpop.permute.xlu0 %2559
      %2561 = vrot.lane.b32.xlu0 %v2536, 32
      %v2562 = vpop.permute.xlu0 %2561
      %2563 = vrot.lane.b32.xlu0 %v2538, 32
      %v2564 = vpop.permute.xlu0 %2563
      %2565 = vrot.lane.b32.xlu0 %v2540, 32
      %v2566 = vpop.permute.xlu0 %2565
      %2567 = vrot.lane.b32.xlu0 %v2542, 32
      %v2568 = vpop.permute.xlu0 %2567
      %2569 = vrot.lane.b32.xlu0 %v2544, 32
      %v2570 = vpop.permute.xlu0 %2569
      %2579 = vrot.lane.b32.xlu0 %v2534, 64
      %v2580 = vpop.permute.xlu0 %2579
      %2581 = vrot.lane.b32.xlu0 %v2536, 64
      %v2582 = vpop.permute.xlu0 %2581
      %2583 = vrot.lane.b32.xlu0 %v2538, 64
      %v2584 = vpop.permute.xlu0 %2583
      %2585 = vrot.lane.b32.xlu0 %v2540, 64
      %v2586 = vpop.permute.xlu0 %2585
      %2587 = vrot.lane.b32.xlu0 %v2542, 64
      %v2588 = vpop.permute.xlu0 %2587
      %2589 = vrot.lane.b32.xlu0 %v2544, 64
      %v2590 = vpop.permute.xlu0 %2589
      %2591 = vrot.lane.b32.xlu0 %v2546, 64
      %v2592 = vpop.permute.xlu0 %2591
      %2601 = vrot.lane.b32.xlu0 %v2536, 96
      %v2602 = vpop.permute.xlu0 %2601
      %2603 = vrot.lane.b32.xlu0 %v2538, 96
      %v2604 = vpop.permute.xlu0 %2603
      %2605 = vrot.lane.b32.xlu0 %v2540, 96
      %v2606 = vpop.permute.xlu0 %2605
      %2607 = vrot.lane.b32.xlu0 %v2542, 96
      %v2608 = vpop.permute.xlu0 %2607
      %2609 = vrot.lane.b32.xlu0 %v2544, 96
      %v2610 = vpop.permute.xlu0 %2609
      %2611 = vrot.lane.b32.xlu0 %v2546, 96
      %v2612 = vpop.permute.xlu0 %2611
      %2613 = vrot.lane.b32.xlu0 %v2548, 96
      %v2614 = vpop.permute.xlu0 %2613
      %vm2622 = vcmask 261120
      %v2623 = vsel %vm2622, %v2530, %v2558
      %v2624 = vsel %vm2622, %v2532, %v2560
      %v2625 = vsel %vm2622, %v2534, %v2562
      %v2626 = vsel %vm2622, %v2536, %v2564
      %v2627 = vsel %vm2622, %v2538, %v2566
      %v2628 = vsel %vm2622, %v2540, %v2568
      %v2629 = vsel %vm2622, %v2542, %v2570
      %vm2630 = vcmask 523264
      %v2631 = vsel %vm2630, %v2623, %v2580
      %v2632 = vsel %vm2630, %v2624, %v2582
      %v2633 = vsel %vm2630, %v2625, %v2584
      %v2634 = vsel %vm2630, %v2626, %v2586
      %v2635 = vsel %vm2630, %v2627, %v2588
      %v2636 = vsel %vm2630, %v2628, %v2590
      %v2637 = vsel %vm2630, %v2629, %v2592
      %vm2638 = vcmask 785408
      %v2639 = vsel %vm2638, %v2631, %v2602
      %v2640 = vsel %vm2638, %v2632, %v2604
      %v2641 = vsel %vm2638, %v2633, %v2606
      %v2642 = vsel %vm2638, %v2634, %v2608
      %v2643 = vsel %vm2638, %v2635, %v2610
      %v2644 = vsel %vm2638, %v2636, %v2612
      %v2645 = vsel %vm2638, %v2637, %v2614
      %v2646 = vld [vmem:[%s3] sm:$0xff]
      %v2647 = vld [vmem:[%s3 + $0x8] sm:$0xff]
      %v2648 = vld [vmem:[%s3 + $0x10] sm:$0xff]
      %v2649 = vld [vmem:[%s3 + $0x18] sm:$0xff]
      %v2650 = vld [vmem:[%s3 + $0x20] sm:$0xff]
      %v2651 = vld [vmem:[%s3 + $0x28] sm:$0xff]
      %v2652 = vld [vmem:[%s3 + $0x30] sm:$0xff]
      %v2653 = vld [vmem:[%s3 + $0x38] sm:$0xff]
      %v2654 = vld [vmem:[%s3 + $0x40] sm:$0xff]
      %v2655 = vld [vmem:[%s3 + $0x48] sm:$0xff]
      %v2656 = vld [vmem:[%s3 + $0x50] sm:$0xff]
      %v2657 = vld [vmem:[%s3 + $0x58] sm:$0xff]
      %v2658 = vld [vmem:[%s3 + $0x60] sm:$0xff]
      %v2659 = vld [vmem:[%s3 + $0x68] sm:$0xff]
      %v2660 = vld [vmem:[%s3 + $0x70] sm:$0xff]
      %v2661 = vld [vmem:[%s3 + $0x78] sm:$0xff]
      %2669 = vrot.lane.b32.xlu0 %v2533, 32
      %v2670 = vpop.permute.xlu0 %2669
      %2671 = vrot.lane.b32.xlu0 %v2535, 32
      %v2672 = vpop.permute.xlu0 %2671
      %2673 = vrot.lane.b32.xlu0 %v2537, 32
      %v2674 = vpop.permute.xlu0 %2673
      %2675 = vrot.lane.b32.xlu0 %v2539, 32
      %v2676 = vpop.permute.xlu0 %2675
      %2677 = vrot.lane.b32.xlu0 %v2541, 32
      %v2678 = vpop.permute.xlu0 %2677
      %2679 = vrot.lane.b32.xlu0 %v2543, 32
      %v2680 = vpop.permute.xlu0 %2679
      %2681 = vrot.lane.b32.xlu0 %v2545, 32
      %v2682 = vpop.permute.xlu0 %2681
      %2691 = vrot.lane.b32.xlu0 %v2535, 64
      %v2692 = vpop.permute.xlu0 %2691
      %2693 = vrot.lane.b32.xlu0 %v2537, 64
      %v2694 = vpop.permute.xlu0 %2693
      %2695 = vrot.lane.b32.xlu0 %v2539, 64
      %v2696 = vpop.permute.xlu0 %2695
      %2697 = vrot.lane.b32.xlu0 %v2541, 64
      %v2698 = vpop.permute.xlu0 %2697
      %2699 = vrot.lane.b32.xlu0 %v2543, 64
      %v2700 = vpop.permute.xlu0 %2699
      %2701 = vrot.lane.b32.xlu0 %v2545, 64
      %v2702 = vpop.permute.xlu0 %2701
      %2703 = vrot.lane.b32.xlu0 %v2547, 64
      %v2704 = vpop.permute.xlu0 %2703
      %2713 = vrot.lane.b32.xlu0 %v2537, 96
      %v2714 = vpop.permute.xlu0 %2713
      %2715 = vrot.lane.b32.xlu0 %v2539, 96
      %v2716 = vpop.permute.xlu0 %2715
      %2717 = vrot.lane.b32.xlu0 %v2541, 96
      %v2718 = vpop.permute.xlu0 %2717
      %2719 = vrot.lane.b32.xlu0 %v2543, 96
      %v2720 = vpop.permute.xlu0 %2719
      %2721 = vrot.lane.b32.xlu0 %v2545, 96
      %v2722 = vpop.permute.xlu0 %2721
      %2723 = vrot.lane.b32.xlu0 %v2547, 96
      %v2724 = vpop.permute.xlu0 %2723
      %2725 = vrot.lane.b32.xlu0 %v2549, 96
      %v2726 = vpop.permute.xlu0 %2725
      %v2734 = vsel %vm2622, %v2531, %v2670
      %v2735 = vsel %vm2622, %v2533, %v2672
      %v2736 = vsel %vm2622, %v2535, %v2674
      %v2737 = vsel %vm2622, %v2537, %v2676
      %v2738 = vsel %vm2622, %v2539, %v2678
      %v2739 = vsel %vm2622, %v2541, %v2680
      %v2740 = vsel %vm2622, %v2543, %v2682
      %v2741 = vsel %vm2630, %v2734, %v2692
      %v2742 = vsel %vm2630, %v2735, %v2694
      %v2743 = vsel %vm2630, %v2736, %v2696
      %v2744 = vsel %vm2630, %v2737, %v2698
      %v2745 = vsel %vm2630, %v2738, %v2700
      %v2746 = vsel %vm2630, %v2739, %v2702
      %v2747 = vsel %vm2630, %v2740, %v2704
      %v2748 = vsel %vm2638, %v2741, %v2714
      %v2749 = vsel %vm2638, %v2742, %v2716
      %v2750 = vsel %vm2638, %v2743, %v2718
      %v2751 = vsel %vm2638, %v2744, %v2720
      %v2752 = vsel %vm2638, %v2745, %v2722
      %v2753 = vsel %vm2638, %v2746, %v2724
      %v2754 = vsel %vm2638, %v2747, %v2726
      %vm2769 = vcmask 1046528
      %v2770 = vrot.slane %v2639, 1
      %v2771 = vrot.slane %v2748, 1
      %v2772 = vsel %vm2769, %v2770, %v2771
      %v2773 = vrot.slane %v2640, 1
      %v2774 = vrot.slane %v2749, 1
      %v2775 = vsel %vm2769, %v2773, %v2774
      %v2776 = vrot.slane %v2641, 1
      %v2777 = vrot.slane %v2750, 1
      %v2778 = vsel %vm2769, %v2776, %v2777
      %v2779 = vrot.slane %v2642, 1
      %v2780 = vrot.slane %v2751, 1
      %v2781 = vsel %vm2769, %v2779, %v2780
      %v2782 = vrot.slane %v2643, 1
      %v2783 = vrot.slane %v2752, 1
      %v2784 = vsel %vm2769, %v2782, %v2783
      %v2785 = vrot.slane %v2644, 1
      %v2786 = vrot.slane %v2753, 1
      %v2787 = vsel %vm2769, %v2785, %v2786
      %v2788 = vrot.slane %v2645, 1
      %v2789 = vrot.slane %v2754, 1
      %v2790 = vsel %vm2769, %v2788, %v2789
      %s2798 = scalar_lea.vmem %s3, 128
      %v2799 = vld [vmem:[%s2798] sm:$0xff]
      %v2800 = vld [vmem:[%s2798 + $0x8] sm:$0xff]
      %v2801 = vld [vmem:[%s2798 + $0x10] sm:$0xff]
      %v2802 = vld [vmem:[%s2798 + $0x18] sm:$0xff]
      %v2803 = vld [vmem:[%s2798 + $0x20] sm:$0xff]
      %v2804 = vld [vmem:[%s2798 + $0x28] sm:$0xff]
      %v2805 = vld [vmem:[%s2798 + $0x30] sm:$0xff]
      %v2806 = vld [vmem:[%s2798 + $0x38] sm:$0xff]
      %v2807 = vld [vmem:[%s2798 + $0x40] sm:$0xff]
      %v2808 = vld [vmem:[%s2798 + $0x48] sm:$0xff]
      %v2809 = vld [vmem:[%s2798 + $0x50] sm:$0xff]
      %v2810 = vld [vmem:[%s2798 + $0x58] sm:$0xff]
      %v2811 = vld [vmem:[%s2798 + $0x60] sm:$0xff]
      %v2812 = vld [vmem:[%s2798 + $0x68] sm:$0xff]
      %v2813 = vld [vmem:[%s2798 + $0x70] sm:$0xff]
      %v2814 = vld [vmem:[%s2798 + $0x78] sm:$0xff]
      %2815 = vmatprep.subr.mxu0 0.0
      %2816 = vmatpush1.msra.mxu0 %v2799
      %2817 = vmatprep.subr.mxu0 0.0
      %2818 = vmatpush1.msra.mxu0 %v2800
      %2819 = vmatprep.subr.mxu0 0.0
      %2820 = vmatpush1.msra.mxu0 %v2801
      %2821 = vmatprep.subr.mxu0 0.0
      %2822 = vmatpush1.msra.mxu0 %v2802
      %2823 = vmatprep.subr.mxu0 0.0
      %2824 = vmatpush1.msra.mxu0 %v2803
      %2825 = vmatprep.subr.mxu0 0.0
      %2826 = vmatpush1.msra.mxu0 %v2804
      %2827 = vmatprep.subr.mxu0 0.0
      %2828 = vmatpush1.msra.mxu0 %v2805
      %2829 = vmatprep.subr.mxu0 0.0
      %2830 = vmatpush1.msra.mxu0 %v2806
      %2831 = vmatprep.subr.mxu0 0.0
      %2832 = vmatpush1.msra.mxu0 %v2807
      %2833 = vmatprep.subr.mxu0 0.0
      %2834 = vmatpush1.msra.mxu0 %v2808
      %2835 = vmatprep.subr.mxu0 0.0
      %2836 = vmatpush1.msra.mxu0 %v2809
      %2837 = vmatprep.subr.mxu0 0.0
      %2838 = vmatpush1.msra.mxu0 %v2810
      %2839 = vmatprep.subr.mxu0 0.0
      %2840 = vmatpush1.msra.mxu0 %v2811
      %2841 = vmatprep.subr.mxu0 0.0
      %2842 = vmatpush1.msra.mxu0 %v2812
      %2843 = vmatprep.subr.mxu0 0.0
      %2844 = vmatpush1.msra.mxu0 %v2813
      %2845 = vmatprep.subr.mxu0 0.0
      %2846 = vmatpush1.msra.mxu0 %v2814
      %2847 = vmatprep.subr.mxu0 0.0
      %2848 = vmatpush1.msra.mxu0 0.0
      %2849 = vmatprep.subr.mxu0 0.0
      %2850 = vmatpush1.msra.mxu0 0.0
      %2851 = vmatprep.subr.mxu0 0.0
      %2852 = vmatpush1.msra.mxu0 0.0
      %2853 = vmatprep.subr.mxu0 0.0
      %2854 = vmatpush1.msra.mxu0 0.0
      %2855 = vmatprep.subr.mxu0 0.0
      %2856 = vmatpush1.msra.mxu0 0.0
      %2857 = vmatprep.subr.mxu0 0.0
      %2858 = vmatpush1.msra.mxu0 0.0
      %2859 = vmatprep.subr.mxu0 0.0
      %2860 = vmatpush1.msra.mxu0 0.0
      %2861 = vmatprep.subr.mxu0 0.0
      %2862 = vmatpush1.msra.mxu0 0.0
      %2863 = vmatprep.subr.mxu0 0.0
      %2864 = vmatpush1.msra.mxu0 0.0
      %2865 = vmatprep.subr.mxu0 0.0
      %2866 = vmatpush1.msra.mxu0 0.0
      %2867 = vmatprep.subr.mxu0 0.0
      %2868 = vmatpush1.msra.mxu0 0.0
      %2869 = vmatprep.subr.mxu0 0.0
      %2870 = vmatpush1.msra.mxu0 0.0
      %2871 = vmatprep.subr.mxu0 0.0
      %2872 = vmatpush1.msra.mxu0 0.0
      %2873 = vmatprep.subr.mxu0 0.0
      %2874 = vmatpush1.msra.mxu0 0.0
      %2875 = vmatprep.subr.mxu0 0.0
      %2876 = vmatpush1.msra.mxu0 0.0
      %2877 = vmatprep.subr.mxu0 0.0
      %2878 = vmatpush1.msra.mxu0 0.0
      %2879 = vmatprep.mubr.f32.mxu0 0.0
      %2880 = vmatmul.mubr.f32.gmra.mrb[0].mxu0 %v2772
      %v2881 = vpop.f32.mrb[0].mxu0
      %v2882 = vadd.f32 0.0, %v2881
      %v2883 = vpop.f32.mrb[0].mxu0
      %2884 = vmatprep.mubr.f32.mxu0 0.0
      %2885 = vmatmul.mubr.f32.gmra.mrb[0].mxu0 %v2775
      %v2886 = vpop.f32.mrb[0].mxu0
      %v2887 = vadd.f32 0.0, %v2886
      %v2888 = vpop.f32.mrb[0].mxu0
      %2889 = vmatprep.mubr.f32.mxu0 0.0
      %2890 = vmatmul.mubr.f32.gmra.mrb[0].mxu0 %v2778
      %v2891 = vpop.f32.mrb[0].mxu0
      %v2892 = vadd.f32 0.0, %v2891
      %v2893 = vpop.f32.mrb[0].mxu0
      %2894 = vmatprep.mubr.f32.mxu0 0.0
      %2895 = vmatmul.mubr.f32.gmra.mrb[0].mxu0 %v2781
      %v2896 = vpop.f32.mrb[0].mxu0
      %v2897 = vpop.f32.mrb[0].mxu0
      %2898 = vmatprep.mubr.f32.mxu0 0.0
      %2899 = vmatmul.mubr.f32.gmra.mrb[0].mxu0 %v2784
      %v2900 = vpop.f32.mrb[0].mxu0
      %v2901 = vadd.f32 0.0, %v2900
      %v2902 = vpop.f32.mrb[0].mxu0
      %2903 = vmatprep.mubr.f32.mxu0 0.0
      %2904 = vmatmul.mubr.f32.gmra.mrb[0].mxu0 %v2787
      %v2905 = vpop.f32.mrb[0].mxu0
      %v2906 = vadd.f32 0.0, %v2905
      %v2907 = vpop.f32.mrb[0].mxu0
      %2908 = vmatprep.mubr.f32.mxu0 0.0
      %2909 = vmatmul.mubr.f32.gmra.mrb[0].mxu0 %v2790
      %v2910 = vpop.f32.mrb[0].mxu0
      %v2911 = vadd.f32 0.0, %v2910
      %v2912 = vpop.f32.mrb[0].mxu0
      %2913 = vdwg.mxu0
      %2914 = vmatprep.subr.mxu0 0.0
      %2915 = vmatpush1.msra.mxu0 %v2646
      %2916 = vmatprep.subr.mxu0 0.0
      %2917 = vmatpush1.msra.mxu0 %v2647
      %2918 = vmatprep.subr.mxu0 0.0
      %2919 = vmatpush1.msra.mxu0 %v2648
      %2920 = vmatprep.subr.mxu0 0.0
      %2921 = vmatpush1.msra.mxu0 %v2649
      %2922 = vmatprep.subr.mxu0 0.0
      %2923 = vmatpush1.msra.mxu0 %v2650
      %2924 = vmatprep.subr.mxu0 0.0
      %2925 = vmatpush1.msra.mxu0 %v2651
      %2926 = vmatprep.subr.mxu0 0.0
      %2927 = vmatpush1.msra.mxu0 %v2652
      %2928 = vmatprep.subr.mxu0 0.0
      %2929 = vmatpush1.msra.mxu0 %v2653
      %2930 = vmatprep.subr.mxu0 0.0
      %2931 = vmatpush1.msra.mxu0 %v2654
      %2932 = vmatprep.subr.mxu0 0.0
      %2933 = vmatpush1.msra.mxu0 %v2655
      %2934 = vmatprep.subr.mxu0 0.0
      %2935 = vmatpush1.msra.mxu0 %v2656
      %2936 = vmatprep.subr.mxu0 0.0
      %2937 = vmatpush1.msra.mxu0 %v2657
      %2938 = vmatprep.subr.mxu0 0.0
      %2939 = vmatpush1.msra.mxu0 %v2658
      %2940 = vmatprep.subr.mxu0 0.0
      %2941 = vmatpush1.msra.mxu0 %v2659
      %2942 = vmatprep.subr.mxu0 0.0
      %2943 = vmatpush1.msra.mxu0 %v2660
      %2944 = vmatprep.subr.mxu0 0.0
      %2945 = vmatpush1.msra.mxu0 %v2661
      %2946 = vmatprep.subr.mxu0 0.0
      %2947 = vmatpush1.msra.mxu0 0.0
      %2948 = vmatprep.subr.mxu0 0.0
      %2949 = vmatpush1.msra.mxu0 0.0
      %2950 = vmatprep.subr.mxu0 0.0
      %2951 = vmatpush1.msra.mxu0 0.0
      %2952 = vmatprep.subr.mxu0 0.0
      %2953 = vmatpush1.msra.mxu0 0.0
      %2954 = vmatprep.subr.mxu0 0.0
      %2955 = vmatpush1.msra.mxu0 0.0
      %2956 = vmatprep.subr.mxu0 0.0
      %2957 = vmatpush1.msra.mxu0 0.0
      %2958 = vmatprep.subr.mxu0 0.0
      %2959 = vmatpush1.msra.mxu0 0.0
      %2960 = vmatprep.subr.mxu0 0.0
      %2961 = vmatpush1.msra.mxu0 0.0
      %2962 = vmatprep.subr.mxu0 0.0
      %2963 = vmatpush1.msra.mxu0 0.0
      %2964 = vmatprep.subr.mxu0 0.0
      %2965 = vmatpush1.msra.mxu0 0.0
      %2966 = vmatprep.subr.mxu0 0.0
      %2967 = vmatpush1.msra.mxu0 0.0
      %2968 = vmatprep.subr.mxu0 0.0
      %2969 = vmatpush1.msra.mxu0 0.0
      %2970 = vmatprep.subr.mxu0 0.0
      %2971 = vmatpush1.msra.mxu0 0.0
      %2972 = vmatprep.subr.mxu0 0.0
      %2973 = vmatpush1.msra.mxu0 0.0
      %2974 = vmatprep.subr.mxu0 0.0
      %2975 = vmatpush1.msra.mxu0 0.0
      %2976 = vmatprep.subr.mxu0 0.0
      %2977 = vmatpush1.msra.mxu0 0.0
      %2978 = vmatprep.mubr.f32.mxu0 0.0
      %2979 = vmatmul.mubr.f32.gmra.mrb[0].mxu0 %v2639
      %v2980 = vpop.f32.mrb[0].mxu0
      %v2981 = vadd.f32 %v2882, %v2980
      %v2982 = vpop.f32.mrb[0].mxu0
      %2983 = vmatprep.mubr.f32.mxu0 0.0
      %2984 = vmatmul.mubr.f32.gmra.mrb[0].mxu0 %v2640
      %v2985 = vpop.f32.mrb[0].mxu0
      %v2986 = vadd.f32 %v2887, %v2985
      %v2987 = vpop.f32.mrb[0].mxu0
      %2988 = vmatprep.mubr.f32.mxu0 0.0
      %2989 = vmatmul.mubr.f32.gmra.mrb[0].mxu0 %v2641
      %v2990 = vpop.f32.mrb[0].mxu0
      %v2991 = vadd.f32 %v2892, %v2990
      %v2992 = vpop.f32.mrb[0].mxu0
      %2993 = vmatprep.mubr.f32.mxu0 0.0
      %2994 = vmatmul.mubr.f32.gmra.mrb[0].mxu0 %v2642
      %v2995 = vpop.f32.mrb[0].mxu0
      %v2996 = vpop.f32.mrb[0].mxu0
      %2997 = vmatprep.mubr.f32.mxu0 0.0
      %2998 = vmatmul.mubr.f32.gmra.mrb[0].mxu0 %v2643
      %v2999 = vpop.f32.mrb[0].mxu0
      %v3000 = vadd.f32 %v2901, %v2999
      %v3001 = vpop.f32.mrb[0].mxu0
      %3002 = vmatprep.mubr.f32.mxu0 0.0
      %3003 = vmatmul.mubr.f32.gmra.mrb[0].mxu0 %v2644
      %v3004 = vpop.f32.mrb[0].mxu0
      %v3005 = vadd.f32 %v2906, %v3004
      %v3006 = vpop.f32.mrb[0].mxu0
      %3007 = vmatprep.mubr.f32.mxu0 0.0
      %3008 = vmatmul.mubr.f32.gmra.mrb[0].mxu0 %v2645
      %v3009 = vpop.f32.mrb[0].mxu0
      %v3010 = vadd.f32 %v2911, %v3009
      %v3011 = vpop.f32.mrb[0].mxu0
      %3012 = vdwg.mxu0
      %vm3013 = vcmask 1045504
      %v3014 = vrot.slane %v2639, 2
      %v3015 = vrot.slane %v2748, 2
      %v3016 = vsel %vm3013, %v3014, %v3015
      %v3017 = vrot.slane %v2640, 2
      %v3018 = vrot.slane %v2749, 2
      %v3019 = vsel %vm3013, %v3017, %v3018
      %v3020 = vrot.slane %v2641, 2
      %v3021 = vrot.slane %v2750, 2
      %v3022 = vsel %vm3013, %v3020, %v3021
      %v3023 = vrot.slane %v2642, 2
      %v3024 = vrot.slane %v2751, 2
      %v3025 = vsel %vm3013, %v3023, %v3024
      %v3026 = vrot.slane %v2643, 2
      %v3027 = vrot.slane %v2752, 2
      %v3028 = vsel %vm3013, %v3026, %v3027
      %v3029 = vrot.slane %v2644, 2
      %v3030 = vrot.slane %v2753, 2
      %v3031 = vsel %vm3013, %v3029, %v3030
      %v3032 = vrot.slane %v2645, 2
      %v3033 = vrot.slane %v2754, 2
      %v3034 = vsel %vm3013, %v3032, %v3033
      %s3042 = scalar_lea.vmem %s3, 256
      %v3043 = vld [vmem:[%s3042] sm:$0xff]
      %v3044 = vld [vmem:[%s3042 + $0x8] sm:$0xff]
      %v3045 = vld [vmem:[%s3042 + $0x10] sm:$0xff]
      %v3046 = vld [vmem:[%s3042 + $0x18] sm:$0xff]
      %v3047 = vld [vmem:[%s3042 + $0x20] sm:$0xff]
      %v3048 = vld [vmem:[%s3042 + $0x28] sm:$0xff]
      %v3049 = vld [vmem:[%s3042 + $0x30] sm:$0xff]
      %v3050 = vld [vmem:[%s3042 + $0x38] sm:$0xff]
      %v3051 = vld [vmem:[%s3042 + $0x40] sm:$0xff]
      %v3052 = vld [vmem:[%s3042 + $0x48] sm:$0xff]
      %v3053 = vld [vmem:[%s3042 + $0x50] sm:$0xff]
      %v3054 = vld [vmem:[%s3042 + $0x58] sm:$0xff]
      %v3055 = vld [vmem:[%s3042 + $0x60] sm:$0xff]
      %v3056 = vld [vmem:[%s3042 + $0x68] sm:$0xff]
      %v3057 = vld [vmem:[%s3042 + $0x70] sm:$0xff]
      %v3058 = vld [vmem:[%s3042 + $0x78] sm:$0xff]
      %3059 = vmatprep.subr.mxu0 0.0
      %3060 = vmatpush1.msra.mxu0 %v3043
      %3061 = vmatprep.subr.mxu0 0.0
      %3062 = vmatpush1.msra.mxu0 %v3044
      %3063 = vmatprep.subr.mxu0 0.0
      %3064 = vmatpush1.msra.mxu0 %v3045
      %3065 = vmatprep.subr.mxu0 0.0
      %3066 = vmatpush1.msra.mxu0 %v3046
      %3067 = vmatprep.subr.mxu0 0.0
      %3068 = vmatpush1.msra.mxu0 %v3047
      %3069 = vmatprep.subr.mxu0 0.0
      %3070 = vmatpush1.msra.mxu0 %v3048
      %3071 = vmatprep.subr.mxu0 0.0
      %3072 = vmatpush1.msra.mxu0 %v3049
      %3073 = vmatprep.subr.mxu0 0.0
      %3074 = vmatpush1.msra.mxu0 %v3050
      %3075 = vmatprep.subr.mxu0 0.0
      %3076 = vmatpush1.msra.mxu0 %v3051
      %3077 = vmatprep.subr.mxu0 0.0
      %3078 = vmatpush1.msra.mxu0 %v3052
      %3079 = vmatprep.subr.mxu0 0.0
      %3080 = vmatpush1.msra.mxu0 %v3053
      %3081 = vmatprep.subr.mxu0 0.0
      %3082 = vmatpush1.msra.mxu0 %v3054
      %3083 = vmatprep.subr.mxu0 0.0
      %3084 = vmatpush1.msra.mxu0 %v3055
      %3085 = vmatprep.subr.mxu0 0.0
      %3086 = vmatpush1.msra.mxu0 %v3056
      %3087 = vmatprep.subr.mxu0 0.0
      %3088 = vmatpush1.msra.mxu0 %v3057
      %3089 = vmatprep.subr.mxu0 0.0
      %3090 = vmatpush1.msra.mxu0 %v3058
      %3091 = vmatprep.subr.mxu0 0.0
      %3092 = vmatpush1.msra.mxu0 0.0
      %3093 = vmatprep.subr.mxu0 0.0
      %3094 = vmatpush1.msra.mxu0 0.0
      %3095 = vmatprep.subr.mxu0 0.0
      %3096 = vmatpush1.msra.mxu0 0.0
      %3097 = vmatprep.subr.mxu0 0.0
      %3098 = vmatpush1.msra.mxu0 0.0
      %3099 = vmatprep.subr.mxu0 0.0
      %3100 = vmatpush1.msra.mxu0 0.0
      %3101 = vmatprep.subr.mxu0 0.0
      %3102 = vmatpush1.msra.mxu0 0.0
      %3103 = vmatprep.subr.mxu0 0.0
      %3104 = vmatpush1.msra.mxu0 0.0
      %3105 = vmatprep.subr.mxu0 0.0
      %3106 = vmatpush1.msra.mxu0 0.0
      %3107 = vmatprep.subr.mxu0 0.0
      %3108 = vmatpush1.msra.mxu0 0.0
      %3109 = vmatprep.subr.mxu0 0.0
      %3110 = vmatpush1.msra.mxu0 0.0
      %3111 = vmatprep.subr.mxu0 0.0
      %3112 = vmatpush1.msra.mxu0 0.0
      %3113 = vmatprep.subr.mxu0 0.0
      %3114 = vmatpush1.msra.mxu0 0.0
      %3115 = vmatprep.subr.mxu0 0.0
      %3116 = vmatpush1.msra.mxu0 0.0
      %3117 = vmatprep.subr.mxu0 0.0
      %3118 = vmatpush1.msra.mxu0 0.0
      %3119 = vmatprep.subr.mxu0 0.0
      %3120 = vmatpush1.msra.mxu0 0.0
      %3121 = vmatprep.subr.mxu0 0.0
      %3122 = vmatpush1.msra.mxu0 0.0
      %3123 = vmatprep.mubr.f32.mxu0 0.0
      %3124 = vmatmul.mubr.f32.gmra.mrb[0].mxu0 %v3016
      %v3125 = vpop.f32.mrb[0].mxu0
      %v3126 = vadd.f32 0.0, %v3125
      %v3127 = vpop.f32.mrb[0].mxu0
      %3128 = vmatprep.mubr.f32.mxu0 0.0
      %3129 = vmatmul.mubr.f32.gmra.mrb[0].mxu0 %v3019
      %v3130 = vpop.f32.mrb[0].mxu0
      %v3131 = vadd.f32 0.0, %v3130
      %v3132 = vpop.f32.mrb[0].mxu0
      %3133 = vmatprep.mubr.f32.mxu0 0.0
      %3134 = vmatmul.mubr.f32.gmra.mrb[0].mxu0 %v3022
      %v3135 = vpop.f32.mrb[0].mxu0
      %v3136 = vadd.f32 0.0, %v3135
      %v3137 = vpop.f32.mrb[0].mxu0
      %3138 = vmatprep.mubr.f32.mxu0 0.0
      %3139 = vmatmul.mubr.f32.gmra.mrb[0].mxu0 %v3025
      %v3140 = vpop.f32.mrb[0].mxu0
      %v3141 = vpop.f32.mrb[0].mxu0
      %3142 = vmatprep.mubr.f32.mxu0 0.0
      %3143 = vmatmul.mubr.f32.gmra.mrb[0].mxu0 %v3028
      %v3144 = vpop.f32.mrb[0].mxu0
      %v3145 = vadd.f32 0.0, %v3144
      %v3146 = vpop.f32.mrb[0].mxu0
      %3147 = vmatprep.mubr.f32.mxu0 0.0
      %3148 = vmatmul.mubr.f32.gmra.mrb[0].mxu0 %v3031
      %v3149 = vpop.f32.mrb[0].mxu0
      %v3150 = vadd.f32 0.0, %v3149
      %v3151 = vpop.f32.mrb[0].mxu0
      %3152 = vmatprep.mubr.f32.mxu0 0.0
      %3153 = vmatmul.mubr.f32.gmra.mrb[0].mxu0 %v3034
      %v3154 = vpop.f32.mrb[0].mxu0
      %v3155 = vadd.f32 0.0, %v3154
      %v3156 = vpop.f32.mrb[0].mxu0
      %3157 = vdwg.mxu0
      %v3158 = vadd.f32 %v2981, %v3126
      %v3159 = vadd.f32 %v2986, %v3131
      %v3160 = vadd.f32 %v2991, %v3136
      %v3161 = vadd.f32 %v3000, %v3145
      %v3162 = vadd.f32 %v3005, %v3150
      %v3163 = vadd.f32 %v3010, %v3155
      %vm3164 = vcmask 1044480
      %v3165 = vrot.slane %v2639, 3
      %v3166 = vrot.slane %v2748, 3
      %v3167 = vsel %vm3164, %v3165, %v3166
      %v3168 = vrot.slane %v2640, 3
      %v3169 = vrot.slane %v2749, 3
      %v3170 = vsel %vm3164, %v3168, %v3169
      %v3171 = vrot.slane %v2641, 3
      %v3172 = vrot.slane %v2750, 3
      %v3173 = vsel %vm3164, %v3171, %v3172
      %v3174 = vrot.slane %v2642, 3
      %v3175 = vrot.slane %v2751, 3
      %v3176 = vsel %vm3164, %v3174, %v3175
      %v3177 = vrot.slane %v2643, 3
      %v3178 = vrot.slane %v2752, 3
      %v3179 = vsel %vm3164, %v3177, %v3178
      %v3180 = vrot.slane %v2644, 3
      %v3181 = vrot.slane %v2753, 3
      %v3182 = vsel %vm3164, %v3180, %v3181
      %v3183 = vrot.slane %v2645, 3
      %v3184 = vrot.slane %v2754, 3
      %v3185 = vsel %vm3164, %v3183, %v3184
      %s3193 = scalar_lea.vmem %s3, 384
      %v3194 = vld [vmem:[%s3193] sm:$0xff]
      %v3195 = vld [vmem:[%s3193 + $0x8] sm:$0xff]
      %v3196 = vld [vmem:[%s3193 + $0x10] sm:$0xff]
      %v3197 = vld [vmem:[%s3193 + $0x18] sm:$0xff]
      %v3198 = vld [vmem:[%s3193 + $0x20] sm:$0xff]
      %v3199 = vld [vmem:[%s3193 + $0x28] sm:$0xff]
      %v3200 = vld [vmem:[%s3193 + $0x30] sm:$0xff]
      %v3201 = vld [vmem:[%s3193 + $0x38] sm:$0xff]
      %v3202 = vld [vmem:[%s3193 + $0x40] sm:$0xff]
      %v3203 = vld [vmem:[%s3193 + $0x48] sm:$0xff]
      %v3204 = vld [vmem:[%s3193 + $0x50] sm:$0xff]
      %v3205 = vld [vmem:[%s3193 + $0x58] sm:$0xff]
      %v3206 = vld [vmem:[%s3193 + $0x60] sm:$0xff]
      %v3207 = vld [vmem:[%s3193 + $0x68] sm:$0xff]
      %v3208 = vld [vmem:[%s3193 + $0x70] sm:$0xff]
      %v3209 = vld [vmem:[%s3193 + $0x78] sm:$0xff]
      %3210 = vmatprep.subr.mxu0 0.0
      %3211 = vmatpush1.msra.mxu0 %v3194
      %3212 = vmatprep.subr.mxu0 0.0
      %3213 = vmatpush1.msra.mxu0 %v3195
      %3214 = vmatprep.subr.mxu0 0.0
      %3215 = vmatpush1.msra.mxu0 %v3196
      %3216 = vmatprep.subr.mxu0 0.0
      %3217 = vmatpush1.msra.mxu0 %v3197
      %3218 = vmatprep.subr.mxu0 0.0
      %3219 = vmatpush1.msra.mxu0 %v3198
      %3220 = vmatprep.subr.mxu0 0.0
      %3221 = vmatpush1.msra.mxu0 %v3199
      %3222 = vmatprep.subr.mxu0 0.0
      %3223 = vmatpush1.msra.mxu0 %v3200
      %3224 = vmatprep.subr.mxu0 0.0
      %3225 = vmatpush1.msra.mxu0 %v3201
      %3226 = vmatprep.subr.mxu0 0.0
      %3227 = vmatpush1.msra.mxu0 %v3202
      %3228 = vmatprep.subr.mxu0 0.0
      %3229 = vmatpush1.msra.mxu0 %v3203
      %3230 = vmatprep.subr.mxu0 0.0
      %3231 = vmatpush1.msra.mxu0 %v3204
      %3232 = vmatprep.subr.mxu0 0.0
      %3233 = vmatpush1.msra.mxu0 %v3205
      %3234 = vmatprep.subr.mxu0 0.0
      %3235 = vmatpush1.msra.mxu0 %v3206
      %3236 = vmatprep.subr.mxu0 0.0
      %3237 = vmatpush1.msra.mxu0 %v3207
      %3238 = vmatprep.subr.mxu0 0.0
      %3239 = vmatpush1.msra.mxu0 %v3208
      %3240 = vmatprep.subr.mxu0 0.0
      %3241 = vmatpush1.msra.mxu0 %v3209
      %3242 = vmatprep.subr.mxu0 0.0
      %3243 = vmatpush1.msra.mxu0 0.0
      %3244 = vmatprep.subr.mxu0 0.0
      %3245 = vmatpush1.msra.mxu0 0.0
      %3246 = vmatprep.subr.mxu0 0.0
      %3247 = vmatpush1.msra.mxu0 0.0
      %3248 = vmatprep.subr.mxu0 0.0
      %3249 = vmatpush1.msra.mxu0 0.0
      %3250 = vmatprep.subr.mxu0 0.0
      %3251 = vmatpush1.msra.mxu0 0.0
      %3252 = vmatprep.subr.mxu0 0.0
      %3253 = vmatpush1.msra.mxu0 0.0
      %3254 = vmatprep.subr.mxu0 0.0
      %3255 = vmatpush1.msra.mxu0 0.0
      %3256 = vmatprep.subr.mxu0 0.0
      %3257 = vmatpush1.msra.mxu0 0.0
      %3258 = vmatprep.subr.mxu0 0.0
      %3259 = vmatpush1.msra.mxu0 0.0
      %3260 = vmatprep.subr.mxu0 0.0
      %3261 = vmatpush1.msra.mxu0 0.0
      %3262 = vmatprep.subr.mxu0 0.0
      %3263 = vmatpush1.msra.mxu0 0.0
      %3264 = vmatprep.subr.mxu0 0.0
      %3265 = vmatpush1.msra.mxu0 0.0
      %3266 = vmatprep.subr.mxu0 0.0
      %3267 = vmatpush1.msra.mxu0 0.0
      %3268 = vmatprep.subr.mxu0 0.0
      %3269 = vmatpush1.msra.mxu0 0.0
      %3270 = vmatprep.subr.mxu0 0.0
      %3271 = vmatpush1.msra.mxu0 0.0
      %3272 = vmatprep.subr.mxu0 0.0
      %3273 = vmatpush1.msra.mxu0 0.0
      %3274 = vmatprep.mubr.f32.mxu0 0.0
      %3275 = vmatmul.mubr.f32.gmra.mrb[0].mxu0 %v3167
      %v3276 = vpop.f32.mrb[0].mxu0
      %v3277 = vadd.f32 0.0, %v3276
      %v3278 = vpop.f32.mrb[0].mxu0
      %3279 = vmatprep.mubr.f32.mxu0 0.0
      %3280 = vmatmul.mubr.f32.gmra.mrb[0].mxu0 %v3170
      %v3281 = vpop.f32.mrb[0].mxu0
      %v3282 = vadd.f32 0.0, %v3281
      %v3283 = vpop.f32.mrb[0].mxu0
      %3284 = vmatprep.mubr.f32.mxu0 0.0
      %3285 = vmatmul.mubr.f32.gmra.mrb[0].mxu0 %v3173
      %v3286 = vpop.f32.mrb[0].mxu0
      %v3287 = vadd.f32 0.0, %v3286
      %v3288 = vpop.f32.mrb[0].mxu0
      %3289 = vmatprep.mubr.f32.mxu0 0.0
      %3290 = vmatmul.mubr.f32.gmra.mrb[0].mxu0 %v3176
      %v3291 = vpop.f32.mrb[0].mxu0
      %v3292 = vpop.f32.mrb[0].mxu0
      %3293 = vmatprep.mubr.f32.mxu0 0.0
      %3294 = vmatmul.mubr.f32.gmra.mrb[0].mxu0 %v3179
      %v3295 = vpop.f32.mrb[0].mxu0
      %v3296 = vadd.f32 0.0, %v3295
      %v3297 = vpop.f32.mrb[0].mxu0
      %3298 = vmatprep.mubr.f32.mxu0 0.0
      %3299 = vmatmul.mubr.f32.gmra.mrb[0].mxu0 %v3182
      %v3300 = vpop.f32.mrb[0].mxu0
      %v3301 = vadd.f32 0.0, %v3300
      %v3302 = vpop.f32.mrb[0].mxu0
      %3303 = vmatprep.mubr.f32.mxu0 0.0
      %3304 = vmatmul.mubr.f32.gmra.mrb[0].mxu0 %v3185
      %v3305 = vpop.f32.mrb[0].mxu0
      %v3306 = vadd.f32 0.0, %v3305
      %v3307 = vpop.f32.mrb[0].mxu0
      %3308 = vdwg.mxu0
      %v3309 = vadd.f32 %v3158, %v3277
      %v3310 = vadd.f32 %v3159, %v3282
      %v3311 = vadd.f32 %v3160, %v3287
      %v3312 = vadd.f32 %v3161, %v3296
      %v3313 = vadd.f32 %v3162, %v3301
      %v3314 = vadd.f32 %v3163, %v3306
      %v3315 = vld [vmem:[%s4] sm:$0x1]
      %v3317 = vlaneseq
      %v3318 = vshrl.u32 %v3317, 7
      %v3319 = vsub.s32 0, %v3318
      %v3320 = vrot.slane %v3315, %v3319
      %v3322 = vadd.f32 %v3309, %v3320
      %v3323 = vadd.f32 %v3310, %v3320
      %v3324 = vadd.f32 %v3311, %v3320
      %v3325 = vadd.f32 %v3312, %v3320
      %v3326 = vadd.f32 %v3313, %v3320
      %v3327 = vadd.f32 %v3314, %v3320
      %v3328 = vmax.f32 %v3322, 0.0
      %v3329 = vmax.f32 %v3323, 0.0
      %v3330 = vmax.f32 %v3324, 0.0
      %v3331 = vmax.f32 %v3325, 0.0
      %v3332 = vmax.f32 %v3326, 0.0
      %v3333 = vmax.f32 %v3327, 0.0
      %v3334 = vmax.f32 %v3328, %v3329
      %v3335 = vmax.f32 %v3334, %v3330
      %v3337 = vrot.slane %v3335, 1
      %v3339 = vmax.f32 %v3335, %v3337
      %v3340 = vrot.slane %v3335, 2
      %v3342 = vmax.f32 %v3339, %v3340
      %v3343 = vmax.f32 %v3331, %v3332
      %v3344 = vmax.f32 %v3343, %v3333
      %v3346 = vrot.slane %v3344, 1
      %v3348 = vmax.f32 %v3344, %v3346
      %v3349 = vrot.slane %v3344, 2
      %v3351 = vmax.f32 %v3348, %v3349
      %v3353 = vrot.slane %v3342, 4
      %3354 = vrot.lane.b32.xlu0 %v3353, 64
      %v3355 = vpop.permute.xlu0 %3354
      %v3358 = vrot.slane %v3351, 4
      %3359 = vrot.lane.b32.xlu0 %v3358, 64
      %v3360 = vpop.permute.xlu0 %3359
      %v3362 = vsel %vm2630, %v3342, %v3355
      %v3363 = vsel %vm2630, %v3351, %v3360
      %v3366 = vcombine.low %v3362, %v3363
      %v3368 = vunpack.c.l.s4 1966171168
      %v3369 = vunpack.c.0.s8 %v3368
      %v3370 = vlaneseq
      %v3371 = vshrl.u32 %v3370, 7
      %v3372 = vsub.s32 %v3369, %v3371
      %v3373 = vrot.slane %v3366, %v3372
      %v3375 = vunpack.c.l.s4 1966171168
      %v3376 = vunpack.c.0.s8 %v3375
      %v3377 = vlaneseq
      %v3378 = vshrl.u32 %v3377, 7
      %v3379 = vsub.s32 %v3376, %v3378
      %v3380 = vrot.slane %v3373, %v3379
      %v3382 = vlaneseq
      %vm3383 = vcmp.ge.s32.totalorder %v3382, 0
      %vm3384 = vcmp.lt.s32.totalorder %v3382, 256
      %vm3385 = vmand %vm3383, %vm3384
      %3386 = vst.msk [vmem:[%s222] sm:$0x3] %vm3385, %v3380
      %p3387 = scmp.lt.s32.totalorder %s16, 1
      %s3388 = scalar_select %p3387, %s16, 1
      %s3389 = smul.addr %s3388, 2
      %s3390 = scalar_lea.vmem %s5, %s3389
      // Predicated region
      $region41: #{robonet_forward.2} parent=39 // pred_check
        %p3391 = pneg %p144
      $region42: #{robonet_forward.2} parent=39 // pred_check_branch
        %3393 = sbr.rel (%p3391) target = $region44
      $region43: #{robonet_forward.2} parent=39 // pred_region
        _
      $region44: #{robonet_forward.2} parent=39 // pred_fallthru
        _
    $region40: #{robonet_forward.2} parent=5 // pred_fallthru
      _
    %p3394 = scmp.le.s32.totalorder 2, %s11
    // Predicated region
    $region45: #{robonet_forward.2} parent=5 // pred_check
      %p3395 = pneg %p3394
    $region46: #{robonet_forward.2} parent=5 // pred_check_branch
      %3397 = sbr.rel (%p3395) target = $region48
    $region47: #{robonet_forward.2} parent=5 // pred_region
      %s3398 = ssub.s32 %s11, 2
      // Predicated region
      $region49: #{robonet_forward.2} parent=47 // pred_check
        %p3399 = pneg %p150
      $region50: #{robonet_forward.2} parent=47 // pred_check_branch
        %3401 = sbr.rel (%p3399) target = $region52
      $region51: #{robonet_forward.2} parent=47 // pred_region
        %p3402 = scmp.lt.s32.totalorder %s17, 1
        %s3403 = scalar_select %p3402, %s17, 1
        %s3404 = smul.addr %s3403, 2
        %s3405 = scalar_lea.vmem %s5, %s3404
      $region52: #{robonet_forward.2} parent=47 // pred_fallthru
        _
    $region48: #{robonet_forward.2} parent=5 // pred_fallthru
      _
  $region6: #{robonet_forward.2} parent=0 // loop_footer
    %s15 = sadd.s32 1, %s11
  $region7: #{robonet_forward.2} parent=0 // loop_footer_branch
    %10 = sbr.rel target = $region3
  $region8: #{robonet_forward.2} parent=0 // loop_exit
    _

// kernel: robonet_forward.3
$region0: #{robonet_forward.3}
  #allocation0 [shape = 'u32[]', space=smem, size = 0x4, offset = 0x4, fixed_abs, tag = 'smem constant byte address 0x4 - core index']
  #allocation1 [shape = 'u32[144,128]{1,0:T(1,128)}', space=vmem, size = 0x12000, scoped, tag = 'internal scratch']
  %s0 = inlined_call_operand.vmem [shape: f32[2,256], index: 0, kind: input, shape index: {}]
  %s1 = inlined_call_operand.vmem [shape: f32[2,4], index: 1, kind: input, shape index: {}]
  %s2 = inlined_call_operand.vmem [shape: f32[256,64], index: 2, kind: input, shape index: {}]
  %s3 = inlined_call_operand.vmem [shape: f32[4,64], index: 3, kind: input, shape index: {}]
  %s4 = inlined_call_operand.vmem [shape: f32[1,64], index: 4, kind: input, shape index: {}]
  %s5 = inlined_call_operand.vmem [shape: f32[64,32], index: 5, kind: input, shape index: {}]
  %s6 = inlined_call_operand.vmem [shape: f32[1,32], index: 6, kind: input, shape index: {}]
  %s7 = inlined_call_operand.vmem [shape: f32[32,8], index: 7, kind: input, shape index: {}]
  %s8 = inlined_call_operand.vmem [shape: f32[1,8], index: 8, kind: input, shape index: {}]
  %s9 = inlined_call_operand.hbm [shape: f32[2,8], index: 9, kind: output, shape index: {}]
  %s10 = sld [smem:[#allocation0]]
  $region46: #{robonet_forward.3} parent=0
    _
  %s12 = ssub.s32 1, %s10
  %s13 = scalar_select 0, %s12, %s10
  $region1: #{robonet_forward.3} parent=0
    #allocation2 [shape = 'u8[1024]{0}', space=vmem, size = 0x400, scoped, tag = 'output window, operand 0, single buffered']
    #allocation3 [shape = 's32[1]{0}', space=sflag, size = 0x4, scoped, tag = 'scoped memory for robonet_forward.3']
    %14 = vsyncpa [#allocation3], 0
    // Predicated region
    $region2: #{robonet_forward.3} parent=1 // pred_check
      _
    $region3: #{robonet_forward.3} parent=1 // pred_check_branch
      %16 = sbr.rel (0) target = $region5
    $region4: #{robonet_forward.3} parent=1 // pred_region
      _
    $region5: #{robonet_forward.3} parent=1 // pred_fallthru
      _
    // Predicated region
    $region6: #{robonet_forward.3} parent=1 // pred_check
      _
    $region7: #{robonet_forward.3} parent=1 // pred_check_branch
      %18 = sbr.rel (0) target = $region9
    $region8: #{robonet_forward.3} parent=1 // pred_region
      _
    $region9: #{robonet_forward.3} parent=1 // pred_fallthru
      _
    // Predicated region
    $region10: #{robonet_forward.3} parent=1 // pred_check
      _
    $region11: #{robonet_forward.3} parent=1 // pred_check_branch
      %20 = sbr.rel (0) target = $region13
    $region12: #{robonet_forward.3} parent=1 // pred_region
      _
    $region13: #{robonet_forward.3} parent=1 // pred_fallthru
      _
    // Predicated region
    $region14: #{robonet_forward.3} parent=1 // pred_check
      _
    $region15: #{robonet_forward.3} parent=1 // pred_check_branch
      %22 = sbr.rel (0) target = $region17
    $region16: #{robonet_forward.3} parent=1 // pred_region
      _
    $region17: #{robonet_forward.3} parent=1 // pred_fallthru
      _
    // Predicated region
    $region18: #{robonet_forward.3} parent=1 // pred_check
      _
    $region19: #{robonet_forward.3} parent=1 // pred_check_branch
      %24 = sbr.rel (0) target = $region21
    $region20: #{robonet_forward.3} parent=1 // pred_region
      _
    $region21: #{robonet_forward.3} parent=1 // pred_fallthru
      _
    // Predicated region
    $region22: #{robonet_forward.3} parent=1 // pred_check
      _
    $region23: #{robonet_forward.3} parent=1 // pred_check_branch
      %26 = sbr.rel (0) target = $region25
    $region24: #{robonet_forward.3} parent=1 // pred_region
      _
    $region25: #{robonet_forward.3} parent=1 // pred_fallthru
      _
    // Predicated region
    $region26: #{robonet_forward.3} parent=1 // pred_check
      _
    $region27: #{robonet_forward.3} parent=1 // pred_check_branch
      %28 = sbr.rel (0) target = $region29
    $region28: #{robonet_forward.3} parent=1 // pred_region
      _
    $region29: #{robonet_forward.3} parent=1 // pred_fallthru
      _
    // Predicated region
    $region30: #{robonet_forward.3} parent=1 // pred_check
      _
    $region31: #{robonet_forward.3} parent=1 // pred_check_branch
      %30 = sbr.rel (0) target = $region33
    $region32: #{robonet_forward.3} parent=1 // pred_region
      _
    $region33: #{robonet_forward.3} parent=1 // pred_fallthru
      _
    // Predicated region
    $region34: #{robonet_forward.3} parent=1 // pred_check
      _
    $region35: #{robonet_forward.3} parent=1 // pred_check_branch
      %32 = sbr.rel (0) target = $region37
    $region36: #{robonet_forward.3} parent=1 // pred_region
      _
    $region37: #{robonet_forward.3} parent=1 // pred_fallthru
      _
    %v33 = vld [vmem:[%s0] sm:$0xf]
    %v34 = vld [vmem:[%s2] sm:$0xff]
    %v35 = vld [vmem:[%s2 + $0x8] sm:$0xff]
    %v36 = vld [vmem:[%s2 + $0x10] sm:$0xff]
    %v37 = vld [vmem:[%s2 + $0x18] sm:$0xff]
    %v38 = vld [vmem:[%s2 + $0x20] sm:$0xff]
    %v39 = vld [vmem:[%s2 + $0x28] sm:$0xff]
    %v40 = vld [vmem:[%s2 + $0x30] sm:$0xff]
    %v41 = vld [vmem:[%s2 + $0x38] sm:$0xff]
    %v42 = vld [vmem:[%s2 + $0x40] sm:$0xff]
    %v43 = vld [vmem:[%s2 + $0x48] sm:$0xff]
    %v44 = vld [vmem:[%s2 + $0x50] sm:$0xff]
    %v45 = vld [vmem:[%s2 + $0x58] sm:$0xff]
    %v46 = vld [vmem:[%s2 + $0x60] sm:$0xff]
    %v47 = vld [vmem:[%s2 + $0x68] sm:$0xff]
    %v48 = vld [vmem:[%s2 + $0x70] sm:$0xff]
    %v49 = vld [vmem:[%s2 + $0x78] sm:$0xff]
    %v50 = vld [vmem:[%s2 + $0x80] sm:$0xff]
    %v51 = vld [vmem:[%s2 + $0x88] sm:$0xff]
    %v52 = vld [vmem:[%s2 + $0x90] sm:$0xff]
    %v53 = vld [vmem:[%s2 + $0x98] sm:$0xff]
    %v54 = vld [vmem:[%s2 + $0xa0] sm:$0xff]
    %v55 = vld [vmem:[%s2 + $0xa8] sm:$0xff]
    %v56 = vld [vmem:[%s2 + $0xb0] sm:$0xff]
    %v57 = vld [vmem:[%s2 + $0xb8] sm:$0xff]
    %v58 = vld [vmem:[%s2 + $0xc0] sm:$0xff]
    %v59 = vld [vmem:[%s2 + $0xc8] sm:$0xff]
    %v60 = vld [vmem:[%s2 + $0xd0] sm:$0xff]
    %v61 = vld [vmem:[%s2 + $0xd8] sm:$0xff]
    %v62 = vld [vmem:[%s2 + $0xe0] sm:$0xff]
    %v63 = vld [vmem:[%s2 + $0xe8] sm:$0xff]
    %v64 = vld [vmem:[%s2 + $0xf0] sm:$0xff]
    %v65 = vld [vmem:[%s2 + $0xf8] sm:$0xff]
    %v66 = vld [vmem:[%s1] sm:$0x3]
    %v67 = vld [vmem:[%s3] sm:$0xf]
    %vm68 = vcmask 31744
    %v70 = vsel %vm68, %v66, 0
    %vm72 = vcmask 1043456
    %v74 = vsel %vm72, %v67, 0
    %76 = vmatprep.subr.mxu0 0.0
    %77 = vmatpush1.msra.mxu0 %v74
    %78 = vmatprep.subr.mxu0 0.0
    %79 = vmatpush1.msra.mxu0 0.0
    %80 = vmatprep.subr.mxu0 0.0
    %81 = vmatpush1.msra.mxu0 0.0
    %82 = vmatprep.subr.mxu0 0.0
    %83 = vmatpush1.msra.mxu0 0.0
    %84 = vmatprep.subr.mxu0 0.0
    %85 = vmatpush1.msra.mxu0 0.0
    %86 = vmatprep.subr.mxu0 0.0
    %87 = vmatpush1.msra.mxu0 0.0
    %88 = vmatprep.subr.mxu0 0.0
    %89 = vmatpush1.msra.mxu0 0.0
    %90 = vmatprep.subr.mxu0 0.0
    %91 = vmatpush1.msra.mxu0 0.0
    %92 = vmatprep.subr.mxu0 0.0
    %93 = vmatpush1.msra.mxu0 0.0
    %94 = vmatprep.subr.mxu0 0.0
    %95 = vmatpush1.msra.mxu0 0.0
    %96 = vmatprep.subr.mxu0 0.0
    %97 = vmatpush1.msra.mxu0 0.0
    %98 = vmatprep.subr.mxu0 0.0
    %99 = vmatpush1.msra.mxu0 0.0
    %100 = vmatprep.subr.mxu0 0.0
    %101 = vmatpush1.msra.mxu0 0.0
    %102 = vmatprep.subr.mxu0 0.0
    %103 = vmatpush1.msra.mxu0 0.0
    %104 = vmatprep.subr.mxu0 0.0
    %105 = vmatpush1.msra.mxu0 0.0
    %106 = vmatprep.subr.mxu0 0.0
    %107 = vmatpush1.msra.mxu0 0.0
    %108 = vmatprep.subr.mxu0 0.0
    %109 = vmatpush1.msra.mxu0 0.0
    %110 = vmatprep.subr.mxu0 0.0
    %111 = vmatpush1.msra.mxu0 0.0
    %112 = vmatprep.subr.mxu0 0.0
    %113 = vmatpush1.msra.mxu0 0.0
    %114 = vmatprep.subr.mxu0 0.0
    %115 = vmatpush1.msra.mxu0 0.0
    %116 = vmatprep.subr.mxu0 0.0
    %117 = vmatpush1.msra.mxu0 0.0
    %118 = vmatprep.subr.mxu0 0.0
    %119 = vmatpush1.msra.mxu0 0.0
    %120 = vmatprep.subr.mxu0 0.0
    %121 = vmatpush1.msra.mxu0 0.0
    %122 = vmatprep.subr.mxu0 0.0
    %123 = vmatpush1.msra.mxu0 0.0
    %124 = vmatprep.subr.mxu0 0.0
    %125 = vmatpush1.msra.mxu0 0.0
    %126 = vmatprep.subr.mxu0 0.0
    %127 = vmatpush1.msra.mxu0 0.0
    %128 = vmatprep.subr.mxu0 0.0
    %129 = vmatpush1.msra.mxu0 0.0
    %130 = vmatprep.subr.mxu0 0.0
    %131 = vmatpush1.msra.mxu0 0.0
    %132 = vmatprep.subr.mxu0 0.0
    %133 = vmatpush1.msra.mxu0 0.0
    %134 = vmatprep.subr.mxu0 0.0
    %135 = vmatpush1.msra.mxu0 0.0
    %136 = vmatprep.subr.mxu0 0.0
    %137 = vmatpush1.msra.mxu0 0.0
    %138 = vmatprep.subr.mxu0 0.0
    %139 = vmatpush1.msra.mxu0 0.0
    %140 = vmatprep.mubr.f32.mxu0 0.0
    %141 = vmatmul.mubr.f32.gmra.mrb[0].mxu0 %v70
    %v142 = vpop.f32.mrb[0].mxu0
    %v143 = vadd.f32 0.0, %v142
    %v144 = vpop.f32.mrb[0].mxu0
    %145 = vdwg.mxu0
    %v148 = vunpack.c.l.s4 1983009808
    %v149 = vunpack.c.0.s8 %v148
    %v150 = vlaneseq
    %v151 = vshrl.u32 %v150, 7
    %v152 = vsub.s32 %v149, %v151
    %v153 = vrot.slane %v33, %v152
    %v154 = vcombine.high %v153, %v153
    %157 = vmatprep.subr.mxu0 0.0
    %158 = vmatpush1.msra.mxu0 %v34
    %159 = vmatprep.subr.mxu0 0.0
    %160 = vmatpush1.msra.mxu0 %v35
    %161 = vmatprep.subr.mxu0 0.0
    %162 = vmatpush1.msra.mxu0 %v36
    %163 = vmatprep.subr.mxu0 0.0
    %164 = vmatpush1.msra.mxu0 %v37
    %165 = vmatprep.subr.mxu0 0.0
    %166 = vmatpush1.msra.mxu0 %v38
    %167 = vmatprep.subr.mxu0 0.0
    %168 = vmatpush1.msra.mxu0 %v39
    %169 = vmatprep.subr.mxu0 0.0
    %170 = vmatpush1.msra.mxu0 %v40
    %171 = vmatprep.subr.mxu0 0.0
    %172 = vmatpush1.msra.mxu0 %v41
    %173 = vmatprep.subr.mxu0 0.0
    %174 = vmatpush1.msra.mxu0 %v42
    %175 = vmatprep.subr.mxu0 0.0
    %176 = vmatpush1.msra.mxu0 %v43
    %177 = vmatprep.subr.mxu0 0.0
    %178 = vmatpush1.msra.mxu0 %v44
    %179 = vmatprep.subr.mxu0 0.0
    %180 = vmatpush1.msra.mxu0 %v45
    %181 = vmatprep.subr.mxu0 0.0
    %182 = vmatpush1.msra.mxu0 %v46
    %183 = vmatprep.subr.mxu0 0.0
    %184 = vmatpush1.msra.mxu0 %v47
    %185 = vmatprep.subr.mxu0 0.0
    %186 = vmatpush1.msra.mxu0 %v48
    %187 = vmatprep.subr.mxu0 0.0
    %188 = vmatpush1.msra.mxu0 %v49
    %189 = vmatprep.subr.mxu0 0.0
    %190 = vmatpush1.msra.mxu0 %v50
    %191 = vmatprep.subr.mxu0 0.0
    %192 = vmatpush1.msra.mxu0 %v51
    %193 = vmatprep.subr.mxu0 0.0
    %194 = vmatpush1.msra.mxu0 %v52
    %195 = vmatprep.subr.mxu0 0.0
    %196 = vmatpush1.msra.mxu0 %v53
    %197 = vmatprep.subr.mxu0 0.0
    %198 = vmatpush1.msra.mxu0 %v54
    %199 = vmatprep.subr.mxu0 0.0
    %200 = vmatpush1.msra.mxu0 %v55
    %201 = vmatprep.subr.mxu0 0.0
    %202 = vmatpush1.msra.mxu0 %v56
    %203 = vmatprep.subr.mxu0 0.0
    %204 = vmatpush1.msra.mxu0 %v57
    %205 = vmatprep.subr.mxu0 0.0
    %206 = vmatpush1.msra.mxu0 %v58
    %207 = vmatprep.subr.mxu0 0.0
    %208 = vmatpush1.msra.mxu0 %v59
    %209 = vmatprep.subr.mxu0 0.0
    %210 = vmatpush1.msra.mxu0 %v60
    %211 = vmatprep.subr.mxu0 0.0
    %212 = vmatpush1.msra.mxu0 %v61
    %213 = vmatprep.subr.mxu0 0.0
    %214 = vmatpush1.msra.mxu0 %v62
    %215 = vmatprep.subr.mxu0 0.0
    %216 = vmatpush1.msra.mxu0 %v63
    %217 = vmatprep.subr.mxu0 0.0
    %218 = vmatpush1.msra.mxu0 %v64
    %219 = vmatprep.subr.mxu0 0.0
    %220 = vmatpush1.msra.mxu0 %v65
    %221 = vmatprep.mubr.f32.mxu0 %v154
    %222 = vmatmul.mubr.f32.gmra.mrb[0].mxu0 %v153
    %v223 = vpop.f32.mrb[0].mxu0
    %v224 = vadd.f32 %v143, %v223
    %v225 = vpop.f32.mrb[0].mxu0
    %226 = vdwg.mxu0
    %v227 = vld [vmem:[%s4] sm:$0x1]
    %v229 = vlaneseq
    %v230 = vshrl.u32 %v229, 7
    %v231 = vsub.s32 0, %v230
    %v232 = vrot.slane %v227, %v231
    %v234 = vadd.f32 %v224, %v232
    %v235 = vmax.f32 %v234, 0.0
    %v236 = vld [vmem:[%s5] sm:$0xff]
    %v237 = vld [vmem:[%s5 + $0x8] sm:$0xff]
    %v238 = vld [vmem:[%s5 + $0x10] sm:$0xff]
    %v239 = vld [vmem:[%s5 + $0x18] sm:$0xff]
    %v240 = vld [vmem:[%s5 + $0x20] sm:$0xff]
    %v241 = vld [vmem:[%s5 + $0x28] sm:$0xff]
    %v242 = vld [vmem:[%s5 + $0x30] sm:$0xff]
    %v243 = vld [vmem:[%s5 + $0x38] sm:$0xff]
    %v244 = vld [vmem:[%s6] sm:$0x1]
    %v246 = vlaneseq
    %v247 = vshrl.u32 %v246, 7
    %v248 = vsub.s32 0, %v247
    %v249 = vrot.slane %v244, %v248
    %vm251 = vcmask 523264
    %v253 = vsel %vm251, %v235, 0
    %255 = vmatprep.subr.mxu0 0.0
    %256 = vmatpush1.msra.mxu0 %v236
    %257 = vmatprep.subr.mxu0 0.0
    %258 = vmatpush1.msra.mxu0 %v237
    %259 = vmatprep.subr.mxu0 0.0
    %260 = vmatpush1.msra.mxu0 %v238
    %261 = vmatprep.subr.mxu0 0.0
    %262 = vmatpush1.msra.mxu0 %v239
    %263 = vmatprep.subr.mxu0 0.0
    %264 = vmatpush1.msra.mxu0 %v240
    %265 = vmatprep.subr.mxu0 0.0
    %266 = vmatpush1.msra.mxu0 %v241
    %267 = vmatprep.subr.mxu0 0.0
    %268 = vmatpush1.msra.mxu0 %v242
    %269 = vmatprep.subr.mxu0 0.0
    %270 = vmatpush1.msra.mxu0 %v243
    %271 = vmatprep.subr.mxu0 0.0
    %272 = vmatpush1.msra.mxu0 0.0
    %273 = vmatprep.subr.mxu0 0.0
    %274 = vmatpush1.msra.mxu0 0.0
    %275 = vmatprep.subr.mxu0 0.0
    %276 = vmatpush1.msra.mxu0 0.0
    %277 = vmatprep.subr.mxu0 0.0
    %278 = vmatpush1.msra.mxu0 0.0
    %279 = vmatprep.subr.mxu0 0.0
    %280 = vmatpush1.msra.mxu0 0.0
    %281 = vmatprep.subr.mxu0 0.0
    %282 = vmatpush1.msra.mxu0 0.0
    %283 = vmatprep.subr.mxu0 0.0
    %284 = vmatpush1.msra.mxu0 0.0
    %285 = vmatprep.subr.mxu0 0.0
    %286 = vmatpush1.msra.mxu0 0.0
    %287 = vmatprep.subr.mxu0 0.0
    %288 = vmatpush1.msra.mxu0 0.0
    %289 = vmatprep.subr.mxu0 0.0
    %290 = vmatpush1.msra.mxu0 0.0
    %291 = vmatprep.subr.mxu0 0.0
    %292 = vmatpush1.msra.mxu0 0.0
    %293 = vmatprep.subr.mxu0 0.0
    %294 = vmatpush1.msra.mxu0 0.0
    %295 = vmatprep.subr.mxu0 0.0
    %296 = vmatpush1.msra.mxu0 0.0
    %297 = vmatprep.subr.mxu0 0.0
    %298 = vmatpush1.msra.mxu0 0.0
    %299 = vmatprep.subr.mxu0 0.0
    %300 = vmatpush1.msra.mxu0 0.0
    %301 = vmatprep.subr.mxu0 0.0
    %302 = vmatpush1.msra.mxu0 0.0
    %303 = vmatprep.subr.mxu0 0.0
    %304 = vmatpush1.msra.mxu0 0.0
    %305 = vmatprep.subr.mxu0 0.0
    %306 = vmatpush1.msra.mxu0 0.0
    %307 = vmatprep.subr.mxu0 0.0
    %308 = vmatpush1.msra.mxu0 0.0
    %309 = vmatprep.subr.mxu0 0.0
    %310 = vmatpush1.msra.mxu0 0.0
    %311 = vmatprep.subr.mxu0 0.0
    %312 = vmatpush1.msra.mxu0 0.0
    %313 = vmatprep.subr.mxu0 0.0
    %314 = vmatpush1.msra.mxu0 0.0
    %315 = vmatprep.subr.mxu0 0.0
    %316 = vmatpush1.msra.mxu0 0.0
    %317 = vmatprep.subr.mxu0 0.0
    %318 = vmatpush1.msra.mxu0 0.0
    %319 = vmatprep.mubr.f32.mxu0 0.0
    %320 = vmatmul.mubr.f32.gmra.mrb[0].mxu0 %v253
    %v321 = vpop.f32.mrb[0].mxu0
    %v322 = vadd.f32 %v249, %v321
    %v323 = vpop.f32.mrb[0].mxu0
    %324 = vdwg.mxu0
    %v325 = vmax.f32 %v322, 0.0
    %v326 = vld [vmem:[%s7] sm:$0xff]
    %v327 = vld [vmem:[%s7 + $0x8] sm:$0xff]
    %v328 = vld [vmem:[%s7 + $0x10] sm:$0xff]
    %v329 = vld [vmem:[%s7 + $0x18] sm:$0xff]
    %v330 = vld [vmem:[%s8] sm:$0x1]
    %v332 = vlaneseq
    %v333 = vshrl.u32 %v332, 7
    %v334 = vsub.s32 0, %v333
    %v335 = vrot.slane %v330, %v334
    %vm337 = vcmask 261120
    %v339 = vsel %vm337, %v325, 0
    %341 = vmatprep.subr.mxu0 0.0
    %342 = vmatpush1.msra.mxu0 %v326
    %343 = vmatprep.subr.mxu0 0.0
    %344 = vmatpush1.msra.mxu0 %v327
    %345 = vmatprep.subr.mxu0 0.0
    %346 = vmatpush1.msra.mxu0 %v328
    %347 = vmatprep.subr.mxu0 0.0
    %348 = vmatpush1.msra.mxu0 %v329
    %349 = vmatprep.subr.mxu0 0.0
    %350 = vmatpush1.msra.mxu0 0.0
    %351 = vmatprep.subr.mxu0 0.0
    %352 = vmatpush1.msra.mxu0 0.0
    %353 = vmatprep.subr.mxu0 0.0
    %354 = vmatpush1.msra.mxu0 0.0
    %355 = vmatprep.subr.mxu0 0.0
    %356 = vmatpush1.msra.mxu0 0.0
    %357 = vmatprep.subr.mxu0 0.0
    %358 = vmatpush1.msra.mxu0 0.0
    %359 = vmatprep.subr.mxu0 0.0
    %360 = vmatpush1.msra.mxu0 0.0
    %361 = vmatprep.subr.mxu0 0.0
    %362 = vmatpush1.msra.mxu0 0.0
    %363 = vmatprep.subr.mxu0 0.0
    %364 = vmatpush1.msra.mxu0 0.0
    %365 = vmatprep.subr.mxu0 0.0
    %366 = vmatpush1.msra.mxu0 0.0
    %367 = vmatprep.subr.mxu0 0.0
    %368 = vmatpush1.msra.mxu0 0.0
    %369 = vmatprep.subr.mxu0 0.0
    %370 = vmatpush1.msra.mxu0 0.0
    %371 = vmatprep.subr.mxu0 0.0
    %372 = vmatpush1.msra.mxu0 0.0
    %373 = vmatprep.subr.mxu0 0.0
    %374 = vmatpush1.msra.mxu0 0.0
    %375 = vmatprep.subr.mxu0 0.0
    %376 = vmatpush1.msra.mxu0 0.0
    %377 = vmatprep.subr.mxu0 0.0
    %378 = vmatpush1.msra.mxu0 0.0
    %379 = vmatprep.subr.mxu0 0.0
    %380 = vmatpush1.msra.mxu0 0.0
    %381 = vmatprep.subr.mxu0 0.0
    %382 = vmatpush1.msra.mxu0 0.0
    %383 = vmatprep.subr.mxu0 0.0
    %384 = vmatpush1.msra.mxu0 0.0
    %385 = vmatprep.subr.mxu0 0.0
    %386 = vmatpush1.msra.mxu0 0.0
    %387 = vmatprep.subr.mxu0 0.0
    %388 = vmatpush1.msra.mxu0 0.0
    %389 = vmatprep.subr.mxu0 0.0
    %390 = vmatpush1.msra.mxu0 0.0
    %391 = vmatprep.subr.mxu0 0.0
    %392 = vmatpush1.msra.mxu0 0.0
    %393 = vmatprep.subr.mxu0 0.0
    %394 = vmatpush1.msra.mxu0 0.0
    %395 = vmatprep.subr.mxu0 0.0
    %396 = vmatpush1.msra.mxu0 0.0
    %397 = vmatprep.subr.mxu0 0.0
    %398 = vmatpush1.msra.mxu0 0.0
    %399 = vmatprep.subr.mxu0 0.0
    %400 = vmatpush1.msra.mxu0 0.0
    %401 = vmatprep.subr.mxu0 0.0
    %402 = vmatpush1.msra.mxu0 0.0
    %403 = vmatprep.subr.mxu0 0.0
    %404 = vmatpush1.msra.mxu0 0.0
    %405 = vmatprep.mubr.f32.mxu0 0.0
    %406 = vmatmul.mubr.f32.gmra.mrb[0].mxu0 %v339
    %v407 = vpop.f32.mrb[0].mxu0
    %v408 = vadd.f32 %v335, %v407
    %v409 = vpop.f32.mrb[0].mxu0
    %410 = vdwg.mxu0
    %vm411 = vcmask 58368
    %412 = vst.msk [vmem:[#allocation2] sm:$0x3] %vm411, %v408
    // Predicated region
    $region38: #{robonet_forward.3} parent=1 // pred_check
      _
    $region39: #{robonet_forward.3} parent=1 // pred_check_branch
      %414 = sbr.rel (0) target = $region41
    $region40: #{robonet_forward.3} parent=1 // pred_region
      %s416 = ssub.s32 32, 32
      %417 = vsyncadd [#allocation3], %s416
      %s419 = sshll.u32 [#allocation2], 4
      %s420 = int_to_ptr.vmem [resolvable:$true] %s419
      %422 = dma.vmem_to_hbm [thread:$0]  %s420, 32, %s9, [#allocation3]
    $region41: #{robonet_forward.3} parent=1 // pred_fallthru
      _
    // Predicated region
    $region42: #{robonet_forward.3} parent=1 // pred_check
      _
    $region43: #{robonet_forward.3} parent=1 // pred_check_branch
      %424 = sbr.rel (0) target = $region45
    $region44: #{robonet_forward.3} parent=1 // pred_region
      %425 = dma.done [#allocation3], 32
    $region45: #{robonet_forward.3} parent=1 // pred_fallthru
      _
    %426 = vsyncpa [#allocation3], 1

</llo_original>
